<compile_context>
chip_gen: v6e
topology: v6e:2x2x1
jax: 0.10.0
libtpu: 0.0.40
codegen_flags: <defaults>
</compile_context>

<pallas_src>
import functools

import numpy as np
import jax
import jax.numpy as jnp
from jax import lax
from jax.experimental import pallas as pl
from jax.experimental.pallas import tpu as pltpu

_LN_EPS = 1e-5  # PyTorch nn.LayerNorm default


# --------------------------------------------------------------------------- small helpers
def _vmem_spec():
    ms = getattr(pltpu, "MemorySpace", None) or getattr(pltpu, "TPUMemorySpace", None)
    return pl.BlockSpec(memory_space=ms.VMEM) if ms is not None else pl.BlockSpec()


def _fori_unrolled(n, body, init):
    try:
        return lax.fori_loop(0, n, body, init, unroll=True)
    except TypeError:  # older jax without the `unroll` kwarg
        return lax.fori_loop(0, n, body, init)


def _approx_recip(x):
    if hasattr(pl, "reciprocal"):
        return pl.reciprocal(x, approx=True)
    return 1.0 / x


def make_vec_layout(num_layers, hidden):
    """Static layout of the packed small-vector table: name -> (row, width)."""
    E = 2 * hidden
    h1, h2, h3 = hidden, hidden // 2, hidden // 4
    names = [(f"lstm_b{l}", 8 * hidden) for l in range(num_layers)]
    names += [("ln_g", E), ("ln_b", E), ("bqkv", 3 * E), ("bo", E),
              ("b1", h1), ("g1", h1), ("be1", h1),
              ("b2", h2), ("g2", h2), ("be2", h2),
              ("b3", h3), ("g3", h3), ("be3", h3),
              ("w4", h3), ("b4", 1)]
    layout = {nm: (i, w) for i, (nm, w) in enumerate(names)}
    width = max(w for _, w in names)
    return layout, len(names), width


# --------------------------------------------------------------------------- fused kernel
def model_kernel(*refs, num_layers, num_heads, layout):
    # ---- unpack (inputs..., output, scratches) ----
    x_ref = refs[0]
    lstm_refs = refs[1:1 + 2 * num_layers]                 # per layer: wih (Din,8H), whh (2H,4H)
    base = 1 + 2 * num_layers
    vecs_ref, wqkv_ref, wo_ref, w1_ref, w2_ref, w3_ref = refs[base:base + 6]
    o_ref = refs[base + 6]
    zf_scr, zb_scr, outf_a, outb_a, outf_b, outb_b = refs[base + 7:base + 13]

    B, T, F = x_ref.shape
    H = lstm_refs[1].shape[0] // 2                         # whh stacked: (2H, 4H)
    E = 2 * H
    f32 = jnp.float32

    def vrow(name):                                        # (1, width) slice of packed vectors
        row, width = layout[name]
        return vecs_ref[row:row + 1, 0:width]

    def cell(z, c):
        # PyTorch gate order i, f, g, o; tanh only on the g slice (EUP trim)
        sg = jax.nn.sigmoid(z)
        g = jnp.tanh(z[:, 2 * H:3 * H])
        c_n = sg[:, H:2 * H] * c + sg[:, 0:H] * g
        h_n = sg[:, 3 * H:4 * H] * jnp.tanh(c_n)
        return h_n, c_n

    # ---- hoisted input projections (fill zf/zb scratch for one layer) ----
    def project_from_x(wih_ref, bias):
        # batch-first x; the batch->time-major reorder is folded in via static slices
        z = (jnp.dot(x_ref[...].reshape(B * T, F), wih_ref[...],
                     preferred_element_type=f32) + bias).reshape(B, T, 8 * H)
        for t in range(T):                                 # static, outside the recurrence
            zf_scr[t] = z[:, t, 0:4 * H]
            zb_scr[t] = z[:, t, 4 * H:8 * H]

    def project_from_pair(outf, outb, wih_ref, bias):
        # next-layer input is [outf | outb]; two half matmuls avoid materializing the concat
        wih = wih_ref[...]                                 # (2H, 8H)
        z = (jnp.dot(outf[...].reshape(T * B, H), wih[0:H, :], preferred_element_type=f32)
             + jnp.dot(outb[...].reshape(T * B, H), wih[H:2 * H, :], preferred_element_type=f32)
             + bias).reshape(T, B, 8 * H)
        zf_scr[...] = z[:, :, 0:4 * H]
        zb_scr[...] = z[:, :, 4 * H:8 * H]

    def project(l, src_pair):
        if src_pair is None:
            project_from_x(lstm_refs[2 * l], vrow(f"lstm_b{l}"))
        else:
            project_from_pair(src_pair[0], src_pair[1], lstm_refs[2 * l], vrow(f"lstm_b{l}"))

    z0 = jnp.zeros((B, H), f32)
    pairs = ((outf_a, outb_a), (outf_b, outb_b))
    src_pair = None

    # ---- full-sequence bidirectional layers 0 .. num_layers-2 ----
    for l in range(num_layers - 1):
        project(l, src_pair)
        whh = lstm_refs[2 * l + 1][...]
        whh_f, whh_b = whh[0:H, :], whh[H:2 * H, :]
        dst_f, dst_b = pairs[l % 2]

        def step(t, carry):
            h_f, c_f, h_b, c_b = carry
            tb = T - 1 - t                                 # in-kernel time reversal
            z_f = zf_scr[t] + jnp.dot(h_f, whh_f, preferred_element_type=f32)
            z_b = zb_scr[tb] + jnp.dot(h_b, whh_b, preferred_element_type=f32)
            h_f, c_f = cell(z_f, c_f)
            h_b, c_b = cell(z_b, c_b)
            dst_f[t] = h_f
            dst_b[tb] = h_b
            return h_f, c_f, h_b, c_b

        _fori_unrolled(T, step, (z0, z0, z0, z0))
        src_pair = pairs[l % 2]

    # ---- top layer: downstream consumes ONLY t = T-1 (see header note) ----
    lt = num_layers - 1
    project(lt, src_pair)
    whh_f_top = lstm_refs[2 * lt + 1][0:H, :]

    def fwd_step(t, carry):
        h_f, c_f = carry
        z_f = zf_scr[t] + jnp.dot(h_f, whh_f_top, preferred_element_type=f32)
        return cell(z_f, c_f)

    h_f_last, _ = _fori_unrolled(T, fwd_step, (z0, z0))
    # reverse direction at t = T-1 == one cell step from the zero state on input[T-1]
    h_b_last, _ = cell(zb_scr[T - 1], z0)
    last = jnp.concatenate([h_f_last, h_b_last], axis=-1)  # (B, E)

    # ---- fused post stage: LN -> MHA over the B rows -> residual + same LN -> MLP head ----
    def ln(a, g, b):
        mu = jnp.mean(a, axis=-1, keepdims=True)
        d = a - mu
        var = jnp.mean(d * d, axis=-1, keepdims=True)
        return d * lax.rsqrt(var + _LN_EPS) * g + b

    ln_g, ln_b = vrow("ln_g"), vrow("ln_b")
    y = ln(last, ln_g, ln_b)                               # (B, E)

    hd = E // num_heads
    scale = 1.0 / float(np.sqrt(hd))
    proj = jnp.dot(y, wqkv_ref[...], preferred_element_type=f32) + vrow("bqkv")  # (B, 3E)
    q = proj[:, 0:E] * scale
    k = proj[:, E:2 * E]
    v = proj[:, 2 * E:3 * E]

    # heads stacked into a leading batch axis -> one batched contraction per stage
    qh = jnp.stack([q[:, h * hd:(h + 1) * hd] for h in range(num_heads)], axis=0)
    kh = jnp.stack([k[:, h * hd:(h + 1) * hd] for h in range(num_heads)], axis=0)
    vh = jnp.stack([v[:, h * hd:(h + 1) * hd] for h in range(num_heads)], axis=0)

    s = jnp.einsum("hid,hjd->hij", qh, kh, preferred_element_type=f32)   # (nh, B, B)
    m = jnp.max(s, axis=-1, keepdims=True)
    e = jnp.exp(s - m)
    p = e * _approx_recip(jnp.sum(e, axis=-1, keepdims=True))
    ctx = jnp.einsum("hij,hjd->hid", p, vh, preferred_element_type=f32)  # (nh, B, hd)
    ctx2 = jnp.concatenate([ctx[h] for h in range(num_heads)], axis=-1)  # (B, E)

    attn = jnp.dot(ctx2, wo_ref[...], preferred_element_type=f32) + vrow("bo")
    z = ln(attn + y, ln_g, ln_b)   # the reference applies the SAME nn.LayerNorm twice

    h1 = jnp.maximum(ln(jnp.dot(z, w1_ref[...], preferred_element_type=f32)
                        + vrow("b1"), vrow("g1"), vrow("be1")), 0.0)
    h2 = jnp.maximum(ln(jnp.dot(h1, w2_ref[...], preferred_element_type=f32)
                        + vrow("b2"), vrow("g2"), vrow("be2")), 0.0)
    h3 = jnp.maximum(ln(jnp.dot(h2, w3_ref[...], preferred_element_type=f32)
                        + vrow("b3"), vrow("g3"), vrow("be3")), 0.0)
    # final Linear(hidden//4 -> 1) as a lane reduction
    o_ref[...] = jnp.sum(h3 * vrow("w4"), axis=-1, keepdims=True) + vrow("b4")


# --------------------------------------------------------------------------- wrapper
def forward(x, params, *, num_heads):
    B, T, F = x.shape
    num_layers = len(params["wih"])
    H = params["whh"][0].shape[0] // 2
    layout, _, _ = make_vec_layout(num_layers, H)

    args = [x]
    for l in range(num_layers):
        args += [params["wih"][l], params["whh"][l]]
    args += [params["vecs"], params["wqkv"], params["wo"],
             params["w1"], params["w2"], params["w3"]]

    kernel = functools.partial(model_kernel, num_layers=num_layers,
                               num_heads=num_heads, layout=layout)

    scratch = ([pltpu.VMEM((T, B, 4 * H), jnp.float32) for _ in range(2)]      # zf, zb
               + [pltpu.VMEM((T, B, H), jnp.float32) for _ in range(4)])       # out ping-pong

    return pl.pallas_call(
        kernel,
        out_shape=jax.ShapeDtypeStruct((B, 1), jnp.float32),
        in_specs=[_vmem_spec() for _ in range(len(args))],
        out_specs=_vmem_spec(),
        scratch_shapes=scratch,
    )(*args)


# --------------------------------------------------------------------------- synthetic params
def init_params(key, input_size, hidden, num_layers):
    E = 2 * hidden
    h1, h2, h3 = hidden, hidden // 2, hidden // 4
    keys = iter(jax.random.split(key, 16 * num_layers + 32))

    def uinit(shape, fan_in):
        k = 1.0 / np.sqrt(fan_in)
        return jax.random.uniform(next(keys), shape, jnp.float32, -k, k)

    wih, whh, vec_values = [], [], {}
    for l in range(num_layers):
        din = input_size if l == 0 else E
        # packed input weights: lanes [0:4H] = forward dir, lanes [4H:8H] = backward dir
        wih.append(jnp.concatenate([uinit((din, 4 * hidden), hidden),
                                    uinit((din, 4 * hidden), hidden)], axis=-1))
        # stacked recurrent weights: rows [0:H] = Whh_f^T, rows [H:2H] = Whh_b^T
        whh.append(jnp.concatenate([uinit((hidden, 4 * hidden), hidden),
                                    uinit((hidden, 4 * hidden), hidden)], axis=0))
        b_f = uinit((4 * hidden,), hidden) + uinit((4 * hidden,), hidden)   # b_ih + b_hh
        b_b = uinit((4 * hidden,), hidden) + uinit((4 * hidden,), hidden)
        vec_values[f"lstm_b{l}"] = jnp.concatenate([b_f, b_b], axis=0)

    vec_values["ln_g"] = jnp.ones((E,), jnp.float32)
    vec_values["ln_b"] = jnp.zeros((E,), jnp.float32)
    vec_values["bqkv"] = jnp.zeros((3 * E,), jnp.float32)
    vec_values["bo"] = jnp.zeros((E,), jnp.float32)
    vec_values["b1"], vec_values["g1"], vec_values["be1"] = \
        uinit((h1,), E), jnp.ones((h1,), jnp.float32), jnp.zeros((h1,), jnp.float32)
    vec_values["b2"], vec_values["g2"], vec_values["be2"] = \
        uinit((h2,), h1), jnp.ones((h2,), jnp.float32), jnp.zeros((h2,), jnp.float32)
    vec_values["b3"], vec_values["g3"], vec_values["be3"] = \
        uinit((h3,), h2), jnp.ones((h3,), jnp.float32), jnp.zeros((h3,), jnp.float32)
    vec_values["w4"] = uinit((h3,), h3)
    vec_values["b4"] = uinit((1,), h3)

    layout, n_rows, width = make_vec_layout(num_layers, hidden)
    packed = np.zeros((n_rows, width), np.float32)
    for nm, (row, w) in layout.items():
        packed[row, :w] = np.asarray(vec_values[nm], np.float32).reshape(-1)

    return {
        "wih": wih, "whh": whh, "vecs": jnp.asarray(packed),
        "wqkv": uinit((E, 3 * E), E), "wo": uinit((E, E), E),
        "w1": uinit((E, h1), E), "w2": uinit((h1, h2), h1), "w3": uinit((h2, h3), h2),
    }


# ---------------------------------------------------------------------------
if __name__ == "__main__":
    B, T = 2, 8
    input_size, hidden, num_layers, num_heads = 8, 32, 2, 4

    root = jax.random.PRNGKey(0)
    kx, kp = jax.random.split(root)
    params = init_params(kp, input_size, hidden, num_layers)
    x = jax.random.normal(kx, (B, T, input_size), jnp.float32)

    fwd = jax.jit(functools.partial(forward, num_heads=num_heads))
    out = jax.block_until_ready(fwd(x, params))

    assert out.shape == (B, 1), out.shape
    assert bool(jnp.all(jnp.isfinite(out)))
    print("KERNEL_OK")
</pallas_src>

<mosaic_0001>
module attributes {stable_mosaic.version = 11 : i64} {
  func.func @model_kernel(%arg0: memref<2x8x8xf32, #tpu.memory_space<vmem>>, %arg1: memref<8x256xf32, #tpu.memory_space<vmem>>, %arg2: memref<64x128xf32, #tpu.memory_space<vmem>>, %arg3: memref<64x256xf32, #tpu.memory_space<vmem>>, %arg4: memref<64x128xf32, #tpu.memory_space<vmem>>, %arg5: memref<17x256xf32, #tpu.memory_space<vmem>>, %arg6: memref<64x192xf32, #tpu.memory_space<vmem>>, %arg7: memref<64x64xf32, #tpu.memory_space<vmem>>, %arg8: memref<64x32xf32, #tpu.memory_space<vmem>>, %arg9: memref<32x16xf32, #tpu.memory_space<vmem>>, %arg10: memref<16x8xf32, #tpu.memory_space<vmem>>, %arg11: memref<2x1xf32, #tpu.memory_space<vmem>>, %arg12: memref<8x2x128xf32, #tpu.memory_space<vmem>>, %arg13: memref<8x2x128xf32, #tpu.memory_space<vmem>>, %arg14: memref<8x2x32xf32, #tpu.memory_space<vmem>>, %arg15: memref<8x2x32xf32, #tpu.memory_space<vmem>>, %arg16: memref<8x2x32xf32, #tpu.memory_space<vmem>>, %arg17: memref<8x2x32xf32, #tpu.memory_space<vmem>>) attributes {dimension_semantics = [], scalar_prefetch = 0 : i64, scratch_operands = 6 : i64, tpu.core_type = #tpu.core_type<tc>} {
    %cst = arith.constant 0.000000e+00 : f32
    %0 = vector.broadcast %cst : f32 to vector<2x32xf32>
    %c0 = arith.constant 0 : index
    %c0_0 = arith.constant 0 : index
    %1 = vector.load %arg5[%c0, %c0_0] : memref<17x256xf32, #tpu.memory_space<vmem>>, vector<1x256xf32>
    %c0_1 = arith.constant 0 : index
    %c0_2 = arith.constant 0 : index
    %c0_3 = arith.constant 0 : index
    %2 = vector.load %arg0[%c0_1, %c0_2, %c0_3] : memref<2x8x8xf32, #tpu.memory_space<vmem>>, vector<2x8x8xf32>
    %3 = vector.shape_cast %2 : vector<2x8x8xf32> to vector<16x8xf32>
    %c0_4 = arith.constant 0 : index
    %c0_5 = arith.constant 0 : index
    %4 = vector.load %arg1[%c0_4, %c0_5] : memref<8x256xf32, #tpu.memory_space<vmem>>, vector<8x256xf32>
    %cst_6 = arith.constant dense<0.000000e+00> : vector<16x256xf32>
    %5 = tpu.matmul %3, %4, %cst_6 {dimension_numbers = #tpu.dot_dimension_numbers<[1], [0], [0], [1], [0, 0, 1, 1], [], []>} : vector<16x8xf32>, vector<8x256xf32>, vector<16x256xf32> -> vector<16x256xf32>
    %6 = vector.broadcast %1 : vector<1x256xf32> to vector<16x256xf32>
    %7 = arith.addf %5, %6 : vector<16x256xf32>
    %8 = vector.shape_cast %7 : vector<16x256xf32> to vector<2x8x256xf32>
    %9 = vector.extract_strided_slice %8 {offsets = [0, 0, 0], sizes = [2, 1, 128], strides = [1, 1, 1]} : vector<2x8x256xf32> to vector<2x1x128xf32>
    %10 = vector.shape_cast %9 : vector<2x1x128xf32> to vector<2x128xf32>
    %c0_7 = arith.constant 0 : index
    %c0_8 = arith.constant 0 : index
    %c0_9 = arith.constant 0 : index
    %11 = vector.load %arg12[%c0_7, %c0_8, %c0_9] : memref<8x2x128xf32, #tpu.memory_space<vmem>>, vector<1x2x128xf32>
    %12 = vector.shape_cast %11 : vector<1x2x128xf32> to vector<2x128xf32>
    %13 = vector.shape_cast %10 : vector<2x128xf32> to vector<1x2x128xf32>
    tpu.vector_store %arg12[%c0_7, %c0_8, %c0_9], %13 {strides = array<i32>} : memref<8x2x128xf32, #tpu.memory_space<vmem>>, vector<1x2x128xf32>,
    %14 = vector.extract_strided_slice %8 {offsets = [0, 0, 128], sizes = [2, 1, 128], strides = [1, 1, 1]} : vector<2x8x256xf32> to vector<2x1x128xf32>
    %15 = vector.shape_cast %14 : vector<2x1x128xf32> to vector<2x128xf32>
    %c0_10 = arith.constant 0 : index
    %c0_11 = arith.constant 0 : index
    %c0_12 = arith.constant 0 : index
    %16 = vector.load %arg13[%c0_10, %c0_11, %c0_12] : memref<8x2x128xf32, #tpu.memory_space<vmem>>, vector<1x2x128xf32>
    %17 = vector.shape_cast %16 : vector<1x2x128xf32> to vector<2x128xf32>
    %18 = vector.shape_cast %15 : vector<2x128xf32> to vector<1x2x128xf32>
    tpu.vector_store %arg13[%c0_10, %c0_11, %c0_12], %18 {strides = array<i32>} : memref<8x2x128xf32, #tpu.memory_space<vmem>>, vector<1x2x128xf32>,
    %19 = vector.extract_strided_slice %8 {offsets = [0, 1, 0], sizes = [2, 1, 128], strides = [1, 1, 1]} : vector<2x8x256xf32> to vector<2x1x128xf32>
    %20 = vector.shape_cast %19 : vector<2x1x128xf32> to vector<2x128xf32>
    %c1 = arith.constant 1 : index
    %c0_13 = arith.constant 0 : index
    %c0_14 = arith.constant 0 : index
    %21 = vector.load %arg12[%c1, %c0_13, %c0_14] : memref<8x2x128xf32, #tpu.memory_space<vmem>>, vector<1x2x128xf32>
    %22 = vector.shape_cast %21 : vector<1x2x128xf32> to vector<2x128xf32>
    %23 = vector.shape_cast %20 : vector<2x128xf32> to vector<1x2x128xf32>
    tpu.vector_store %arg12[%c1, %c0_13, %c0_14], %23 {strides = array<i32>} : memref<8x2x128xf32, #tpu.memory_space<vmem>>, vector<1x2x128xf32>,
    %24 = vector.extract_strided_slice %8 {offsets = [0, 1, 128], sizes = [2, 1, 128], strides = [1, 1, 1]} : vector<2x8x256xf32> to vector<2x1x128xf32>
    %25 = vector.shape_cast %24 : vector<2x1x128xf32> to vector<2x128xf32>
    %c1_15 = arith.constant 1 : index
    %c0_16 = arith.constant 0 : index
    %c0_17 = arith.constant 0 : index
    %26 = vector.load %arg13[%c1_15, %c0_16, %c0_17] : memref<8x2x128xf32, #tpu.memory_space<vmem>>, vector<1x2x128xf32>
    %27 = vector.shape_cast %26 : vector<1x2x128xf32> to vector<2x128xf32>
    %28 = vector.shape_cast %25 : vector<2x128xf32> to vector<1x2x128xf32>
    tpu.vector_store %arg13[%c1_15, %c0_16, %c0_17], %28 {strides = array<i32>} : memref<8x2x128xf32, #tpu.memory_space<vmem>>, vector<1x2x128xf32>,
    %29 = vector.extract_strided_slice %8 {offsets = [0, 2, 0], sizes = [2, 1, 128], strides = [1, 1, 1]} : vector<2x8x256xf32> to vector<2x1x128xf32>
    %30 = vector.shape_cast %29 : vector<2x1x128xf32> to vector<2x128xf32>
    %c2 = arith.constant 2 : index
    %c0_18 = arith.constant 0 : index
    %c0_19 = arith.constant 0 : index
    %31 = vector.load %arg12[%c2, %c0_18, %c0_19] : memref<8x2x128xf32, #tpu.memory_space<vmem>>, vector<1x2x128xf32>
    %32 = vector.shape_cast %31 : vector<1x2x128xf32> to vector<2x128xf32>
    %33 = vector.shape_cast %30 : vector<2x128xf32> to vector<1x2x128xf32>
    tpu.vector_store %arg12[%c2, %c0_18, %c0_19], %33 {strides = array<i32>} : memref<8x2x128xf32, #tpu.memory_space<vmem>>, vector<1x2x128xf32>,
    %34 = vector.extract_strided_slice %8 {offsets = [0, 2, 128], sizes = [2, 1, 128], strides = [1, 1, 1]} : vector<2x8x256xf32> to vector<2x1x128xf32>
    %35 = vector.shape_cast %34 : vector<2x1x128xf32> to vector<2x128xf32>
    %c2_20 = arith.constant 2 : index
    %c0_21 = arith.constant 0 : index
    %c0_22 = arith.constant 0 : index
    %36 = vector.load %arg13[%c2_20, %c0_21, %c0_22] : memref<8x2x128xf32, #tpu.memory_space<vmem>>, vector<1x2x128xf32>
    %37 = vector.shape_cast %36 : vector<1x2x128xf32> to vector<2x128xf32>
    %38 = vector.shape_cast %35 : vector<2x128xf32> to vector<1x2x128xf32>
    tpu.vector_store %arg13[%c2_20, %c0_21, %c0_22], %38 {strides = array<i32>} : memref<8x2x128xf32, #tpu.memory_space<vmem>>, vector<1x2x128xf32>,
    %39 = vector.extract_strided_slice %8 {offsets = [0, 3, 0], sizes = [2, 1, 128], strides = [1, 1, 1]} : vector<2x8x256xf32> to vector<2x1x128xf32>
    %40 = vector.shape_cast %39 : vector<2x1x128xf32> to vector<2x128xf32>
    %c3 = arith.constant 3 : index
    %c0_23 = arith.constant 0 : index
    %c0_24 = arith.constant 0 : index
    %41 = vector.load %arg12[%c3, %c0_23, %c0_24] : memref<8x2x128xf32, #tpu.memory_space<vmem>>, vector<1x2x128xf32>
    %42 = vector.shape_cast %41 : vector<1x2x128xf32> to vector<2x128xf32>
    %43 = vector.shape_cast %40 : vector<2x128xf32> to vector<1x2x128xf32>
    tpu.vector_store %arg12[%c3, %c0_23, %c0_24], %43 {strides = array<i32>} : memref<8x2x128xf32, #tpu.memory_space<vmem>>, vector<1x2x128xf32>,
    %44 = vector.extract_strided_slice %8 {offsets = [0, 3, 128], sizes = [2, 1, 128], strides = [1, 1, 1]} : vector<2x8x256xf32> to vector<2x1x128xf32>
    %45 = vector.shape_cast %44 : vector<2x1x128xf32> to vector<2x128xf32>
    %c3_25 = arith.constant 3 : index
    %c0_26 = arith.constant 0 : index
    %c0_27 = arith.constant 0 : index
    %46 = vector.load %arg13[%c3_25, %c0_26, %c0_27] : memref<8x2x128xf32, #tpu.memory_space<vmem>>, vector<1x2x128xf32>
    %47 = vector.shape_cast %46 : vector<1x2x128xf32> to vector<2x128xf32>
    %48 = vector.shape_cast %45 : vector<2x128xf32> to vector<1x2x128xf32>
    tpu.vector_store %arg13[%c3_25, %c0_26, %c0_27], %48 {strides = array<i32>} : memref<8x2x128xf32, #tpu.memory_space<vmem>>, vector<1x2x128xf32>,
    %49 = vector.extract_strided_slice %8 {offsets = [0, 4, 0], sizes = [2, 1, 128], strides = [1, 1, 1]} : vector<2x8x256xf32> to vector<2x1x128xf32>
    %50 = vector.shape_cast %49 : vector<2x1x128xf32> to vector<2x128xf32>
    %c4 = arith.constant 4 : index
    %c0_28 = arith.constant 0 : index
    %c0_29 = arith.constant 0 : index
    %51 = vector.load %arg12[%c4, %c0_28, %c0_29] : memref<8x2x128xf32, #tpu.memory_space<vmem>>, vector<1x2x128xf32>
    %52 = vector.shape_cast %51 : vector<1x2x128xf32> to vector<2x128xf32>
    %53 = vector.shape_cast %50 : vector<2x128xf32> to vector<1x2x128xf32>
    tpu.vector_store %arg12[%c4, %c0_28, %c0_29], %53 {strides = array<i32>} : memref<8x2x128xf32, #tpu.memory_space<vmem>>, vector<1x2x128xf32>,
    %54 = vector.extract_strided_slice %8 {offsets = [0, 4, 128], sizes = [2, 1, 128], strides = [1, 1, 1]} : vector<2x8x256xf32> to vector<2x1x128xf32>
    %55 = vector.shape_cast %54 : vector<2x1x128xf32> to vector<2x128xf32>
    %c4_30 = arith.constant 4 : index
    %c0_31 = arith.constant 0 : index
    %c0_32 = arith.constant 0 : index
    %56 = vector.load %arg13[%c4_30, %c0_31, %c0_32] : memref<8x2x128xf32, #tpu.memory_space<vmem>>, vector<1x2x128xf32>
    %57 = vector.shape_cast %56 : vector<1x2x128xf32> to vector<2x128xf32>
    %58 = vector.shape_cast %55 : vector<2x128xf32> to vector<1x2x128xf32>
    tpu.vector_store %arg13[%c4_30, %c0_31, %c0_32], %58 {strides = array<i32>} : memref<8x2x128xf32, #tpu.memory_space<vmem>>, vector<1x2x128xf32>,
    %59 = vector.extract_strided_slice %8 {offsets = [0, 5, 0], sizes = [2, 1, 128], strides = [1, 1, 1]} : vector<2x8x256xf32> to vector<2x1x128xf32>
    %60 = vector.shape_cast %59 : vector<2x1x128xf32> to vector<2x128xf32>
    %c5 = arith.constant 5 : index
    %c0_33 = arith.constant 0 : index
    %c0_34 = arith.constant 0 : index
    %61 = vector.load %arg12[%c5, %c0_33, %c0_34] : memref<8x2x128xf32, #tpu.memory_space<vmem>>, vector<1x2x128xf32>
    %62 = vector.shape_cast %61 : vector<1x2x128xf32> to vector<2x128xf32>
    %63 = vector.shape_cast %60 : vector<2x128xf32> to vector<1x2x128xf32>
    tpu.vector_store %arg12[%c5, %c0_33, %c0_34], %63 {strides = array<i32>} : memref<8x2x128xf32, #tpu.memory_space<vmem>>, vector<1x2x128xf32>,
    %64 = vector.extract_strided_slice %8 {offsets = [0, 5, 128], sizes = [2, 1, 128], strides = [1, 1, 1]} : vector<2x8x256xf32> to vector<2x1x128xf32>
    %65 = vector.shape_cast %64 : vector<2x1x128xf32> to vector<2x128xf32>
    %c5_35 = arith.constant 5 : index
    %c0_36 = arith.constant 0 : index
    %c0_37 = arith.constant 0 : index
    %66 = vector.load %arg13[%c5_35, %c0_36, %c0_37] : memref<8x2x128xf32, #tpu.memory_space<vmem>>, vector<1x2x128xf32>
    %67 = vector.shape_cast %66 : vector<1x2x128xf32> to vector<2x128xf32>
    %68 = vector.shape_cast %65 : vector<2x128xf32> to vector<1x2x128xf32>
    tpu.vector_store %arg13[%c5_35, %c0_36, %c0_37], %68 {strides = array<i32>} : memref<8x2x128xf32, #tpu.memory_space<vmem>>, vector<1x2x128xf32>,
    %69 = vector.extract_strided_slice %8 {offsets = [0, 6, 0], sizes = [2, 1, 128], strides = [1, 1, 1]} : vector<2x8x256xf32> to vector<2x1x128xf32>
    %70 = vector.shape_cast %69 : vector<2x1x128xf32> to vector<2x128xf32>
    %c6 = arith.constant 6 : index
    %c0_38 = arith.constant 0 : index
    %c0_39 = arith.constant 0 : index
    %71 = vector.load %arg12[%c6, %c0_38, %c0_39] : memref<8x2x128xf32, #tpu.memory_space<vmem>>, vector<1x2x128xf32>
    %72 = vector.shape_cast %71 : vector<1x2x128xf32> to vector<2x128xf32>
    %73 = vector.shape_cast %70 : vector<2x128xf32> to vector<1x2x128xf32>
    tpu.vector_store %arg12[%c6, %c0_38, %c0_39], %73 {strides = array<i32>} : memref<8x2x128xf32, #tpu.memory_space<vmem>>, vector<1x2x128xf32>,
    %74 = vector.extract_strided_slice %8 {offsets = [0, 6, 128], sizes = [2, 1, 128], strides = [1, 1, 1]} : vector<2x8x256xf32> to vector<2x1x128xf32>
    %75 = vector.shape_cast %74 : vector<2x1x128xf32> to vector<2x128xf32>
    %c6_40 = arith.constant 6 : index
    %c0_41 = arith.constant 0 : index
    %c0_42 = arith.constant 0 : index
    %76 = vector.load %arg13[%c6_40, %c0_41, %c0_42] : memref<8x2x128xf32, #tpu.memory_space<vmem>>, vector<1x2x128xf32>
    %77 = vector.shape_cast %76 : vector<1x2x128xf32> to vector<2x128xf32>
    %78 = vector.shape_cast %75 : vector<2x128xf32> to vector<1x2x128xf32>
    tpu.vector_store %arg13[%c6_40, %c0_41, %c0_42], %78 {strides = array<i32>} : memref<8x2x128xf32, #tpu.memory_space<vmem>>, vector<1x2x128xf32>,
    %79 = vector.extract_strided_slice %8 {offsets = [0, 7, 0], sizes = [2, 1, 128], strides = [1, 1, 1]} : vector<2x8x256xf32> to vector<2x1x128xf32>
    %80 = vector.shape_cast %79 : vector<2x1x128xf32> to vector<2x128xf32>
    %c7 = arith.constant 7 : index
    %c0_43 = arith.constant 0 : index
    %c0_44 = arith.constant 0 : index
    %81 = vector.load %arg12[%c7, %c0_43, %c0_44] : memref<8x2x128xf32, #tpu.memory_space<vmem>>, vector<1x2x128xf32>
    %82 = vector.shape_cast %81 : vector<1x2x128xf32> to vector<2x128xf32>
    %83 = vector.shape_cast %80 : vector<2x128xf32> to vector<1x2x128xf32>
    tpu.vector_store %arg12[%c7, %c0_43, %c0_44], %83 {strides = array<i32>} : memref<8x2x128xf32, #tpu.memory_space<vmem>>, vector<1x2x128xf32>,
    %84 = vector.extract_strided_slice %8 {offsets = [0, 7, 128], sizes = [2, 1, 128], strides = [1, 1, 1]} : vector<2x8x256xf32> to vector<2x1x128xf32>
    %85 = vector.shape_cast %84 : vector<2x1x128xf32> to vector<2x128xf32>
    %c7_45 = arith.constant 7 : index
    %c0_46 = arith.constant 0 : index
    %c0_47 = arith.constant 0 : index
    %86 = vector.load %arg13[%c7_45, %c0_46, %c0_47] : memref<8x2x128xf32, #tpu.memory_space<vmem>>, vector<1x2x128xf32>
    %87 = vector.shape_cast %86 : vector<1x2x128xf32> to vector<2x128xf32>
    %88 = vector.shape_cast %85 : vector<2x128xf32> to vector<1x2x128xf32>
    tpu.vector_store %arg13[%c7_45, %c0_46, %c0_47], %88 {strides = array<i32>} : memref<8x2x128xf32, #tpu.memory_space<vmem>>, vector<1x2x128xf32>,
    %c0_48 = arith.constant 0 : index
    %c0_49 = arith.constant 0 : index
    %89 = vector.load %arg2[%c0_48, %c0_49] : memref<64x128xf32, #tpu.memory_space<vmem>>, vector<64x128xf32>
    %90 = vector.extract_strided_slice %89 {offsets = [0, 0], sizes = [32, 128], strides = [1, 1]} : vector<64x128xf32> to vector<32x128xf32>
    %91 = vector.extract_strided_slice %89 {offsets = [32, 0], sizes = [32, 128], strides = [1, 1]} : vector<64x128xf32> to vector<32x128xf32>
    %c0_i32 = arith.constant 0 : i32
    %c7_i32 = arith.constant 7 : i32
    %92 = arith.subi %c7_i32, %c0_i32 : i32
    %93 = arith.index_cast %c0_i32 : i32 to index
    %c0_50 = arith.constant 0 : index
    %c0_51 = arith.constant 0 : index
    %94 = vector.load %arg12[%93, %c0_50, %c0_51] : memref<8x2x128xf32, #tpu.memory_space<vmem>>, vector<1x2x128xf32>
    %95 = vector.shape_cast %94 : vector<1x2x128xf32> to vector<2x128xf32>
    %cst_52 = arith.constant dense<0.000000e+00> : vector<2x128xf32>
    %96 = tpu.matmul %0, %90, %cst_52 {dimension_numbers = #tpu.dot_dimension_numbers<[1], [0], [0], [1], [0, 0, 1, 1], [], []>} : vector<2x32xf32>, vector<32x128xf32>, vector<2x128xf32> -> vector<2x128xf32>
    %97 = arith.addf %95, %96 : vector<2x128xf32>
    %98 = arith.index_cast %92 : i32 to index
    %c0_53 = arith.constant 0 : index
    %c0_54 = arith.constant 0 : index
    %99 = vector.load %arg13[%98, %c0_53, %c0_54] : memref<8x2x128xf32, #tpu.memory_space<vmem>>, vector<1x2x128xf32>
    %100 = vector.shape_cast %99 : vector<1x2x128xf32> to vector<2x128xf32>
    %cst_55 = arith.constant dense<0.000000e+00> : vector<2x128xf32>
    %101 = tpu.matmul %0, %91, %cst_55 {dimension_numbers = #tpu.dot_dimension_numbers<[1], [0], [0], [1], [0, 0, 1, 1], [], []>} : vector<2x32xf32>, vector<32x128xf32>, vector<2x128xf32> -> vector<2x128xf32>
    %102 = arith.addf %100, %101 : vector<2x128xf32>
    %103 = arith.negf %97 : vector<2x128xf32>
    %104 = math.exp %103 : vector<2x128xf32>
    %cst_56 = arith.constant 1.000000e+00 : f32
    %105 = vector.broadcast %cst_56 : f32 to vector<2x128xf32>
    %106 = arith.addf %105, %104 : vector<2x128xf32>
    %107 = arith.divf %105, %106 : vector<2x128xf32>
    %108 = vector.extract_strided_slice %97 {offsets = [0, 64], sizes = [2, 32], strides = [1, 1]} : vector<2x128xf32> to vector<2x32xf32>
    %109 = math.tanh %108 : vector<2x32xf32>
    %110 = vector.extract_strided_slice %107 {offsets = [0, 32], sizes = [2, 32], strides = [1, 1]} : vector<2x128xf32> to vector<2x32xf32>
    %111 = arith.mulf %110, %0 : vector<2x32xf32>
    %112 = vector.extract_strided_slice %107 {offsets = [0, 0], sizes = [2, 32], strides = [1, 1]} : vector<2x128xf32> to vector<2x32xf32>
    %113 = arith.mulf %112, %109 : vector<2x32xf32>
    %114 = arith.addf %111, %113 : vector<2x32xf32>
    %115 = vector.extract_strided_slice %107 {offsets = [0, 96], sizes = [2, 32], strides = [1, 1]} : vector<2x128xf32> to vector<2x32xf32>
    %116 = math.tanh %114 : vector<2x32xf32>
    %117 = arith.mulf %115, %116 : vector<2x32xf32>
    %118 = arith.negf %102 : vector<2x128xf32>
    %119 = math.exp %118 : vector<2x128xf32>
    %cst_57 = arith.constant 1.000000e+00 : f32
    %120 = vector.broadcast %cst_57 : f32 to vector<2x128xf32>
    %121 = arith.addf %120, %119 : vector<2x128xf32>
    %122 = arith.divf %120, %121 : vector<2x128xf32>
    %123 = vector.extract_strided_slice %102 {offsets = [0, 64], sizes = [2, 32], strides = [1, 1]} : vector<2x128xf32> to vector<2x32xf32>
    %124 = math.tanh %123 : vector<2x32xf32>
    %125 = vector.extract_strided_slice %122 {offsets = [0, 32], sizes = [2, 32], strides = [1, 1]} : vector<2x128xf32> to vector<2x32xf32>
    %126 = arith.mulf %125, %0 : vector<2x32xf32>
    %127 = vector.extract_strided_slice %122 {offsets = [0, 0], sizes = [2, 32], strides = [1, 1]} : vector<2x128xf32> to vector<2x32xf32>
    %128 = arith.mulf %127, %124 : vector<2x32xf32>
    %129 = arith.addf %126, %128 : vector<2x32xf32>
    %130 = vector.extract_strided_slice %122 {offsets = [0, 96], sizes = [2, 32], strides = [1, 1]} : vector<2x128xf32> to vector<2x32xf32>
    %131 = math.tanh %129 : vector<2x32xf32>
    %132 = arith.mulf %130, %131 : vector<2x32xf32>
    %133 = arith.index_cast %c0_i32 : i32 to index
    %c0_58 = arith.constant 0 : index
    %c0_59 = arith.constant 0 : index
    %134 = vector.load %arg14[%133, %c0_58, %c0_59] : memref<8x2x32xf32, #tpu.memory_space<vmem>>, vector<1x2x32xf32>
    %135 = vector.shape_cast %134 : vector<1x2x32xf32> to vector<2x32xf32>
    %136 = vector.shape_cast %117 : vector<2x32xf32> to vector<1x2x32xf32>
    tpu.vector_store %arg14[%133, %c0_58, %c0_59], %136 {strides = array<i32>} : memref<8x2x32xf32, #tpu.memory_space<vmem>>, vector<1x2x32xf32>,
    %137 = arith.index_cast %92 : i32 to index
    %c0_60 = arith.constant 0 : index
    %c0_61 = arith.constant 0 : index
    %138 = vector.load %arg15[%137, %c0_60, %c0_61] : memref<8x2x32xf32, #tpu.memory_space<vmem>>, vector<1x2x32xf32>
    %139 = vector.shape_cast %138 : vector<1x2x32xf32> to vector<2x32xf32>
    %140 = vector.shape_cast %132 : vector<2x32xf32> to vector<1x2x32xf32>
    tpu.vector_store %arg15[%137, %c0_60, %c0_61], %140 {strides = array<i32>} : memref<8x2x32xf32, #tpu.memory_space<vmem>>, vector<1x2x32xf32>,
    %c1_i32 = arith.constant 1 : i32
    %c7_i32_62 = arith.constant 7 : i32
    %141 = arith.subi %c7_i32_62, %c1_i32 : i32
    %142 = arith.index_cast %c1_i32 : i32 to index
    %c0_63 = arith.constant 0 : index
    %c0_64 = arith.constant 0 : index
    %143 = vector.load %arg12[%142, %c0_63, %c0_64] : memref<8x2x128xf32, #tpu.memory_space<vmem>>, vector<1x2x128xf32>
    %144 = vector.shape_cast %143 : vector<1x2x128xf32> to vector<2x128xf32>
    %cst_65 = arith.constant dense<0.000000e+00> : vector<2x128xf32>
    %145 = tpu.matmul %117, %90, %cst_65 {dimension_numbers = #tpu.dot_dimension_numbers<[1], [0], [0], [1], [0, 0, 1, 1], [], []>} : vector<2x32xf32>, vector<32x128xf32>, vector<2x128xf32> -> vector<2x128xf32>
    %146 = arith.addf %144, %145 : vector<2x128xf32>
    %147 = arith.index_cast %141 : i32 to index
    %c0_66 = arith.constant 0 : index
    %c0_67 = arith.constant 0 : index
    %148 = vector.load %arg13[%147, %c0_66, %c0_67] : memref<8x2x128xf32, #tpu.memory_space<vmem>>, vector<1x2x128xf32>
    %149 = vector.shape_cast %148 : vector<1x2x128xf32> to vector<2x128xf32>
    %cst_68 = arith.constant dense<0.000000e+00> : vector<2x128xf32>
    %150 = tpu.matmul %132, %91, %cst_68 {dimension_numbers = #tpu.dot_dimension_numbers<[1], [0], [0], [1], [0, 0, 1, 1], [], []>} : vector<2x32xf32>, vector<32x128xf32>, vector<2x128xf32> -> vector<2x128xf32>
    %151 = arith.addf %149, %150 : vector<2x128xf32>
    %152 = arith.negf %146 : vector<2x128xf32>
    %153 = math.exp %152 : vector<2x128xf32>
    %cst_69 = arith.constant 1.000000e+00 : f32
    %154 = vector.broadcast %cst_69 : f32 to vector<2x128xf32>
    %155 = arith.addf %154, %153 : vector<2x128xf32>
    %156 = arith.divf %154, %155 : vector<2x128xf32>
    %157 = vector.extract_strided_slice %146 {offsets = [0, 64], sizes = [2, 32], strides = [1, 1]} : vector<2x128xf32> to vector<2x32xf32>
    %158 = math.tanh %157 : vector<2x32xf32>
    %159 = vector.extract_strided_slice %156 {offsets = [0, 32], sizes = [2, 32], strides = [1, 1]} : vector<2x128xf32> to vector<2x32xf32>
    %160 = arith.mulf %159, %114 : vector<2x32xf32>
    %161 = vector.extract_strided_slice %156 {offsets = [0, 0], sizes = [2, 32], strides = [1, 1]} : vector<2x128xf32> to vector<2x32xf32>
    %162 = arith.mulf %161, %158 : vector<2x32xf32>
    %163 = arith.addf %160, %162 : vector<2x32xf32>
    %164 = vector.extract_strided_slice %156 {offsets = [0, 96], sizes = [2, 32], strides = [1, 1]} : vector<2x128xf32> to vector<2x32xf32>
    %165 = math.tanh %163 : vector<2x32xf32>
    %166 = arith.mulf %164, %165 : vector<2x32xf32>
    %167 = arith.negf %151 : vector<2x128xf32>
    %168 = math.exp %167 : vector<2x128xf32>
    %cst_70 = arith.constant 1.000000e+00 : f32
    %169 = vector.broadcast %cst_70 : f32 to vector<2x128xf32>
    %170 = arith.addf %169, %168 : vector<2x128xf32>
    %171 = arith.divf %169, %170 : vector<2x128xf32>
    %172 = vector.extract_strided_slice %151 {offsets = [0, 64], sizes = [2, 32], strides = [1, 1]} : vector<2x128xf32> to vector<2x32xf32>
    %173 = math.tanh %172 : vector<2x32xf32>
    %174 = vector.extract_strided_slice %171 {offsets = [0, 32], sizes = [2, 32], strides = [1, 1]} : vector<2x128xf32> to vector<2x32xf32>
    %175 = arith.mulf %174, %129 : vector<2x32xf32>
    %176 = vector.extract_strided_slice %171 {offsets = [0, 0], sizes = [2, 32], strides = [1, 1]} : vector<2x128xf32> to vector<2x32xf32>
    %177 = arith.mulf %176, %173 : vector<2x32xf32>
    %178 = arith.addf %175, %177 : vector<2x32xf32>
    %179 = vector.extract_strided_slice %171 {offsets = [0, 96], sizes = [2, 32], strides = [1, 1]} : vector<2x128xf32> to vector<2x32xf32>
    %180 = math.tanh %178 : vector<2x32xf32>
    %181 = arith.mulf %179, %180 : vector<2x32xf32>
    %182 = arith.index_cast %c1_i32 : i32 to index
    %c0_71 = arith.constant 0 : index
    %c0_72 = arith.constant 0 : index
    %183 = vector.load %arg14[%182, %c0_71, %c0_72] : memref<8x2x32xf32, #tpu.memory_space<vmem>>, vector<1x2x32xf32>
    %184 = vector.shape_cast %183 : vector<1x2x32xf32> to vector<2x32xf32>
    %185 = vector.shape_cast %166 : vector<2x32xf32> to vector<1x2x32xf32>
    tpu.vector_store %arg14[%182, %c0_71, %c0_72], %185 {strides = array<i32>} : memref<8x2x32xf32, #tpu.memory_space<vmem>>, vector<1x2x32xf32>,
    %186 = arith.index_cast %141 : i32 to index
    %c0_73 = arith.constant 0 : index
    %c0_74 = arith.constant 0 : index
    %187 = vector.load %arg15[%186, %c0_73, %c0_74] : memref<8x2x32xf32, #tpu.memory_space<vmem>>, vector<1x2x32xf32>
    %188 = vector.shape_cast %187 : vector<1x2x32xf32> to vector<2x32xf32>
    %189 = vector.shape_cast %181 : vector<2x32xf32> to vector<1x2x32xf32>
    tpu.vector_store %arg15[%186, %c0_73, %c0_74], %189 {strides = array<i32>} : memref<8x2x32xf32, #tpu.memory_space<vmem>>, vector<1x2x32xf32>,
    %c2_i32 = arith.constant 2 : i32
    %c7_i32_75 = arith.constant 7 : i32
    %190 = arith.subi %c7_i32_75, %c2_i32 : i32
    %191 = arith.index_cast %c2_i32 : i32 to index
    %c0_76 = arith.constant 0 : index
    %c0_77 = arith.constant 0 : index
    %192 = vector.load %arg12[%191, %c0_76, %c0_77] : memref<8x2x128xf32, #tpu.memory_space<vmem>>, vector<1x2x128xf32>
    %193 = vector.shape_cast %192 : vector<1x2x128xf32> to vector<2x128xf32>
    %cst_78 = arith.constant dense<0.000000e+00> : vector<2x128xf32>
    %194 = tpu.matmul %166, %90, %cst_78 {dimension_numbers = #tpu.dot_dimension_numbers<[1], [0], [0], [1], [0, 0, 1, 1], [], []>} : vector<2x32xf32>, vector<32x128xf32>, vector<2x128xf32> -> vector<2x128xf32>
    %195 = arith.addf %193, %194 : vector<2x128xf32>
    %196 = arith.index_cast %190 : i32 to index
    %c0_79 = arith.constant 0 : index
    %c0_80 = arith.constant 0 : index
    %197 = vector.load %arg13[%196, %c0_79, %c0_80] : memref<8x2x128xf32, #tpu.memory_space<vmem>>, vector<1x2x128xf32>
    %198 = vector.shape_cast %197 : vector<1x2x128xf32> to vector<2x128xf32>
    %cst_81 = arith.constant dense<0.000000e+00> : vector<2x128xf32>
    %199 = tpu.matmul %181, %91, %cst_81 {dimension_numbers = #tpu.dot_dimension_numbers<[1], [0], [0], [1], [0, 0, 1, 1], [], []>} : vector<2x32xf32>, vector<32x128xf32>, vector<2x128xf32> -> vector<2x128xf32>
    %200 = arith.addf %198, %199 : vector<2x128xf32>
    %201 = arith.negf %195 : vector<2x128xf32>
    %202 = math.exp %201 : vector<2x128xf32>
    %cst_82 = arith.constant 1.000000e+00 : f32
    %203 = vector.broadcast %cst_82 : f32 to vector<2x128xf32>
    %204 = arith.addf %203, %202 : vector<2x128xf32>
    %205 = arith.divf %203, %204 : vector<2x128xf32>
    %206 = vector.extract_strided_slice %195 {offsets = [0, 64], sizes = [2, 32], strides = [1, 1]} : vector<2x128xf32> to vector<2x32xf32>
    %207 = math.tanh %206 : vector<2x32xf32>
    %208 = vector.extract_strided_slice %205 {offsets = [0, 32], sizes = [2, 32], strides = [1, 1]} : vector<2x128xf32> to vector<2x32xf32>
    %209 = arith.mulf %208, %163 : vector<2x32xf32>
    %210 = vector.extract_strided_slice %205 {offsets = [0, 0], sizes = [2, 32], strides = [1, 1]} : vector<2x128xf32> to vector<2x32xf32>
    %211 = arith.mulf %210, %207 : vector<2x32xf32>
    %212 = arith.addf %209, %211 : vector<2x32xf32>
    %213 = vector.extract_strided_slice %205 {offsets = [0, 96], sizes = [2, 32], strides = [1, 1]} : vector<2x128xf32> to vector<2x32xf32>
    %214 = math.tanh %212 : vector<2x32xf32>
    %215 = arith.mulf %213, %214 : vector<2x32xf32>
    %216 = arith.negf %200 : vector<2x128xf32>
    %217 = math.exp %216 : vector<2x128xf32>
    %cst_83 = arith.constant 1.000000e+00 : f32
    %218 = vector.broadcast %cst_83 : f32 to vector<2x128xf32>
    %219 = arith.addf %218, %217 : vector<2x128xf32>
    %220 = arith.divf %218, %219 : vector<2x128xf32>
    %221 = vector.extract_strided_slice %200 {offsets = [0, 64], sizes = [2, 32], strides = [1, 1]} : vector<2x128xf32> to vector<2x32xf32>
    %222 = math.tanh %221 : vector<2x32xf32>
    %223 = vector.extract_strided_slice %220 {offsets = [0, 32], sizes = [2, 32], strides = [1, 1]} : vector<2x128xf32> to vector<2x32xf32>
    %224 = arith.mulf %223, %178 : vector<2x32xf32>
    %225 = vector.extract_strided_slice %220 {offsets = [0, 0], sizes = [2, 32], strides = [1, 1]} : vector<2x128xf32> to vector<2x32xf32>
    %226 = arith.mulf %225, %222 : vector<2x32xf32>
    %227 = arith.addf %224, %226 : vector<2x32xf32>
    %228 = vector.extract_strided_slice %220 {offsets = [0, 96], sizes = [2, 32], strides = [1, 1]} : vector<2x128xf32> to vector<2x32xf32>
    %229 = math.tanh %227 : vector<2x32xf32>
    %230 = arith.mulf %228, %229 : vector<2x32xf32>
    %231 = arith.index_cast %c2_i32 : i32 to index
    %c0_84 = arith.constant 0 : index
    %c0_85 = arith.constant 0 : index
    %232 = vector.load %arg14[%231, %c0_84, %c0_85] : memref<8x2x32xf32, #tpu.memory_space<vmem>>, vector<1x2x32xf32>
    %233 = vector.shape_cast %232 : vector<1x2x32xf32> to vector<2x32xf32>
    %234 = vector.shape_cast %215 : vector<2x32xf32> to vector<1x2x32xf32>
    tpu.vector_store %arg14[%231, %c0_84, %c0_85], %234 {strides = array<i32>} : memref<8x2x32xf32, #tpu.memory_space<vmem>>, vector<1x2x32xf32>,
    %235 = arith.index_cast %190 : i32 to index
    %c0_86 = arith.constant 0 : index
    %c0_87 = arith.constant 0 : index
    %236 = vector.load %arg15[%235, %c0_86, %c0_87] : memref<8x2x32xf32, #tpu.memory_space<vmem>>, vector<1x2x32xf32>
    %237 = vector.shape_cast %236 : vector<1x2x32xf32> to vector<2x32xf32>
    %238 = vector.shape_cast %230 : vector<2x32xf32> to vector<1x2x32xf32>
    tpu.vector_store %arg15[%235, %c0_86, %c0_87], %238 {strides = array<i32>} : memref<8x2x32xf32, #tpu.memory_space<vmem>>, vector<1x2x32xf32>,
    %c3_i32 = arith.constant 3 : i32
    %c7_i32_88 = arith.constant 7 : i32
    %239 = arith.subi %c7_i32_88, %c3_i32 : i32
    %240 = arith.index_cast %c3_i32 : i32 to index
    %c0_89 = arith.constant 0 : index
    %c0_90 = arith.constant 0 : index
    %241 = vector.load %arg12[%240, %c0_89, %c0_90] : memref<8x2x128xf32, #tpu.memory_space<vmem>>, vector<1x2x128xf32>
    %242 = vector.shape_cast %241 : vector<1x2x128xf32> to vector<2x128xf32>
    %cst_91 = arith.constant dense<0.000000e+00> : vector<2x128xf32>
    %243 = tpu.matmul %215, %90, %cst_91 {dimension_numbers = #tpu.dot_dimension_numbers<[1], [0], [0], [1], [0, 0, 1, 1], [], []>} : vector<2x32xf32>, vector<32x128xf32>, vector<2x128xf32> -> vector<2x128xf32>
    %244 = arith.addf %242, %243 : vector<2x128xf32>
    %245 = arith.index_cast %239 : i32 to index
    %c0_92 = arith.constant 0 : index
    %c0_93 = arith.constant 0 : index
    %246 = vector.load %arg13[%245, %c0_92, %c0_93] : memref<8x2x128xf32, #tpu.memory_space<vmem>>, vector<1x2x128xf32>
    %247 = vector.shape_cast %246 : vector<1x2x128xf32> to vector<2x128xf32>
    %cst_94 = arith.constant dense<0.000000e+00> : vector<2x128xf32>
    %248 = tpu.matmul %230, %91, %cst_94 {dimension_numbers = #tpu.dot_dimension_numbers<[1], [0], [0], [1], [0, 0, 1, 1], [], []>} : vector<2x32xf32>, vector<32x128xf32>, vector<2x128xf32> -> vector<2x128xf32>
    %249 = arith.addf %247, %248 : vector<2x128xf32>
    %250 = arith.negf %244 : vector<2x128xf32>
    %251 = math.exp %250 : vector<2x128xf32>
    %cst_95 = arith.constant 1.000000e+00 : f32
    %252 = vector.broadcast %cst_95 : f32 to vector<2x128xf32>
    %253 = arith.addf %252, %251 : vector<2x128xf32>
    %254 = arith.divf %252, %253 : vector<2x128xf32>
    %255 = vector.extract_strided_slice %244 {offsets = [0, 64], sizes = [2, 32], strides = [1, 1]} : vector<2x128xf32> to vector<2x32xf32>
    %256 = math.tanh %255 : vector<2x32xf32>
    %257 = vector.extract_strided_slice %254 {offsets = [0, 32], sizes = [2, 32], strides = [1, 1]} : vector<2x128xf32> to vector<2x32xf32>
    %258 = arith.mulf %257, %212 : vector<2x32xf32>
    %259 = vector.extract_strided_slice %254 {offsets = [0, 0], sizes = [2, 32], strides = [1, 1]} : vector<2x128xf32> to vector<2x32xf32>
    %260 = arith.mulf %259, %256 : vector<2x32xf32>
    %261 = arith.addf %258, %260 : vector<2x32xf32>
    %262 = vector.extract_strided_slice %254 {offsets = [0, 96], sizes = [2, 32], strides = [1, 1]} : vector<2x128xf32> to vector<2x32xf32>
    %263 = math.tanh %261 : vector<2x32xf32>
    %264 = arith.mulf %262, %263 : vector<2x32xf32>
    %265 = arith.negf %249 : vector<2x128xf32>
    %266 = math.exp %265 : vector<2x128xf32>
    %cst_96 = arith.constant 1.000000e+00 : f32
    %267 = vector.broadcast %cst_96 : f32 to vector<2x128xf32>
    %268 = arith.addf %267, %266 : vector<2x128xf32>
    %269 = arith.divf %267, %268 : vector<2x128xf32>
    %270 = vector.extract_strided_slice %249 {offsets = [0, 64], sizes = [2, 32], strides = [1, 1]} : vector<2x128xf32> to vector<2x32xf32>
    %271 = math.tanh %270 : vector<2x32xf32>
    %272 = vector.extract_strided_slice %269 {offsets = [0, 32], sizes = [2, 32], strides = [1, 1]} : vector<2x128xf32> to vector<2x32xf32>
    %273 = arith.mulf %272, %227 : vector<2x32xf32>
    %274 = vector.extract_strided_slice %269 {offsets = [0, 0], sizes = [2, 32], strides = [1, 1]} : vector<2x128xf32> to vector<2x32xf32>
    %275 = arith.mulf %274, %271 : vector<2x32xf32>
    %276 = arith.addf %273, %275 : vector<2x32xf32>
    %277 = vector.extract_strided_slice %269 {offsets = [0, 96], sizes = [2, 32], strides = [1, 1]} : vector<2x128xf32> to vector<2x32xf32>
    %278 = math.tanh %276 : vector<2x32xf32>
    %279 = arith.mulf %277, %278 : vector<2x32xf32>
    %280 = arith.index_cast %c3_i32 : i32 to index
    %c0_97 = arith.constant 0 : index
    %c0_98 = arith.constant 0 : index
    %281 = vector.load %arg14[%280, %c0_97, %c0_98] : memref<8x2x32xf32, #tpu.memory_space<vmem>>, vector<1x2x32xf32>
    %282 = vector.shape_cast %281 : vector<1x2x32xf32> to vector<2x32xf32>
    %283 = vector.shape_cast %264 : vector<2x32xf32> to vector<1x2x32xf32>
    tpu.vector_store %arg14[%280, %c0_97, %c0_98], %283 {strides = array<i32>} : memref<8x2x32xf32, #tpu.memory_space<vmem>>, vector<1x2x32xf32>,
    %284 = arith.index_cast %239 : i32 to index
    %c0_99 = arith.constant 0 : index
    %c0_100 = arith.constant 0 : index
    %285 = vector.load %arg15[%284, %c0_99, %c0_100] : memref<8x2x32xf32, #tpu.memory_space<vmem>>, vector<1x2x32xf32>
    %286 = vector.shape_cast %285 : vector<1x2x32xf32> to vector<2x32xf32>
    %287 = vector.shape_cast %279 : vector<2x32xf32> to vector<1x2x32xf32>
    tpu.vector_store %arg15[%284, %c0_99, %c0_100], %287 {strides = array<i32>} : memref<8x2x32xf32, #tpu.memory_space<vmem>>, vector<1x2x32xf32>,
    %c4_i32 = arith.constant 4 : i32
    %c7_i32_101 = arith.constant 7 : i32
    %288 = arith.subi %c7_i32_101, %c4_i32 : i32
    %289 = arith.index_cast %c4_i32 : i32 to index
    %c0_102 = arith.constant 0 : index
    %c0_103 = arith.constant 0 : index
    %290 = vector.load %arg12[%289, %c0_102, %c0_103] : memref<8x2x128xf32, #tpu.memory_space<vmem>>, vector<1x2x128xf32>
    %291 = vector.shape_cast %290 : vector<1x2x128xf32> to vector<2x128xf32>
    %cst_104 = arith.constant dense<0.000000e+00> : vector<2x128xf32>
    %292 = tpu.matmul %264, %90, %cst_104 {dimension_numbers = #tpu.dot_dimension_numbers<[1], [0], [0], [1], [0, 0, 1, 1], [], []>} : vector<2x32xf32>, vector<32x128xf32>, vector<2x128xf32> -> vector<2x128xf32>
    %293 = arith.addf %291, %292 : vector<2x128xf32>
    %294 = arith.index_cast %288 : i32 to index
    %c0_105 = arith.constant 0 : index
    %c0_106 = arith.constant 0 : index
    %295 = vector.load %arg13[%294, %c0_105, %c0_106] : memref<8x2x128xf32, #tpu.memory_space<vmem>>, vector<1x2x128xf32>
    %296 = vector.shape_cast %295 : vector<1x2x128xf32> to vector<2x128xf32>
    %cst_107 = arith.constant dense<0.000000e+00> : vector<2x128xf32>
    %297 = tpu.matmul %279, %91, %cst_107 {dimension_numbers = #tpu.dot_dimension_numbers<[1], [0], [0], [1], [0, 0, 1, 1], [], []>} : vector<2x32xf32>, vector<32x128xf32>, vector<2x128xf32> -> vector<2x128xf32>
    %298 = arith.addf %296, %297 : vector<2x128xf32>
    %299 = arith.negf %293 : vector<2x128xf32>
    %300 = math.exp %299 : vector<2x128xf32>
    %cst_108 = arith.constant 1.000000e+00 : f32
    %301 = vector.broadcast %cst_108 : f32 to vector<2x128xf32>
    %302 = arith.addf %301, %300 : vector<2x128xf32>
    %303 = arith.divf %301, %302 : vector<2x128xf32>
    %304 = vector.extract_strided_slice %293 {offsets = [0, 64], sizes = [2, 32], strides = [1, 1]} : vector<2x128xf32> to vector<2x32xf32>
    %305 = math.tanh %304 : vector<2x32xf32>
    %306 = vector.extract_strided_slice %303 {offsets = [0, 32], sizes = [2, 32], strides = [1, 1]} : vector<2x128xf32> to vector<2x32xf32>
    %307 = arith.mulf %306, %261 : vector<2x32xf32>
    %308 = vector.extract_strided_slice %303 {offsets = [0, 0], sizes = [2, 32], strides = [1, 1]} : vector<2x128xf32> to vector<2x32xf32>
    %309 = arith.mulf %308, %305 : vector<2x32xf32>
    %310 = arith.addf %307, %309 : vector<2x32xf32>
    %311 = vector.extract_strided_slice %303 {offsets = [0, 96], sizes = [2, 32], strides = [1, 1]} : vector<2x128xf32> to vector<2x32xf32>
    %312 = math.tanh %310 : vector<2x32xf32>
    %313 = arith.mulf %311, %312 : vector<2x32xf32>
    %314 = arith.negf %298 : vector<2x128xf32>
    %315 = math.exp %314 : vector<2x128xf32>
    %cst_109 = arith.constant 1.000000e+00 : f32
    %316 = vector.broadcast %cst_109 : f32 to vector<2x128xf32>
    %317 = arith.addf %316, %315 : vector<2x128xf32>
    %318 = arith.divf %316, %317 : vector<2x128xf32>
    %319 = vector.extract_strided_slice %298 {offsets = [0, 64], sizes = [2, 32], strides = [1, 1]} : vector<2x128xf32> to vector<2x32xf32>
    %320 = math.tanh %319 : vector<2x32xf32>
    %321 = vector.extract_strided_slice %318 {offsets = [0, 32], sizes = [2, 32], strides = [1, 1]} : vector<2x128xf32> to vector<2x32xf32>
    %322 = arith.mulf %321, %276 : vector<2x32xf32>
    %323 = vector.extract_strided_slice %318 {offsets = [0, 0], sizes = [2, 32], strides = [1, 1]} : vector<2x128xf32> to vector<2x32xf32>
    %324 = arith.mulf %323, %320 : vector<2x32xf32>
    %325 = arith.addf %322, %324 : vector<2x32xf32>
    %326 = vector.extract_strided_slice %318 {offsets = [0, 96], sizes = [2, 32], strides = [1, 1]} : vector<2x128xf32> to vector<2x32xf32>
    %327 = math.tanh %325 : vector<2x32xf32>
    %328 = arith.mulf %326, %327 : vector<2x32xf32>
    %329 = arith.index_cast %c4_i32 : i32 to index
    %c0_110 = arith.constant 0 : index
    %c0_111 = arith.constant 0 : index
    %330 = vector.load %arg14[%329, %c0_110, %c0_111] : memref<8x2x32xf32, #tpu.memory_space<vmem>>, vector<1x2x32xf32>
    %331 = vector.shape_cast %330 : vector<1x2x32xf32> to vector<2x32xf32>
    %332 = vector.shape_cast %313 : vector<2x32xf32> to vector<1x2x32xf32>
    tpu.vector_store %arg14[%329, %c0_110, %c0_111], %332 {strides = array<i32>} : memref<8x2x32xf32, #tpu.memory_space<vmem>>, vector<1x2x32xf32>,
    %333 = arith.index_cast %288 : i32 to index
    %c0_112 = arith.constant 0 : index
    %c0_113 = arith.constant 0 : index
    %334 = vector.load %arg15[%333, %c0_112, %c0_113] : memref<8x2x32xf32, #tpu.memory_space<vmem>>, vector<1x2x32xf32>
    %335 = vector.shape_cast %334 : vector<1x2x32xf32> to vector<2x32xf32>
    %336 = vector.shape_cast %328 : vector<2x32xf32> to vector<1x2x32xf32>
    tpu.vector_store %arg15[%333, %c0_112, %c0_113], %336 {strides = array<i32>} : memref<8x2x32xf32, #tpu.memory_space<vmem>>, vector<1x2x32xf32>,
    %c5_i32 = arith.constant 5 : i32
    %c7_i32_114 = arith.constant 7 : i32
    %337 = arith.subi %c7_i32_114, %c5_i32 : i32
    %338 = arith.index_cast %c5_i32 : i32 to index
    %c0_115 = arith.constant 0 : index
    %c0_116 = arith.constant 0 : index
    %339 = vector.load %arg12[%338, %c0_115, %c0_116] : memref<8x2x128xf32, #tpu.memory_space<vmem>>, vector<1x2x128xf32>
    %340 = vector.shape_cast %339 : vector<1x2x128xf32> to vector<2x128xf32>
    %cst_117 = arith.constant dense<0.000000e+00> : vector<2x128xf32>
    %341 = tpu.matmul %313, %90, %cst_117 {dimension_numbers = #tpu.dot_dimension_numbers<[1], [0], [0], [1], [0, 0, 1, 1], [], []>} : vector<2x32xf32>, vector<32x128xf32>, vector<2x128xf32> -> vector<2x128xf32>
    %342 = arith.addf %340, %341 : vector<2x128xf32>
    %343 = arith.index_cast %337 : i32 to index
    %c0_118 = arith.constant 0 : index
    %c0_119 = arith.constant 0 : index
    %344 = vector.load %arg13[%343, %c0_118, %c0_119] : memref<8x2x128xf32, #tpu.memory_space<vmem>>, vector<1x2x128xf32>
    %345 = vector.shape_cast %344 : vector<1x2x128xf32> to vector<2x128xf32>
    %cst_120 = arith.constant dense<0.000000e+00> : vector<2x128xf32>
    %346 = tpu.matmul %328, %91, %cst_120 {dimension_numbers = #tpu.dot_dimension_numbers<[1], [0], [0], [1], [0, 0, 1, 1], [], []>} : vector<2x32xf32>, vector<32x128xf32>, vector<2x128xf32> -> vector<2x128xf32>
    %347 = arith.addf %345, %346 : vector<2x128xf32>
    %348 = arith.negf %342 : vector<2x128xf32>
    %349 = math.exp %348 : vector<2x128xf32>
    %cst_121 = arith.constant 1.000000e+00 : f32
    %350 = vector.broadcast %cst_121 : f32 to vector<2x128xf32>
    %351 = arith.addf %350, %349 : vector<2x128xf32>
    %352 = arith.divf %350, %351 : vector<2x128xf32>
    %353 = vector.extract_strided_slice %342 {offsets = [0, 64], sizes = [2, 32], strides = [1, 1]} : vector<2x128xf32> to vector<2x32xf32>
    %354 = math.tanh %353 : vector<2x32xf32>
    %355 = vector.extract_strided_slice %352 {offsets = [0, 32], sizes = [2, 32], strides = [1, 1]} : vector<2x128xf32> to vector<2x32xf32>
    %356 = arith.mulf %355, %310 : vector<2x32xf32>
    %357 = vector.extract_strided_slice %352 {offsets = [0, 0], sizes = [2, 32], strides = [1, 1]} : vector<2x128xf32> to vector<2x32xf32>
    %358 = arith.mulf %357, %354 : vector<2x32xf32>
    %359 = arith.addf %356, %358 : vector<2x32xf32>
    %360 = vector.extract_strided_slice %352 {offsets = [0, 96], sizes = [2, 32], strides = [1, 1]} : vector<2x128xf32> to vector<2x32xf32>
    %361 = math.tanh %359 : vector<2x32xf32>
    %362 = arith.mulf %360, %361 : vector<2x32xf32>
    %363 = arith.negf %347 : vector<2x128xf32>
    %364 = math.exp %363 : vector<2x128xf32>
    %cst_122 = arith.constant 1.000000e+00 : f32
    %365 = vector.broadcast %cst_122 : f32 to vector<2x128xf32>
    %366 = arith.addf %365, %364 : vector<2x128xf32>
    %367 = arith.divf %365, %366 : vector<2x128xf32>
    %368 = vector.extract_strided_slice %347 {offsets = [0, 64], sizes = [2, 32], strides = [1, 1]} : vector<2x128xf32> to vector<2x32xf32>
    %369 = math.tanh %368 : vector<2x32xf32>
    %370 = vector.extract_strided_slice %367 {offsets = [0, 32], sizes = [2, 32], strides = [1, 1]} : vector<2x128xf32> to vector<2x32xf32>
    %371 = arith.mulf %370, %325 : vector<2x32xf32>
    %372 = vector.extract_strided_slice %367 {offsets = [0, 0], sizes = [2, 32], strides = [1, 1]} : vector<2x128xf32> to vector<2x32xf32>
    %373 = arith.mulf %372, %369 : vector<2x32xf32>
    %374 = arith.addf %371, %373 : vector<2x32xf32>
    %375 = vector.extract_strided_slice %367 {offsets = [0, 96], sizes = [2, 32], strides = [1, 1]} : vector<2x128xf32> to vector<2x32xf32>
    %376 = math.tanh %374 : vector<2x32xf32>
    %377 = arith.mulf %375, %376 : vector<2x32xf32>
    %378 = arith.index_cast %c5_i32 : i32 to index
    %c0_123 = arith.constant 0 : index
    %c0_124 = arith.constant 0 : index
    %379 = vector.load %arg14[%378, %c0_123, %c0_124] : memref<8x2x32xf32, #tpu.memory_space<vmem>>, vector<1x2x32xf32>
    %380 = vector.shape_cast %379 : vector<1x2x32xf32> to vector<2x32xf32>
    %381 = vector.shape_cast %362 : vector<2x32xf32> to vector<1x2x32xf32>
    tpu.vector_store %arg14[%378, %c0_123, %c0_124], %381 {strides = array<i32>} : memref<8x2x32xf32, #tpu.memory_space<vmem>>, vector<1x2x32xf32>,
    %382 = arith.index_cast %337 : i32 to index
    %c0_125 = arith.constant 0 : index
    %c0_126 = arith.constant 0 : index
    %383 = vector.load %arg15[%382, %c0_125, %c0_126] : memref<8x2x32xf32, #tpu.memory_space<vmem>>, vector<1x2x32xf32>
    %384 = vector.shape_cast %383 : vector<1x2x32xf32> to vector<2x32xf32>
    %385 = vector.shape_cast %377 : vector<2x32xf32> to vector<1x2x32xf32>
    tpu.vector_store %arg15[%382, %c0_125, %c0_126], %385 {strides = array<i32>} : memref<8x2x32xf32, #tpu.memory_space<vmem>>, vector<1x2x32xf32>,
    %c6_i32 = arith.constant 6 : i32
    %c7_i32_127 = arith.constant 7 : i32
    %386 = arith.subi %c7_i32_127, %c6_i32 : i32
    %387 = arith.index_cast %c6_i32 : i32 to index
    %c0_128 = arith.constant 0 : index
    %c0_129 = arith.constant 0 : index
    %388 = vector.load %arg12[%387, %c0_128, %c0_129] : memref<8x2x128xf32, #tpu.memory_space<vmem>>, vector<1x2x128xf32>
    %389 = vector.shape_cast %388 : vector<1x2x128xf32> to vector<2x128xf32>
    %cst_130 = arith.constant dense<0.000000e+00> : vector<2x128xf32>
    %390 = tpu.matmul %362, %90, %cst_130 {dimension_numbers = #tpu.dot_dimension_numbers<[1], [0], [0], [1], [0, 0, 1, 1], [], []>} : vector<2x32xf32>, vector<32x128xf32>, vector<2x128xf32> -> vector<2x128xf32>
    %391 = arith.addf %389, %390 : vector<2x128xf32>
    %392 = arith.index_cast %386 : i32 to index
    %c0_131 = arith.constant 0 : index
    %c0_132 = arith.constant 0 : index
    %393 = vector.load %arg13[%392, %c0_131, %c0_132] : memref<8x2x128xf32, #tpu.memory_space<vmem>>, vector<1x2x128xf32>
    %394 = vector.shape_cast %393 : vector<1x2x128xf32> to vector<2x128xf32>
    %cst_133 = arith.constant dense<0.000000e+00> : vector<2x128xf32>
    %395 = tpu.matmul %377, %91, %cst_133 {dimension_numbers = #tpu.dot_dimension_numbers<[1], [0], [0], [1], [0, 0, 1, 1], [], []>} : vector<2x32xf32>, vector<32x128xf32>, vector<2x128xf32> -> vector<2x128xf32>
    %396 = arith.addf %394, %395 : vector<2x128xf32>
    %397 = arith.negf %391 : vector<2x128xf32>
    %398 = math.exp %397 : vector<2x128xf32>
    %cst_134 = arith.constant 1.000000e+00 : f32
    %399 = vector.broadcast %cst_134 : f32 to vector<2x128xf32>
    %400 = arith.addf %399, %398 : vector<2x128xf32>
    %401 = arith.divf %399, %400 : vector<2x128xf32>
    %402 = vector.extract_strided_slice %391 {offsets = [0, 64], sizes = [2, 32], strides = [1, 1]} : vector<2x128xf32> to vector<2x32xf32>
    %403 = math.tanh %402 : vector<2x32xf32>
    %404 = vector.extract_strided_slice %401 {offsets = [0, 32], sizes = [2, 32], strides = [1, 1]} : vector<2x128xf32> to vector<2x32xf32>
    %405 = arith.mulf %404, %359 : vector<2x32xf32>
    %406 = vector.extract_strided_slice %401 {offsets = [0, 0], sizes = [2, 32], strides = [1, 1]} : vector<2x128xf32> to vector<2x32xf32>
    %407 = arith.mulf %406, %403 : vector<2x32xf32>
    %408 = arith.addf %405, %407 : vector<2x32xf32>
    %409 = vector.extract_strided_slice %401 {offsets = [0, 96], sizes = [2, 32], strides = [1, 1]} : vector<2x128xf32> to vector<2x32xf32>
    %410 = math.tanh %408 : vector<2x32xf32>
    %411 = arith.mulf %409, %410 : vector<2x32xf32>
    %412 = arith.negf %396 : vector<2x128xf32>
    %413 = math.exp %412 : vector<2x128xf32>
    %cst_135 = arith.constant 1.000000e+00 : f32
    %414 = vector.broadcast %cst_135 : f32 to vector<2x128xf32>
    %415 = arith.addf %414, %413 : vector<2x128xf32>
    %416 = arith.divf %414, %415 : vector<2x128xf32>
    %417 = vector.extract_strided_slice %396 {offsets = [0, 64], sizes = [2, 32], strides = [1, 1]} : vector<2x128xf32> to vector<2x32xf32>
    %418 = math.tanh %417 : vector<2x32xf32>
    %419 = vector.extract_strided_slice %416 {offsets = [0, 32], sizes = [2, 32], strides = [1, 1]} : vector<2x128xf32> to vector<2x32xf32>
    %420 = arith.mulf %419, %374 : vector<2x32xf32>
    %421 = vector.extract_strided_slice %416 {offsets = [0, 0], sizes = [2, 32], strides = [1, 1]} : vector<2x128xf32> to vector<2x32xf32>
    %422 = arith.mulf %421, %418 : vector<2x32xf32>
    %423 = arith.addf %420, %422 : vector<2x32xf32>
    %424 = vector.extract_strided_slice %416 {offsets = [0, 96], sizes = [2, 32], strides = [1, 1]} : vector<2x128xf32> to vector<2x32xf32>
    %425 = math.tanh %423 : vector<2x32xf32>
    %426 = arith.mulf %424, %425 : vector<2x32xf32>
    %427 = arith.index_cast %c6_i32 : i32 to index
    %c0_136 = arith.constant 0 : index
    %c0_137 = arith.constant 0 : index
    %428 = vector.load %arg14[%427, %c0_136, %c0_137] : memref<8x2x32xf32, #tpu.memory_space<vmem>>, vector<1x2x32xf32>
    %429 = vector.shape_cast %428 : vector<1x2x32xf32> to vector<2x32xf32>
    %430 = vector.shape_cast %411 : vector<2x32xf32> to vector<1x2x32xf32>
    tpu.vector_store %arg14[%427, %c0_136, %c0_137], %430 {strides = array<i32>} : memref<8x2x32xf32, #tpu.memory_space<vmem>>, vector<1x2x32xf32>,
    %431 = arith.index_cast %386 : i32 to index
    %c0_138 = arith.constant 0 : index
    %c0_139 = arith.constant 0 : index
    %432 = vector.load %arg15[%431, %c0_138, %c0_139] : memref<8x2x32xf32, #tpu.memory_space<vmem>>, vector<1x2x32xf32>
    %433 = vector.shape_cast %432 : vector<1x2x32xf32> to vector<2x32xf32>
    %434 = vector.shape_cast %426 : vector<2x32xf32> to vector<1x2x32xf32>
    tpu.vector_store %arg15[%431, %c0_138, %c0_139], %434 {strides = array<i32>} : memref<8x2x32xf32, #tpu.memory_space<vmem>>, vector<1x2x32xf32>,
    %c7_i32_140 = arith.constant 7 : i32
    %c7_i32_141 = arith.constant 7 : i32
    %435 = arith.subi %c7_i32_141, %c7_i32_140 : i32
    %436 = arith.index_cast %c7_i32_140 : i32 to index
    %c0_142 = arith.constant 0 : index
    %c0_143 = arith.constant 0 : index
    %437 = vector.load %arg12[%436, %c0_142, %c0_143] : memref<8x2x128xf32, #tpu.memory_space<vmem>>, vector<1x2x128xf32>
    %438 = vector.shape_cast %437 : vector<1x2x128xf32> to vector<2x128xf32>
    %cst_144 = arith.constant dense<0.000000e+00> : vector<2x128xf32>
    %439 = tpu.matmul %411, %90, %cst_144 {dimension_numbers = #tpu.dot_dimension_numbers<[1], [0], [0], [1], [0, 0, 1, 1], [], []>} : vector<2x32xf32>, vector<32x128xf32>, vector<2x128xf32> -> vector<2x128xf32>
    %440 = arith.addf %438, %439 : vector<2x128xf32>
    %441 = arith.index_cast %435 : i32 to index
    %c0_145 = arith.constant 0 : index
    %c0_146 = arith.constant 0 : index
    %442 = vector.load %arg13[%441, %c0_145, %c0_146] : memref<8x2x128xf32, #tpu.memory_space<vmem>>, vector<1x2x128xf32>
    %443 = vector.shape_cast %442 : vector<1x2x128xf32> to vector<2x128xf32>
    %cst_147 = arith.constant dense<0.000000e+00> : vector<2x128xf32>
    %444 = tpu.matmul %426, %91, %cst_147 {dimension_numbers = #tpu.dot_dimension_numbers<[1], [0], [0], [1], [0, 0, 1, 1], [], []>} : vector<2x32xf32>, vector<32x128xf32>, vector<2x128xf32> -> vector<2x128xf32>
    %445 = arith.addf %443, %444 : vector<2x128xf32>
    %446 = arith.negf %440 : vector<2x128xf32>
    %447 = math.exp %446 : vector<2x128xf32>
    %cst_148 = arith.constant 1.000000e+00 : f32
    %448 = vector.broadcast %cst_148 : f32 to vector<2x128xf32>
    %449 = arith.addf %448, %447 : vector<2x128xf32>
    %450 = arith.divf %448, %449 : vector<2x128xf32>
    %451 = vector.extract_strided_slice %440 {offsets = [0, 64], sizes = [2, 32], strides = [1, 1]} : vector<2x128xf32> to vector<2x32xf32>
    %452 = math.tanh %451 : vector<2x32xf32>
    %453 = vector.extract_strided_slice %450 {offsets = [0, 32], sizes = [2, 32], strides = [1, 1]} : vector<2x128xf32> to vector<2x32xf32>
    %454 = arith.mulf %453, %408 : vector<2x32xf32>
    %455 = vector.extract_strided_slice %450 {offsets = [0, 0], sizes = [2, 32], strides = [1, 1]} : vector<2x128xf32> to vector<2x32xf32>
    %456 = arith.mulf %455, %452 : vector<2x32xf32>
    %457 = arith.addf %454, %456 : vector<2x32xf32>
    %458 = vector.extract_strided_slice %450 {offsets = [0, 96], sizes = [2, 32], strides = [1, 1]} : vector<2x128xf32> to vector<2x32xf32>
    %459 = math.tanh %457 : vector<2x32xf32>
    %460 = arith.mulf %458, %459 : vector<2x32xf32>
    %461 = arith.negf %445 : vector<2x128xf32>
    %462 = math.exp %461 : vector<2x128xf32>
    %cst_149 = arith.constant 1.000000e+00 : f32
    %463 = vector.broadcast %cst_149 : f32 to vector<2x128xf32>
    %464 = arith.addf %463, %462 : vector<2x128xf32>
    %465 = arith.divf %463, %464 : vector<2x128xf32>
    %466 = vector.extract_strided_slice %445 {offsets = [0, 64], sizes = [2, 32], strides = [1, 1]} : vector<2x128xf32> to vector<2x32xf32>
    %467 = math.tanh %466 : vector<2x32xf32>
    %468 = vector.extract_strided_slice %465 {offsets = [0, 32], sizes = [2, 32], strides = [1, 1]} : vector<2x128xf32> to vector<2x32xf32>
    %469 = arith.mulf %468, %423 : vector<2x32xf32>
    %470 = vector.extract_strided_slice %465 {offsets = [0, 0], sizes = [2, 32], strides = [1, 1]} : vector<2x128xf32> to vector<2x32xf32>
    %471 = arith.mulf %470, %467 : vector<2x32xf32>
    %472 = arith.addf %469, %471 : vector<2x32xf32>
    %473 = vector.extract_strided_slice %465 {offsets = [0, 96], sizes = [2, 32], strides = [1, 1]} : vector<2x128xf32> to vector<2x32xf32>
    %474 = math.tanh %472 : vector<2x32xf32>
    %475 = arith.mulf %473, %474 : vector<2x32xf32>
    %476 = arith.index_cast %c7_i32_140 : i32 to index
    %c0_150 = arith.constant 0 : index
    %c0_151 = arith.constant 0 : index
    %477 = vector.load %arg14[%476, %c0_150, %c0_151] : memref<8x2x32xf32, #tpu.memory_space<vmem>>, vector<1x2x32xf32>
    %478 = vector.shape_cast %477 : vector<1x2x32xf32> to vector<2x32xf32>
    %479 = vector.shape_cast %460 : vector<2x32xf32> to vector<1x2x32xf32>
    tpu.vector_store %arg14[%476, %c0_150, %c0_151], %479 {strides = array<i32>} : memref<8x2x32xf32, #tpu.memory_space<vmem>>, vector<1x2x32xf32>,
    %480 = arith.index_cast %435 : i32 to index
    %c0_152 = arith.constant 0 : index
    %c0_153 = arith.constant 0 : index
    %481 = vector.load %arg15[%480, %c0_152, %c0_153] : memref<8x2x32xf32, #tpu.memory_space<vmem>>, vector<1x2x32xf32>
    %482 = vector.shape_cast %481 : vector<1x2x32xf32> to vector<2x32xf32>
    %483 = vector.shape_cast %475 : vector<2x32xf32> to vector<1x2x32xf32>
    tpu.vector_store %arg15[%480, %c0_152, %c0_153], %483 {strides = array<i32>} : memref<8x2x32xf32, #tpu.memory_space<vmem>>, vector<1x2x32xf32>,
    %c8_i32 = arith.constant 8 : i32
    %c1_154 = arith.constant 1 : index
    %c0_155 = arith.constant 0 : index
    %484 = vector.load %arg5[%c1_154, %c0_155] : memref<17x256xf32, #tpu.memory_space<vmem>>, vector<1x256xf32>
    %c0_156 = arith.constant 0 : index
    %c0_157 = arith.constant 0 : index
    %485 = vector.load %arg3[%c0_156, %c0_157] : memref<64x256xf32, #tpu.memory_space<vmem>>, vector<64x256xf32>
    %c0_158 = arith.constant 0 : index
    %c0_159 = arith.constant 0 : index
    %c0_160 = arith.constant 0 : index
    %486 = vector.load %arg14[%c0_158, %c0_159, %c0_160] : memref<8x2x32xf32, #tpu.memory_space<vmem>>, vector<8x2x32xf32>
    %487 = vector.shape_cast %486 : vector<8x2x32xf32> to vector<16x32xf32>
    %488 = vector.extract_strided_slice %485 {offsets = [0, 0], sizes = [32, 256], strides = [1, 1]} : vector<64x256xf32> to vector<32x256xf32>
    %cst_161 = arith.constant dense<0.000000e+00> : vector<16x256xf32>
    %489 = tpu.matmul %487, %488, %cst_161 {dimension_numbers = #tpu.dot_dimension_numbers<[1], [0], [0], [1], [0, 0, 1, 1], [], []>} : vector<16x32xf32>, vector<32x256xf32>, vector<16x256xf32> -> vector<16x256xf32>
    %c0_162 = arith.constant 0 : index
    %c0_163 = arith.constant 0 : index
    %c0_164 = arith.constant 0 : index
    %490 = vector.load %arg15[%c0_162, %c0_163, %c0_164] : memref<8x2x32xf32, #tpu.memory_space<vmem>>, vector<8x2x32xf32>
    %491 = vector.shape_cast %490 : vector<8x2x32xf32> to vector<16x32xf32>
    %492 = vector.extract_strided_slice %485 {offsets = [32, 0], sizes = [32, 256], strides = [1, 1]} : vector<64x256xf32> to vector<32x256xf32>
    %cst_165 = arith.constant dense<0.000000e+00> : vector<16x256xf32>
    %493 = tpu.matmul %491, %492, %cst_165 {dimension_numbers = #tpu.dot_dimension_numbers<[1], [0], [0], [1], [0, 0, 1, 1], [], []>} : vector<16x32xf32>, vector<32x256xf32>, vector<16x256xf32> -> vector<16x256xf32>
    %494 = arith.addf %489, %493 : vector<16x256xf32>
    %495 = vector.broadcast %484 : vector<1x256xf32> to vector<16x256xf32>
    %496 = arith.addf %494, %495 : vector<16x256xf32>
    %497 = vector.shape_cast %496 : vector<16x256xf32> to vector<8x2x256xf32>
    %498 = vector.extract_strided_slice %497 {offsets = [0, 0, 0], sizes = [8, 2, 128], strides = [1, 1, 1]} : vector<8x2x256xf32> to vector<8x2x128xf32>
    %c0_166 = arith.constant 0 : index
    %c0_167 = arith.constant 0 : index
    %c0_168 = arith.constant 0 : index
    %499 = vector.load %arg12[%c0_166, %c0_167, %c0_168] : memref<8x2x128xf32, #tpu.memory_space<vmem>>, vector<8x2x128xf32>
    tpu.vector_store %arg12[%c0_166, %c0_167, %c0_168], %498 {strides = array<i32>} : memref<8x2x128xf32, #tpu.memory_space<vmem>>, vector<8x2x128xf32>,
    %500 = vector.extract_strided_slice %497 {offsets = [0, 0, 128], sizes = [8, 2, 128], strides = [1, 1, 1]} : vector<8x2x256xf32> to vector<8x2x128xf32>
    %c0_169 = arith.constant 0 : index
    %c0_170 = arith.constant 0 : index
    %c0_171 = arith.constant 0 : index
    %501 = vector.load %arg13[%c0_169, %c0_170, %c0_171] : memref<8x2x128xf32, #tpu.memory_space<vmem>>, vector<8x2x128xf32>
    tpu.vector_store %arg13[%c0_169, %c0_170, %c0_171], %500 {strides = array<i32>} : memref<8x2x128xf32, #tpu.memory_space<vmem>>, vector<8x2x128xf32>,
    %c0_172 = arith.constant 0 : index
    %c0_173 = arith.constant 0 : index
    %502 = vector.load %arg4[%c0_172, %c0_173] : memref<64x128xf32, #tpu.memory_space<vmem>>, vector<32x128xf32>
    %c0_i32_174 = arith.constant 0 : i32
    %503 = arith.index_cast %c0_i32_174 : i32 to index
    %c0_175 = arith.constant 0 : index
    %c0_176 = arith.constant 0 : index
    %504 = vector.load %arg12[%503, %c0_175, %c0_176] : memref<8x2x128xf32, #tpu.memory_space<vmem>>, vector<1x2x128xf32>
    %505 = vector.shape_cast %504 : vector<1x2x128xf32> to vector<2x128xf32>
    %cst_177 = arith.constant dense<0.000000e+00> : vector<2x128xf32>
    %506 = tpu.matmul %0, %502, %cst_177 {dimension_numbers = #tpu.dot_dimension_numbers<[1], [0], [0], [1], [0, 0, 1, 1], [], []>} : vector<2x32xf32>, vector<32x128xf32>, vector<2x128xf32> -> vector<2x128xf32>
    %507 = arith.addf %505, %506 : vector<2x128xf32>
    %508 = arith.negf %507 : vector<2x128xf32>
    %509 = math.exp %508 : vector<2x128xf32>
    %cst_178 = arith.constant 1.000000e+00 : f32
    %510 = vector.broadcast %cst_178 : f32 to vector<2x128xf32>
    %511 = arith.addf %510, %509 : vector<2x128xf32>
    %512 = arith.divf %510, %511 : vector<2x128xf32>
    %513 = vector.extract_strided_slice %507 {offsets = [0, 64], sizes = [2, 32], strides = [1, 1]} : vector<2x128xf32> to vector<2x32xf32>
    %514 = math.tanh %513 : vector<2x32xf32>
    %515 = vector.extract_strided_slice %512 {offsets = [0, 32], sizes = [2, 32], strides = [1, 1]} : vector<2x128xf32> to vector<2x32xf32>
    %516 = arith.mulf %515, %0 : vector<2x32xf32>
    %517 = vector.extract_strided_slice %512 {offsets = [0, 0], sizes = [2, 32], strides = [1, 1]} : vector<2x128xf32> to vector<2x32xf32>
    %518 = arith.mulf %517, %514 : vector<2x32xf32>
    %519 = arith.addf %516, %518 : vector<2x32xf32>
    %520 = vector.extract_strided_slice %512 {offsets = [0, 96], sizes = [2, 32], strides = [1, 1]} : vector<2x128xf32> to vector<2x32xf32>
    %521 = math.tanh %519 : vector<2x32xf32>
    %522 = arith.mulf %520, %521 : vector<2x32xf32>
    %c1_i32_179 = arith.constant 1 : i32
    %523 = arith.index_cast %c1_i32_179 : i32 to index
    %c0_180 = arith.constant 0 : index
    %c0_181 = arith.constant 0 : index
    %524 = vector.load %arg12[%523, %c0_180, %c0_181] : memref<8x2x128xf32, #tpu.memory_space<vmem>>, vector<1x2x128xf32>
    %525 = vector.shape_cast %524 : vector<1x2x128xf32> to vector<2x128xf32>
    %cst_182 = arith.constant dense<0.000000e+00> : vector<2x128xf32>
    %526 = tpu.matmul %522, %502, %cst_182 {dimension_numbers = #tpu.dot_dimension_numbers<[1], [0], [0], [1], [0, 0, 1, 1], [], []>} : vector<2x32xf32>, vector<32x128xf32>, vector<2x128xf32> -> vector<2x128xf32>
    %527 = arith.addf %525, %526 : vector<2x128xf32>
    %528 = arith.negf %527 : vector<2x128xf32>
    %529 = math.exp %528 : vector<2x128xf32>
    %cst_183 = arith.constant 1.000000e+00 : f32
    %530 = vector.broadcast %cst_183 : f32 to vector<2x128xf32>
    %531 = arith.addf %530, %529 : vector<2x128xf32>
    %532 = arith.divf %530, %531 : vector<2x128xf32>
    %533 = vector.extract_strided_slice %527 {offsets = [0, 64], sizes = [2, 32], strides = [1, 1]} : vector<2x128xf32> to vector<2x32xf32>
    %534 = math.tanh %533 : vector<2x32xf32>
    %535 = vector.extract_strided_slice %532 {offsets = [0, 32], sizes = [2, 32], strides = [1, 1]} : vector<2x128xf32> to vector<2x32xf32>
    %536 = arith.mulf %535, %519 : vector<2x32xf32>
    %537 = vector.extract_strided_slice %532 {offsets = [0, 0], sizes = [2, 32], strides = [1, 1]} : vector<2x128xf32> to vector<2x32xf32>
    %538 = arith.mulf %537, %534 : vector<2x32xf32>
    %539 = arith.addf %536, %538 : vector<2x32xf32>
    %540 = vector.extract_strided_slice %532 {offsets = [0, 96], sizes = [2, 32], strides = [1, 1]} : vector<2x128xf32> to vector<2x32xf32>
    %541 = math.tanh %539 : vector<2x32xf32>
    %542 = arith.mulf %540, %541 : vector<2x32xf32>
    %c2_i32_184 = arith.constant 2 : i32
    %543 = arith.index_cast %c2_i32_184 : i32 to index
    %c0_185 = arith.constant 0 : index
    %c0_186 = arith.constant 0 : index
    %544 = vector.load %arg12[%543, %c0_185, %c0_186] : memref<8x2x128xf32, #tpu.memory_space<vmem>>, vector<1x2x128xf32>
    %545 = vector.shape_cast %544 : vector<1x2x128xf32> to vector<2x128xf32>
    %cst_187 = arith.constant dense<0.000000e+00> : vector<2x128xf32>
    %546 = tpu.matmul %542, %502, %cst_187 {dimension_numbers = #tpu.dot_dimension_numbers<[1], [0], [0], [1], [0, 0, 1, 1], [], []>} : vector<2x32xf32>, vector<32x128xf32>, vector<2x128xf32> -> vector<2x128xf32>
    %547 = arith.addf %545, %546 : vector<2x128xf32>
    %548 = arith.negf %547 : vector<2x128xf32>
    %549 = math.exp %548 : vector<2x128xf32>
    %cst_188 = arith.constant 1.000000e+00 : f32
    %550 = vector.broadcast %cst_188 : f32 to vector<2x128xf32>
    %551 = arith.addf %550, %549 : vector<2x128xf32>
    %552 = arith.divf %550, %551 : vector<2x128xf32>
    %553 = vector.extract_strided_slice %547 {offsets = [0, 64], sizes = [2, 32], strides = [1, 1]} : vector<2x128xf32> to vector<2x32xf32>
    %554 = math.tanh %553 : vector<2x32xf32>
    %555 = vector.extract_strided_slice %552 {offsets = [0, 32], sizes = [2, 32], strides = [1, 1]} : vector<2x128xf32> to vector<2x32xf32>
    %556 = arith.mulf %555, %539 : vector<2x32xf32>
    %557 = vector.extract_strided_slice %552 {offsets = [0, 0], sizes = [2, 32], strides = [1, 1]} : vector<2x128xf32> to vector<2x32xf32>
    %558 = arith.mulf %557, %554 : vector<2x32xf32>
    %559 = arith.addf %556, %558 : vector<2x32xf32>
    %560 = vector.extract_strided_slice %552 {offsets = [0, 96], sizes = [2, 32], strides = [1, 1]} : vector<2x128xf32> to vector<2x32xf32>
    %561 = math.tanh %559 : vector<2x32xf32>
    %562 = arith.mulf %560, %561 : vector<2x32xf32>
    %c3_i32_189 = arith.constant 3 : i32
    %563 = arith.index_cast %c3_i32_189 : i32 to index
    %c0_190 = arith.constant 0 : index
    %c0_191 = arith.constant 0 : index
    %564 = vector.load %arg12[%563, %c0_190, %c0_191] : memref<8x2x128xf32, #tpu.memory_space<vmem>>, vector<1x2x128xf32>
    %565 = vector.shape_cast %564 : vector<1x2x128xf32> to vector<2x128xf32>
    %cst_192 = arith.constant dense<0.000000e+00> : vector<2x128xf32>
    %566 = tpu.matmul %562, %502, %cst_192 {dimension_numbers = #tpu.dot_dimension_numbers<[1], [0], [0], [1], [0, 0, 1, 1], [], []>} : vector<2x32xf32>, vector<32x128xf32>, vector<2x128xf32> -> vector<2x128xf32>
    %567 = arith.addf %565, %566 : vector<2x128xf32>
    %568 = arith.negf %567 : vector<2x128xf32>
    %569 = math.exp %568 : vector<2x128xf32>
    %cst_193 = arith.constant 1.000000e+00 : f32
    %570 = vector.broadcast %cst_193 : f32 to vector<2x128xf32>
    %571 = arith.addf %570, %569 : vector<2x128xf32>
    %572 = arith.divf %570, %571 : vector<2x128xf32>
    %573 = vector.extract_strided_slice %567 {offsets = [0, 64], sizes = [2, 32], strides = [1, 1]} : vector<2x128xf32> to vector<2x32xf32>
    %574 = math.tanh %573 : vector<2x32xf32>
    %575 = vector.extract_strided_slice %572 {offsets = [0, 32], sizes = [2, 32], strides = [1, 1]} : vector<2x128xf32> to vector<2x32xf32>
    %576 = arith.mulf %575, %559 : vector<2x32xf32>
    %577 = vector.extract_strided_slice %572 {offsets = [0, 0], sizes = [2, 32], strides = [1, 1]} : vector<2x128xf32> to vector<2x32xf32>
    %578 = arith.mulf %577, %574 : vector<2x32xf32>
    %579 = arith.addf %576, %578 : vector<2x32xf32>
    %580 = vector.extract_strided_slice %572 {offsets = [0, 96], sizes = [2, 32], strides = [1, 1]} : vector<2x128xf32> to vector<2x32xf32>
    %581 = math.tanh %579 : vector<2x32xf32>
    %582 = arith.mulf %580, %581 : vector<2x32xf32>
    %c4_i32_194 = arith.constant 4 : i32
    %583 = arith.index_cast %c4_i32_194 : i32 to index
    %c0_195 = arith.constant 0 : index
    %c0_196 = arith.constant 0 : index
    %584 = vector.load %arg12[%583, %c0_195, %c0_196] : memref<8x2x128xf32, #tpu.memory_space<vmem>>, vector<1x2x128xf32>
    %585 = vector.shape_cast %584 : vector<1x2x128xf32> to vector<2x128xf32>
    %cst_197 = arith.constant dense<0.000000e+00> : vector<2x128xf32>
    %586 = tpu.matmul %582, %502, %cst_197 {dimension_numbers = #tpu.dot_dimension_numbers<[1], [0], [0], [1], [0, 0, 1, 1], [], []>} : vector<2x32xf32>, vector<32x128xf32>, vector<2x128xf32> -> vector<2x128xf32>
    %587 = arith.addf %585, %586 : vector<2x128xf32>
    %588 = arith.negf %587 : vector<2x128xf32>
    %589 = math.exp %588 : vector<2x128xf32>
    %cst_198 = arith.constant 1.000000e+00 : f32
    %590 = vector.broadcast %cst_198 : f32 to vector<2x128xf32>
    %591 = arith.addf %590, %589 : vector<2x128xf32>
    %592 = arith.divf %590, %591 : vector<2x128xf32>
    %593 = vector.extract_strided_slice %587 {offsets = [0, 64], sizes = [2, 32], strides = [1, 1]} : vector<2x128xf32> to vector<2x32xf32>
    %594 = math.tanh %593 : vector<2x32xf32>
    %595 = vector.extract_strided_slice %592 {offsets = [0, 32], sizes = [2, 32], strides = [1, 1]} : vector<2x128xf32> to vector<2x32xf32>
    %596 = arith.mulf %595, %579 : vector<2x32xf32>
    %597 = vector.extract_strided_slice %592 {offsets = [0, 0], sizes = [2, 32], strides = [1, 1]} : vector<2x128xf32> to vector<2x32xf32>
    %598 = arith.mulf %597, %594 : vector<2x32xf32>
    %599 = arith.addf %596, %598 : vector<2x32xf32>
    %600 = vector.extract_strided_slice %592 {offsets = [0, 96], sizes = [2, 32], strides = [1, 1]} : vector<2x128xf32> to vector<2x32xf32>
    %601 = math.tanh %599 : vector<2x32xf32>
    %602 = arith.mulf %600, %601 : vector<2x32xf32>
    %c5_i32_199 = arith.constant 5 : i32
    %603 = arith.index_cast %c5_i32_199 : i32 to index
    %c0_200 = arith.constant 0 : index
    %c0_201 = arith.constant 0 : index
    %604 = vector.load %arg12[%603, %c0_200, %c0_201] : memref<8x2x128xf32, #tpu.memory_space<vmem>>, vector<1x2x128xf32>
    %605 = vector.shape_cast %604 : vector<1x2x128xf32> to vector<2x128xf32>
    %cst_202 = arith.constant dense<0.000000e+00> : vector<2x128xf32>
    %606 = tpu.matmul %602, %502, %cst_202 {dimension_numbers = #tpu.dot_dimension_numbers<[1], [0], [0], [1], [0, 0, 1, 1], [], []>} : vector<2x32xf32>, vector<32x128xf32>, vector<2x128xf32> -> vector<2x128xf32>
    %607 = arith.addf %605, %606 : vector<2x128xf32>
    %608 = arith.negf %607 : vector<2x128xf32>
    %609 = math.exp %608 : vector<2x128xf32>
    %cst_203 = arith.constant 1.000000e+00 : f32
    %610 = vector.broadcast %cst_203 : f32 to vector<2x128xf32>
    %611 = arith.addf %610, %609 : vector<2x128xf32>
    %612 = arith.divf %610, %611 : vector<2x128xf32>
    %613 = vector.extract_strided_slice %607 {offsets = [0, 64], sizes = [2, 32], strides = [1, 1]} : vector<2x128xf32> to vector<2x32xf32>
    %614 = math.tanh %613 : vector<2x32xf32>
    %615 = vector.extract_strided_slice %612 {offsets = [0, 32], sizes = [2, 32], strides = [1, 1]} : vector<2x128xf32> to vector<2x32xf32>
    %616 = arith.mulf %615, %599 : vector<2x32xf32>
    %617 = vector.extract_strided_slice %612 {offsets = [0, 0], sizes = [2, 32], strides = [1, 1]} : vector<2x128xf32> to vector<2x32xf32>
    %618 = arith.mulf %617, %614 : vector<2x32xf32>
    %619 = arith.addf %616, %618 : vector<2x32xf32>
    %620 = vector.extract_strided_slice %612 {offsets = [0, 96], sizes = [2, 32], strides = [1, 1]} : vector<2x128xf32> to vector<2x32xf32>
    %621 = math.tanh %619 : vector<2x32xf32>
    %622 = arith.mulf %620, %621 : vector<2x32xf32>
    %c6_i32_204 = arith.constant 6 : i32
    %623 = arith.index_cast %c6_i32_204 : i32 to index
    %c0_205 = arith.constant 0 : index
    %c0_206 = arith.constant 0 : index
    %624 = vector.load %arg12[%623, %c0_205, %c0_206] : memref<8x2x128xf32, #tpu.memory_space<vmem>>, vector<1x2x128xf32>
    %625 = vector.shape_cast %624 : vector<1x2x128xf32> to vector<2x128xf32>
    %cst_207 = arith.constant dense<0.000000e+00> : vector<2x128xf32>
    %626 = tpu.matmul %622, %502, %cst_207 {dimension_numbers = #tpu.dot_dimension_numbers<[1], [0], [0], [1], [0, 0, 1, 1], [], []>} : vector<2x32xf32>, vector<32x128xf32>, vector<2x128xf32> -> vector<2x128xf32>
    %627 = arith.addf %625, %626 : vector<2x128xf32>
    %628 = arith.negf %627 : vector<2x128xf32>
    %629 = math.exp %628 : vector<2x128xf32>
    %cst_208 = arith.constant 1.000000e+00 : f32
    %630 = vector.broadcast %cst_208 : f32 to vector<2x128xf32>
    %631 = arith.addf %630, %629 : vector<2x128xf32>
    %632 = arith.divf %630, %631 : vector<2x128xf32>
    %633 = vector.extract_strided_slice %627 {offsets = [0, 64], sizes = [2, 32], strides = [1, 1]} : vector<2x128xf32> to vector<2x32xf32>
    %634 = math.tanh %633 : vector<2x32xf32>
    %635 = vector.extract_strided_slice %632 {offsets = [0, 32], sizes = [2, 32], strides = [1, 1]} : vector<2x128xf32> to vector<2x32xf32>
    %636 = arith.mulf %635, %619 : vector<2x32xf32>
    %637 = vector.extract_strided_slice %632 {offsets = [0, 0], sizes = [2, 32], strides = [1, 1]} : vector<2x128xf32> to vector<2x32xf32>
    %638 = arith.mulf %637, %634 : vector<2x32xf32>
    %639 = arith.addf %636, %638 : vector<2x32xf32>
    %640 = vector.extract_strided_slice %632 {offsets = [0, 96], sizes = [2, 32], strides = [1, 1]} : vector<2x128xf32> to vector<2x32xf32>
    %641 = math.tanh %639 : vector<2x32xf32>
    %642 = arith.mulf %640, %641 : vector<2x32xf32>
    %c7_i32_209 = arith.constant 7 : i32
    %643 = arith.index_cast %c7_i32_209 : i32 to index
    %c0_210 = arith.constant 0 : index
    %c0_211 = arith.constant 0 : index
    %644 = vector.load %arg12[%643, %c0_210, %c0_211] : memref<8x2x128xf32, #tpu.memory_space<vmem>>, vector<1x2x128xf32>
    %645 = vector.shape_cast %644 : vector<1x2x128xf32> to vector<2x128xf32>
    %cst_212 = arith.constant dense<0.000000e+00> : vector<2x128xf32>
    %646 = tpu.matmul %642, %502, %cst_212 {dimension_numbers = #tpu.dot_dimension_numbers<[1], [0], [0], [1], [0, 0, 1, 1], [], []>} : vector<2x32xf32>, vector<32x128xf32>, vector<2x128xf32> -> vector<2x128xf32>
    %647 = arith.addf %645, %646 : vector<2x128xf32>
    %648 = arith.negf %647 : vector<2x128xf32>
    %649 = math.exp %648 : vector<2x128xf32>
    %cst_213 = arith.constant 1.000000e+00 : f32
    %650 = vector.broadcast %cst_213 : f32 to vector<2x128xf32>
    %651 = arith.addf %650, %649 : vector<2x128xf32>
    %652 = arith.divf %650, %651 : vector<2x128xf32>
    %653 = vector.extract_strided_slice %647 {offsets = [0, 64], sizes = [2, 32], strides = [1, 1]} : vector<2x128xf32> to vector<2x32xf32>
    %654 = math.tanh %653 : vector<2x32xf32>
    %655 = vector.extract_strided_slice %652 {offsets = [0, 32], sizes = [2, 32], strides = [1, 1]} : vector<2x128xf32> to vector<2x32xf32>
    %656 = arith.mulf %655, %639 : vector<2x32xf32>
    %657 = vector.extract_strided_slice %652 {offsets = [0, 0], sizes = [2, 32], strides = [1, 1]} : vector<2x128xf32> to vector<2x32xf32>
    %658 = arith.mulf %657, %654 : vector<2x32xf32>
    %659 = arith.addf %656, %658 : vector<2x32xf32>
    %660 = vector.extract_strided_slice %652 {offsets = [0, 96], sizes = [2, 32], strides = [1, 1]} : vector<2x128xf32> to vector<2x32xf32>
    %661 = math.tanh %659 : vector<2x32xf32>
    %662 = arith.mulf %660, %661 : vector<2x32xf32>
    %c8_i32_214 = arith.constant 8 : i32
    %c7_215 = arith.constant 7 : index
    %c0_216 = arith.constant 0 : index
    %c0_217 = arith.constant 0 : index
    %663 = vector.load %arg13[%c7_215, %c0_216, %c0_217] : memref<8x2x128xf32, #tpu.memory_space<vmem>>, vector<1x2x128xf32>
    %664 = vector.shape_cast %663 : vector<1x2x128xf32> to vector<2x128xf32>
    %665 = arith.negf %664 : vector<2x128xf32>
    %666 = math.exp %665 : vector<2x128xf32>
    %cst_218 = arith.constant 1.000000e+00 : f32
    %667 = vector.broadcast %cst_218 : f32 to vector<2x128xf32>
    %668 = arith.addf %667, %666 : vector<2x128xf32>
    %669 = arith.divf %667, %668 : vector<2x128xf32>
    %670 = vector.extract_strided_slice %664 {offsets = [0, 64], sizes = [2, 32], strides = [1, 1]} : vector<2x128xf32> to vector<2x32xf32>
    %671 = math.tanh %670 : vector<2x32xf32>
    %672 = vector.extract_strided_slice %669 {offsets = [0, 32], sizes = [2, 32], strides = [1, 1]} : vector<2x128xf32> to vector<2x32xf32>
    %673 = arith.mulf %672, %0 : vector<2x32xf32>
    %674 = vector.extract_strided_slice %669 {offsets = [0, 0], sizes = [2, 32], strides = [1, 1]} : vector<2x128xf32> to vector<2x32xf32>
    %675 = arith.mulf %674, %671 : vector<2x32xf32>
    %676 = arith.addf %673, %675 : vector<2x32xf32>
    %677 = vector.extract_strided_slice %669 {offsets = [0, 96], sizes = [2, 32], strides = [1, 1]} : vector<2x128xf32> to vector<2x32xf32>
    %678 = math.tanh %676 : vector<2x32xf32>
    %679 = arith.mulf %677, %678 : vector<2x32xf32>
    %680 = tpu.concatenate %662, %679 in 1 : vector<2x32xf32>, vector<2x32xf32> -> vector<2x64xf32>
    %c2_219 = arith.constant 2 : index
    %c0_220 = arith.constant 0 : index
    %681 = vector.load %arg5[%c2_219, %c0_220] : memref<17x256xf32, #tpu.memory_space<vmem>>, vector<1x64xf32>
    %c3_221 = arith.constant 3 : index
    %c0_222 = arith.constant 0 : index
    %682 = vector.load %arg5[%c3_221, %c0_222] : memref<17x256xf32, #tpu.memory_space<vmem>>, vector<1x64xf32>
    %cst_223 = arith.constant dense<0.000000e+00> : vector<2xf32>
    %683 = vector.multi_reduction <add>, %680, %cst_223 [1] : vector<2x64xf32> to vector<2xf32>
    %684 = vector.shape_cast %683 : vector<2xf32> to vector<2x1xf32>
    %cst_224 = arith.constant 6.400000e+01 : f32
    %685 = vector.broadcast %cst_224 : f32 to vector<2x1xf32>
    %686 = arith.divf %684, %685 : vector<2x1xf32>
    %687 = vector.broadcast %686 : vector<2x1xf32> to vector<2x64xf32>
    %688 = arith.subf %680, %687 : vector<2x64xf32>
    %689 = arith.mulf %688, %688 : vector<2x64xf32>
    %cst_225 = arith.constant dense<0.000000e+00> : vector<2xf32>
    %690 = vector.multi_reduction <add>, %689, %cst_225 [1] : vector<2x64xf32> to vector<2xf32>
    %691 = vector.shape_cast %690 : vector<2xf32> to vector<2x1xf32>
    %cst_226 = arith.constant 6.400000e+01 : f32
    %692 = vector.broadcast %cst_226 : f32 to vector<2x1xf32>
    %693 = arith.divf %691, %692 : vector<2x1xf32>
    %cst_227 = arith.constant 9.99999974E-6 : f32
    %694 = vector.broadcast %cst_227 : f32 to vector<2x1xf32>
    %695 = arith.addf %693, %694 : vector<2x1xf32>
    %696 = math.rsqrt %695 : vector<2x1xf32>
    %697 = vector.broadcast %696 : vector<2x1xf32> to vector<2x64xf32>
    %698 = arith.mulf %688, %697 : vector<2x64xf32>
    %699 = vector.broadcast %681 : vector<1x64xf32> to vector<2x64xf32>
    %700 = arith.mulf %698, %699 : vector<2x64xf32>
    %701 = vector.broadcast %682 : vector<1x64xf32> to vector<2x64xf32>
    %702 = arith.addf %700, %701 : vector<2x64xf32>
    %c0_228 = arith.constant 0 : index
    %c0_229 = arith.constant 0 : index
    %703 = vector.load %arg6[%c0_228, %c0_229] : memref<64x192xf32, #tpu.memory_space<vmem>>, vector<64x192xf32>
    %cst_230 = arith.constant dense<0.000000e+00> : vector<2x192xf32>
    %704 = tpu.matmul %702, %703, %cst_230 {dimension_numbers = #tpu.dot_dimension_numbers<[1], [0], [0], [1], [0, 0, 1, 1], [], []>} : vector<2x64xf32>, vector<64x192xf32>, vector<2x192xf32> -> vector<2x192xf32>
    %c4_231 = arith.constant 4 : index
    %c0_232 = arith.constant 0 : index
    %705 = vector.load %arg5[%c4_231, %c0_232] : memref<17x256xf32, #tpu.memory_space<vmem>>, vector<1x192xf32>
    %706 = vector.broadcast %705 : vector<1x192xf32> to vector<2x192xf32>
    %707 = arith.addf %704, %706 : vector<2x192xf32>
    %708 = vector.extract_strided_slice %707 {offsets = [0, 0], sizes = [2, 64], strides = [1, 1]} : vector<2x192xf32> to vector<2x64xf32>
    %cst_233 = arith.constant 2.500000e-01 : f32
    %709 = vector.broadcast %cst_233 : f32 to vector<2x64xf32>
    %710 = arith.mulf %708, %709 : vector<2x64xf32>
    %711 = vector.extract_strided_slice %707 {offsets = [0, 64], sizes = [2, 64], strides = [1, 1]} : vector<2x192xf32> to vector<2x64xf32>
    %712 = vector.extract_strided_slice %707 {offsets = [0, 128], sizes = [2, 64], strides = [1, 1]} : vector<2x192xf32> to vector<2x64xf32>
    %713 = vector.extract_strided_slice %710 {offsets = [0, 0], sizes = [2, 16], strides = [1, 1]} : vector<2x64xf32> to vector<2x16xf32>
    %714 = vector.extract_strided_slice %710 {offsets = [0, 16], sizes = [2, 16], strides = [1, 1]} : vector<2x64xf32> to vector<2x16xf32>
    %715 = vector.extract_strided_slice %710 {offsets = [0, 32], sizes = [2, 16], strides = [1, 1]} : vector<2x64xf32> to vector<2x16xf32>
    %716 = vector.extract_strided_slice %710 {offsets = [0, 48], sizes = [2, 16], strides = [1, 1]} : vector<2x64xf32> to vector<2x16xf32>
    %717 = vector.shape_cast %713 : vector<2x16xf32> to vector<1x2x16xf32>
    %718 = vector.shape_cast %714 : vector<2x16xf32> to vector<1x2x16xf32>
    %719 = vector.shape_cast %715 : vector<2x16xf32> to vector<1x2x16xf32>
    %720 = vector.shape_cast %716 : vector<2x16xf32> to vector<1x2x16xf32>
    %721 = tpu.concatenate %717, %718, %719, %720 in 0 : vector<1x2x16xf32>, vector<1x2x16xf32>, vector<1x2x16xf32>, vector<1x2x16xf32> -> vector<4x2x16xf32>
    %722 = vector.extract_strided_slice %711 {offsets = [0, 0], sizes = [2, 16], strides = [1, 1]} : vector<2x64xf32> to vector<2x16xf32>
    %723 = vector.extract_strided_slice %711 {offsets = [0, 16], sizes = [2, 16], strides = [1, 1]} : vector<2x64xf32> to vector<2x16xf32>
    %724 = vector.extract_strided_slice %711 {offsets = [0, 32], sizes = [2, 16], strides = [1, 1]} : vector<2x64xf32> to vector<2x16xf32>
    %725 = vector.extract_strided_slice %711 {offsets = [0, 48], sizes = [2, 16], strides = [1, 1]} : vector<2x64xf32> to vector<2x16xf32>
    %726 = vector.shape_cast %722 : vector<2x16xf32> to vector<1x2x16xf32>
    %727 = vector.shape_cast %723 : vector<2x16xf32> to vector<1x2x16xf32>
    %728 = vector.shape_cast %724 : vector<2x16xf32> to vector<1x2x16xf32>
    %729 = vector.shape_cast %725 : vector<2x16xf32> to vector<1x2x16xf32>
    %730 = tpu.concatenate %726, %727, %728, %729 in 0 : vector<1x2x16xf32>, vector<1x2x16xf32>, vector<1x2x16xf32>, vector<1x2x16xf32> -> vector<4x2x16xf32>
    %731 = vector.extract_strided_slice %712 {offsets = [0, 0], sizes = [2, 16], strides = [1, 1]} : vector<2x64xf32> to vector<2x16xf32>
    %732 = vector.extract_strided_slice %712 {offsets = [0, 16], sizes = [2, 16], strides = [1, 1]} : vector<2x64xf32> to vector<2x16xf32>
    %733 = vector.extract_strided_slice %712 {offsets = [0, 32], sizes = [2, 16], strides = [1, 1]} : vector<2x64xf32> to vector<2x16xf32>
    %734 = vector.extract_strided_slice %712 {offsets = [0, 48], sizes = [2, 16], strides = [1, 1]} : vector<2x64xf32> to vector<2x16xf32>
    %735 = vector.shape_cast %731 : vector<2x16xf32> to vector<1x2x16xf32>
    %736 = vector.shape_cast %732 : vector<2x16xf32> to vector<1x2x16xf32>
    %737 = vector.shape_cast %733 : vector<2x16xf32> to vector<1x2x16xf32>
    %738 = vector.shape_cast %734 : vector<2x16xf32> to vector<1x2x16xf32>
    %739 = tpu.concatenate %735, %736, %737, %738 in 0 : vector<1x2x16xf32>, vector<1x2x16xf32>, vector<1x2x16xf32>, vector<1x2x16xf32> -> vector<4x2x16xf32>
    "tpu.trace_start"() <{level = 10 : i32, message = "hid,hjd->hij"}> : () -> ()
    %cst_234 = arith.constant dense<0.000000e+00> : vector<4x2x2xf32>
    %740 = tpu.matmul %721, %730, %cst_234 {dimension_numbers = #tpu.dot_dimension_numbers<[2], [2], [1], [1], [0, 0, 0, 1, 1, 1], [0], [0]>} : vector<4x2x16xf32>, vector<4x2x16xf32>, vector<4x2x2xf32> -> vector<4x2x2xf32>
    "tpu.trace_stop"() : () -> ()
    %cst_235 = arith.constant dense<0xFF800000> : vector<4x2xf32>
    %741 = vector.multi_reduction <maximumf>, %740, %cst_235 [2] : vector<4x2x2xf32> to vector<4x2xf32>
    %742 = vector.shape_cast %741 : vector<4x2xf32> to vector<4x2x1xf32>
    %743 = vector.broadcast %742 : vector<4x2x1xf32> to vector<4x2x2xf32>
    %744 = arith.subf %740, %743 : vector<4x2x2xf32>
    %745 = math.exp %744 : vector<4x2x2xf32>
    %cst_236 = arith.constant dense<0.000000e+00> : vector<4x2xf32>
    %746 = vector.multi_reduction <add>, %745, %cst_236 [2] : vector<4x2x2xf32> to vector<4x2xf32>
    %747 = vector.shape_cast %746 : vector<4x2xf32> to vector<4x2x1xf32>
    %748 = tpu.reciprocal %747 {approx = true} : vector<4x2x1xf32> -> vector<4x2x1xf32>
    %749 = vector.broadcast %748 : vector<4x2x1xf32> to vector<4x2x2xf32>
    %750 = arith.mulf %745, %749 : vector<4x2x2xf32>
    "tpu.trace_start"() <{level = 10 : i32, message = "hij,hjd->hid"}> : () -> ()
    %cst_237 = arith.constant dense<0.000000e+00> : vector<4x2x16xf32>
    %751 = tpu.matmul %750, %739, %cst_237 {dimension_numbers = #tpu.dot_dimension_numbers<[2], [1], [1], [2], [0, 0, 0, 1, 1, 2], [0], [0]>} : vector<4x2x2xf32>, vector<4x2x16xf32>, vector<4x2x16xf32> -> vector<4x2x16xf32>
    "tpu.trace_stop"() : () -> ()
    %752 = vector.extract_strided_slice %751 {offsets = [0, 0, 0], sizes = [1, 2, 16], strides = [1, 1, 1]} : vector<4x2x16xf32> to vector<1x2x16xf32>
    %753 = vector.shape_cast %752 : vector<1x2x16xf32> to vector<2x16xf32>
    %754 = vector.extract_strided_slice %751 {offsets = [1, 0, 0], sizes = [1, 2, 16], strides = [1, 1, 1]} : vector<4x2x16xf32> to vector<1x2x16xf32>
    %755 = vector.shape_cast %754 : vector<1x2x16xf32> to vector<2x16xf32>
    %756 = vector.extract_strided_slice %751 {offsets = [2, 0, 0], sizes = [1, 2, 16], strides = [1, 1, 1]} : vector<4x2x16xf32> to vector<1x2x16xf32>
    %757 = vector.shape_cast %756 : vector<1x2x16xf32> to vector<2x16xf32>
    %758 = vector.extract_strided_slice %751 {offsets = [3, 0, 0], sizes = [1, 2, 16], strides = [1, 1, 1]} : vector<4x2x16xf32> to vector<1x2x16xf32>
    %759 = vector.shape_cast %758 : vector<1x2x16xf32> to vector<2x16xf32>
    %760 = tpu.concatenate %753, %755, %757, %759 in 1 : vector<2x16xf32>, vector<2x16xf32>, vector<2x16xf32>, vector<2x16xf32> -> vector<2x64xf32>
    %c0_238 = arith.constant 0 : index
    %c0_239 = arith.constant 0 : index
    %761 = vector.load %arg7[%c0_238, %c0_239] : memref<64x64xf32, #tpu.memory_space<vmem>>, vector<64x64xf32>
    %cst_240 = arith.constant dense<0.000000e+00> : vector<2x64xf32>
    %762 = tpu.matmul %760, %761, %cst_240 {dimension_numbers = #tpu.dot_dimension_numbers<[1], [0], [0], [1], [0, 0, 1, 1], [], []>} : vector<2x64xf32>, vector<64x64xf32>, vector<2x64xf32> -> vector<2x64xf32>
    %c5_241 = arith.constant 5 : index
    %c0_242 = arith.constant 0 : index
    %763 = vector.load %arg5[%c5_241, %c0_242] : memref<17x256xf32, #tpu.memory_space<vmem>>, vector<1x64xf32>
    %764 = vector.broadcast %763 : vector<1x64xf32> to vector<2x64xf32>
    %765 = arith.addf %762, %764 : vector<2x64xf32>
    %766 = arith.addf %765, %702 : vector<2x64xf32>
    %cst_243 = arith.constant dense<0.000000e+00> : vector<2xf32>
    %767 = vector.multi_reduction <add>, %766, %cst_243 [1] : vector<2x64xf32> to vector<2xf32>
    %768 = vector.shape_cast %767 : vector<2xf32> to vector<2x1xf32>
    %cst_244 = arith.constant 6.400000e+01 : f32
    %769 = vector.broadcast %cst_244 : f32 to vector<2x1xf32>
    %770 = arith.divf %768, %769 : vector<2x1xf32>
    %771 = vector.broadcast %770 : vector<2x1xf32> to vector<2x64xf32>
    %772 = arith.subf %766, %771 : vector<2x64xf32>
    %773 = arith.mulf %772, %772 : vector<2x64xf32>
    %cst_245 = arith.constant dense<0.000000e+00> : vector<2xf32>
    %774 = vector.multi_reduction <add>, %773, %cst_245 [1] : vector<2x64xf32> to vector<2xf32>
    %775 = vector.shape_cast %774 : vector<2xf32> to vector<2x1xf32>
    %cst_246 = arith.constant 6.400000e+01 : f32
    %776 = vector.broadcast %cst_246 : f32 to vector<2x1xf32>
    %777 = arith.divf %775, %776 : vector<2x1xf32>
    %cst_247 = arith.constant 9.99999974E-6 : f32
    %778 = vector.broadcast %cst_247 : f32 to vector<2x1xf32>
    %779 = arith.addf %777, %778 : vector<2x1xf32>
    %780 = math.rsqrt %779 : vector<2x1xf32>
    %781 = vector.broadcast %780 : vector<2x1xf32> to vector<2x64xf32>
    %782 = arith.mulf %772, %781 : vector<2x64xf32>
    %783 = vector.broadcast %681 : vector<1x64xf32> to vector<2x64xf32>
    %784 = arith.mulf %782, %783 : vector<2x64xf32>
    %785 = vector.broadcast %682 : vector<1x64xf32> to vector<2x64xf32>
    %786 = arith.addf %784, %785 : vector<2x64xf32>
    %c0_248 = arith.constant 0 : index
    %c0_249 = arith.constant 0 : index
    %787 = vector.load %arg8[%c0_248, %c0_249] : memref<64x32xf32, #tpu.memory_space<vmem>>, vector<64x32xf32>
    %cst_250 = arith.constant dense<0.000000e+00> : vector<2x32xf32>
    %788 = tpu.matmul %786, %787, %cst_250 {dimension_numbers = #tpu.dot_dimension_numbers<[1], [0], [0], [1], [0, 0, 1, 1], [], []>} : vector<2x64xf32>, vector<64x32xf32>, vector<2x32xf32> -> vector<2x32xf32>
    %c6_251 = arith.constant 6 : index
    %c0_252 = arith.constant 0 : index
    %789 = vector.load %arg5[%c6_251, %c0_252] : memref<17x256xf32, #tpu.memory_space<vmem>>, vector<1x32xf32>
    %790 = vector.broadcast %789 : vector<1x32xf32> to vector<2x32xf32>
    %791 = arith.addf %788, %790 : vector<2x32xf32>
    %c7_253 = arith.constant 7 : index
    %c0_254 = arith.constant 0 : index
    %792 = vector.load %arg5[%c7_253, %c0_254] : memref<17x256xf32, #tpu.memory_space<vmem>>, vector<1x32xf32>
    %c8 = arith.constant 8 : index
    %c0_255 = arith.constant 0 : index
    %793 = vector.load %arg5[%c8, %c0_255] : memref<17x256xf32, #tpu.memory_space<vmem>>, vector<1x32xf32>
    %cst_256 = arith.constant dense<0.000000e+00> : vector<2xf32>
    %794 = vector.multi_reduction <add>, %791, %cst_256 [1] : vector<2x32xf32> to vector<2xf32>
    %795 = vector.shape_cast %794 : vector<2xf32> to vector<2x1xf32>
    %cst_257 = arith.constant 3.200000e+01 : f32
    %796 = vector.broadcast %cst_257 : f32 to vector<2x1xf32>
    %797 = arith.divf %795, %796 : vector<2x1xf32>
    %798 = vector.broadcast %797 : vector<2x1xf32> to vector<2x32xf32>
    %799 = arith.subf %791, %798 : vector<2x32xf32>
    %800 = arith.mulf %799, %799 : vector<2x32xf32>
    %cst_258 = arith.constant dense<0.000000e+00> : vector<2xf32>
    %801 = vector.multi_reduction <add>, %800, %cst_258 [1] : vector<2x32xf32> to vector<2xf32>
    %802 = vector.shape_cast %801 : vector<2xf32> to vector<2x1xf32>
    %cst_259 = arith.constant 3.200000e+01 : f32
    %803 = vector.broadcast %cst_259 : f32 to vector<2x1xf32>
    %804 = arith.divf %802, %803 : vector<2x1xf32>
    %cst_260 = arith.constant 9.99999974E-6 : f32
    %805 = vector.broadcast %cst_260 : f32 to vector<2x1xf32>
    %806 = arith.addf %804, %805 : vector<2x1xf32>
    %807 = math.rsqrt %806 : vector<2x1xf32>
    %808 = vector.broadcast %807 : vector<2x1xf32> to vector<2x32xf32>
    %809 = arith.mulf %799, %808 : vector<2x32xf32>
    %810 = vector.broadcast %792 : vector<1x32xf32> to vector<2x32xf32>
    %811 = arith.mulf %809, %810 : vector<2x32xf32>
    %812 = vector.broadcast %793 : vector<1x32xf32> to vector<2x32xf32>
    %813 = arith.addf %811, %812 : vector<2x32xf32>
    %cst_261 = arith.constant 0.000000e+00 : f32
    %814 = vector.broadcast %cst_261 : f32 to vector<2x32xf32>
    %815 = arith.maximumf %813, %814 : vector<2x32xf32>
    %c0_262 = arith.constant 0 : index
    %c0_263 = arith.constant 0 : index
    %816 = vector.load %arg9[%c0_262, %c0_263] : memref<32x16xf32, #tpu.memory_space<vmem>>, vector<32x16xf32>
    %cst_264 = arith.constant dense<0.000000e+00> : vector<2x16xf32>
    %817 = tpu.matmul %815, %816, %cst_264 {dimension_numbers = #tpu.dot_dimension_numbers<[1], [0], [0], [1], [0, 0, 1, 1], [], []>} : vector<2x32xf32>, vector<32x16xf32>, vector<2x16xf32> -> vector<2x16xf32>
    %c9 = arith.constant 9 : index
    %c0_265 = arith.constant 0 : index
    %818 = vector.load %arg5[%c9, %c0_265] : memref<17x256xf32, #tpu.memory_space<vmem>>, vector<1x16xf32>
    %819 = vector.broadcast %818 : vector<1x16xf32> to vector<2x16xf32>
    %820 = arith.addf %817, %819 : vector<2x16xf32>
    %c10 = arith.constant 10 : index
    %c0_266 = arith.constant 0 : index
    %821 = vector.load %arg5[%c10, %c0_266] : memref<17x256xf32, #tpu.memory_space<vmem>>, vector<1x16xf32>
    %c11 = arith.constant 11 : index
    %c0_267 = arith.constant 0 : index
    %822 = vector.load %arg5[%c11, %c0_267] : memref<17x256xf32, #tpu.memory_space<vmem>>, vector<1x16xf32>
    %cst_268 = arith.constant dense<0.000000e+00> : vector<2xf32>
    %823 = vector.multi_reduction <add>, %820, %cst_268 [1] : vector<2x16xf32> to vector<2xf32>
    %824 = vector.shape_cast %823 : vector<2xf32> to vector<2x1xf32>
    %cst_269 = arith.constant 1.600000e+01 : f32
    %825 = vector.broadcast %cst_269 : f32 to vector<2x1xf32>
    %826 = arith.divf %824, %825 : vector<2x1xf32>
    %827 = vector.broadcast %826 : vector<2x1xf32> to vector<2x16xf32>
    %828 = arith.subf %820, %827 : vector<2x16xf32>
    %829 = arith.mulf %828, %828 : vector<2x16xf32>
    %cst_270 = arith.constant dense<0.000000e+00> : vector<2xf32>
    %830 = vector.multi_reduction <add>, %829, %cst_270 [1] : vector<2x16xf32> to vector<2xf32>
    %831 = vector.shape_cast %830 : vector<2xf32> to vector<2x1xf32>
    %cst_271 = arith.constant 1.600000e+01 : f32
    %832 = vector.broadcast %cst_271 : f32 to vector<2x1xf32>
    %833 = arith.divf %831, %832 : vector<2x1xf32>
    %cst_272 = arith.constant 9.99999974E-6 : f32
    %834 = vector.broadcast %cst_272 : f32 to vector<2x1xf32>
    %835 = arith.addf %833, %834 : vector<2x1xf32>
    %836 = math.rsqrt %835 : vector<2x1xf32>
    %837 = vector.broadcast %836 : vector<2x1xf32> to vector<2x16xf32>
    %838 = arith.mulf %828, %837 : vector<2x16xf32>
    %839 = vector.broadcast %821 : vector<1x16xf32> to vector<2x16xf32>
    %840 = arith.mulf %838, %839 : vector<2x16xf32>
    %841 = vector.broadcast %822 : vector<1x16xf32> to vector<2x16xf32>
    %842 = arith.addf %840, %841 : vector<2x16xf32>
    %cst_273 = arith.constant 0.000000e+00 : f32
    %843 = vector.broadcast %cst_273 : f32 to vector<2x16xf32>
    %844 = arith.maximumf %842, %843 : vector<2x16xf32>
    %c0_274 = arith.constant 0 : index
    %c0_275 = arith.constant 0 : index
    %845 = vector.load %arg10[%c0_274, %c0_275] : memref<16x8xf32, #tpu.memory_space<vmem>>, vector<16x8xf32>
    %cst_276 = arith.constant dense<0.000000e+00> : vector<2x8xf32>
    %846 = tpu.matmul %844, %845, %cst_276 {dimension_numbers = #tpu.dot_dimension_numbers<[1], [0], [0], [1], [0, 0, 1, 1], [], []>} : vector<2x16xf32>, vector<16x8xf32>, vector<2x8xf32> -> vector<2x8xf32>
    %c12 = arith.constant 12 : index
    %c0_277 = arith.constant 0 : index
    %847 = vector.load %arg5[%c12, %c0_277] : memref<17x256xf32, #tpu.memory_space<vmem>>, vector<1x8xf32>
    %848 = vector.broadcast %847 : vector<1x8xf32> to vector<2x8xf32>
    %849 = arith.addf %846, %848 : vector<2x8xf32>
    %c13 = arith.constant 13 : index
    %c0_278 = arith.constant 0 : index
    %850 = vector.load %arg5[%c13, %c0_278] : memref<17x256xf32, #tpu.memory_space<vmem>>, vector<1x8xf32>
    %c14 = arith.constant 14 : index
    %c0_279 = arith.constant 0 : index
    %851 = vector.load %arg5[%c14, %c0_279] : memref<17x256xf32, #tpu.memory_space<vmem>>, vector<1x8xf32>
    %cst_280 = arith.constant dense<0.000000e+00> : vector<2xf32>
    %852 = vector.multi_reduction <add>, %849, %cst_280 [1] : vector<2x8xf32> to vector<2xf32>
    %853 = vector.shape_cast %852 : vector<2xf32> to vector<2x1xf32>
    %cst_281 = arith.constant 8.000000e+00 : f32
    %854 = vector.broadcast %cst_281 : f32 to vector<2x1xf32>
    %855 = arith.divf %853, %854 : vector<2x1xf32>
    %856 = vector.broadcast %855 : vector<2x1xf32> to vector<2x8xf32>
    %857 = arith.subf %849, %856 : vector<2x8xf32>
    %858 = arith.mulf %857, %857 : vector<2x8xf32>
    %cst_282 = arith.constant dense<0.000000e+00> : vector<2xf32>
    %859 = vector.multi_reduction <add>, %858, %cst_282 [1] : vector<2x8xf32> to vector<2xf32>
    %860 = vector.shape_cast %859 : vector<2xf32> to vector<2x1xf32>
    %cst_283 = arith.constant 8.000000e+00 : f32
    %861 = vector.broadcast %cst_283 : f32 to vector<2x1xf32>
    %862 = arith.divf %860, %861 : vector<2x1xf32>
    %cst_284 = arith.constant 9.99999974E-6 : f32
    %863 = vector.broadcast %cst_284 : f32 to vector<2x1xf32>
    %864 = arith.addf %862, %863 : vector<2x1xf32>
    %865 = math.rsqrt %864 : vector<2x1xf32>
    %866 = vector.broadcast %865 : vector<2x1xf32> to vector<2x8xf32>
    %867 = arith.mulf %857, %866 : vector<2x8xf32>
    %868 = vector.broadcast %850 : vector<1x8xf32> to vector<2x8xf32>
    %869 = arith.mulf %867, %868 : vector<2x8xf32>
    %870 = vector.broadcast %851 : vector<1x8xf32> to vector<2x8xf32>
    %871 = arith.addf %869, %870 : vector<2x8xf32>
    %cst_285 = arith.constant 0.000000e+00 : f32
    %872 = vector.broadcast %cst_285 : f32 to vector<2x8xf32>
    %873 = arith.maximumf %871, %872 : vector<2x8xf32>
    %c15 = arith.constant 15 : index
    %c0_286 = arith.constant 0 : index
    %874 = vector.load %arg5[%c15, %c0_286] : memref<17x256xf32, #tpu.memory_space<vmem>>, vector<1x8xf32>
    %875 = vector.broadcast %874 : vector<1x8xf32> to vector<2x8xf32>
    %876 = arith.mulf %873, %875 : vector<2x8xf32>
    %cst_287 = arith.constant dense<0.000000e+00> : vector<2xf32>
    %877 = vector.multi_reduction <add>, %876, %cst_287 [1] : vector<2x8xf32> to vector<2xf32>
    %878 = vector.shape_cast %877 : vector<2xf32> to vector<2x1xf32>
    %c16 = arith.constant 16 : index
    %c0_288 = arith.constant 0 : index
    %879 = vector.load %arg5[%c16, %c0_288] : memref<17x256xf32, #tpu.memory_space<vmem>>, vector<1x1xf32>
    %880 = vector.broadcast %879 : vector<1x1xf32> to vector<2x1xf32>
    %881 = arith.addf %878, %880 : vector<2x1xf32>
    %c0_289 = arith.constant 0 : index
    %c0_290 = arith.constant 0 : index
    %882 = vector.load %arg11[%c0_289, %c0_290] : memref<2x1xf32, #tpu.memory_space<vmem>>, vector<2x1xf32>
    tpu.vector_store %arg11[%c0_289, %c0_290], %881 {strides = array<i32>} : memref<2x1xf32, #tpu.memory_space<vmem>>, vector<2x1xf32>,
    return
  }
}

</mosaic_0001>

<llo_original>
// kernel: forward.1
$region0: #{forward.1}
  #allocation0 [shape = 'u32[]', space=smem, size = 0x4, offset = 0x4, fixed_abs, tag = 'smem constant byte address 0x4 - core index']
  #allocation1 [shape = 'u32[144,128]{1,0:T(1,128)}', space=vmem, size = 0x12000, scoped, tag = 'internal scratch']
  #allocation2 [shape = 'f32[8,2,128]{2,1,0:T(2,128)}', space=vmem, size = 0x2000, scoped, tag = 'scratch operand']
  #allocation3 [shape = 'f32[8,2,128]{2,1,0:T(2,128)}', space=vmem, size = 0x2000, scoped, tag = 'scratch operand']
  #allocation4 [shape = 'f32[8,2,32]{2,1,0:T(2,128)}', space=vmem, size = 0x2000, scoped, tag = 'scratch operand']
  #allocation5 [shape = 'f32[8,2,32]{2,1,0:T(2,128)}', space=vmem, size = 0x2000, scoped, tag = 'scratch operand']
  #allocation6 [shape = 'f32[8,2,32]{2,1,0:T(2,128)}', space=vmem, size = 0x2000, scoped, tag = 'scratch operand']
  #allocation7 [shape = 'f32[8,2,32]{2,1,0:T(2,128)}', space=vmem, size = 0x2000, scoped, tag = 'scratch operand']
  %s0 = inlined_call_operand.hbm [shape: f32[2,8,8], index: 0, kind: input, shape index: {}]
  %s1 = inlined_call_operand.hbm [shape: f32[8,256], index: 1, kind: input, shape index: {}]
  %s2 = inlined_call_operand.hbm [shape: f32[64,128], index: 2, kind: input, shape index: {}]
  %s3 = inlined_call_operand.vmem [shape: f32[64,256], index: 3, kind: input, shape index: {}]
  %s4 = inlined_call_operand.hbm [shape: f32[64,128], index: 4, kind: input, shape index: {}]
  %s5 = inlined_call_operand.vmem [shape: f32[17,256], index: 5, kind: input, shape index: {}]
  %s6 = inlined_call_operand.hbm [shape: f32[64,192], index: 6, kind: input, shape index: {}]
  %s7 = inlined_call_operand.hbm [shape: f32[64,64], index: 7, kind: input, shape index: {}]
  %s8 = inlined_call_operand.vmem [shape: f32[64,32], index: 8, kind: input, shape index: {}]
  %s9 = inlined_call_operand.vmem [shape: f32[32,16], index: 9, kind: input, shape index: {}]
  %s10 = inlined_call_operand.vmem [shape: f32[16,8], index: 10, kind: input, shape index: {}]
  %s11 = inlined_call_operand.vmem [shape: f32[2,1], index: 11, kind: output, shape index: {}]
  %s12 = sld [smem:[#allocation0]]
  $region78: #{forward.1} parent=0
    _
  %s14 = ssub.s32 1, %s12
  %s15 = scalar_select 0, %s14, %s12
  $region1: #{forward.1} parent=0
    #allocation8 [shape = 'u8[8192]{0}', space=vmem, size = 0x2000, scoped, tag = 'input window, operand 0, single buffered']
    #allocation9 [shape = 's32[1]{0}', space=sflag, size = 0x4, scoped, tag = 'scoped memory for forward.1']
    #allocation10 [shape = 'u8[8192]{0}', space=vmem, size = 0x2000, scoped, tag = 'input window, operand 1, single buffered']
    #allocation11 [shape = 's32[1]{0}', space=sflag, size = 0x4, scoped, tag = 'scoped memory for forward.1']
    #allocation12 [shape = 'u8[32768]{0}', space=vmem, size = 0x8000, scoped, tag = 'input window, operand 2, single buffered']
    #allocation13 [shape = 'u8[32768]{0}', space=vmem, size = 0x8000, scoped, tag = 'input window, operand 4, single buffered']
    #allocation14 [shape = 's32[1]{0}', space=sflag, size = 0x4, scoped, tag = 'scoped memory for forward.1']
    #allocation15 [shape = 'u8[65536]{0}', space=vmem, size = 0x10000, scoped, tag = 'input window, operand 6, single buffered']
    #allocation16 [shape = 'u8[32768]{0}', space=vmem, size = 0x8000, scoped, tag = 'input window, operand 7, single buffered']
    #allocation17 [shape = 's32[1]{0}', space=sflag, size = 0x4, scoped, tag = 'scoped memory for forward.1']
    %16 = vsyncpa [#allocation9], 0
    %17 = vsyncpa [#allocation11], 0
    %18 = vsyncpa [#allocation14], 0
    %19 = vsyncpa [#allocation17], 0
    // Predicated region
    $region2: #{forward.1} parent=1 // pred_check
      _
    $region3: #{forward.1} parent=1 // pred_check_branch
      %21 = sbr.rel (0) target = $region5
    $region4: #{forward.1} parent=1 // pred_region
      %s23 = ssub.s32 256, 256
      %24 = vsyncadd [#allocation9], %s23
      %s25 = sshll.u32 [#allocation8], 4
      %s26 = int_to_ptr.vmem [resolvable:$true] %s25
      %31 = dma.hbm_to_vmem [thread:$0]  %s0, 256, %s26, [#allocation9], 128, 128, 8
    $region5: #{forward.1} parent=1 // pred_fallthru
      _
    // Predicated region
    $region6: #{forward.1} parent=1 // pred_check
      _
    $region7: #{forward.1} parent=1 // pred_check_branch
      %33 = sbr.rel (0) target = $region9
    $region8: #{forward.1} parent=1 // pred_region
      %s35 = ssub.s32 256, 256
      %36 = vsyncadd [#allocation11], %s35
      %s38 = sshll.u32 [#allocation10], 4
      %s39 = int_to_ptr.vmem [resolvable:$true] %s38
      %41 = dma.hbm_to_vmem [thread:$0]  %s1, 256, %s39, [#allocation11]
    $region9: #{forward.1} parent=1 // pred_fallthru
      _
    // Predicated region
    $region10: #{forward.1} parent=1 // pred_check
      _
    $region11: #{forward.1} parent=1 // pred_check_branch
      %43 = sbr.rel (0) target = $region13
    $region12: #{forward.1} parent=1 // pred_region
      %s45 = ssub.s32 1024, 1024
      %46 = vsyncadd [#allocation11], %s45
      %s47 = sshll.u32 [#allocation12], 4
      %s48 = int_to_ptr.vmem [resolvable:$true] %s47
      %53 = dma.hbm_to_vmem [thread:$0]  %s2, 1024, %s48, [#allocation11], 128, 128, 8
    $region13: #{forward.1} parent=1 // pred_fallthru
      _
    // Predicated region
    $region14: #{forward.1} parent=1 // pred_check
      _
    $region15: #{forward.1} parent=1 // pred_check_branch
      %55 = sbr.rel (0) target = $region17
    $region16: #{forward.1} parent=1 // pred_region
      _
    $region17: #{forward.1} parent=1 // pred_fallthru
      _
    // Predicated region
    $region18: #{forward.1} parent=1 // pred_check
      _
    $region19: #{forward.1} parent=1 // pred_check_branch
      %57 = sbr.rel (0) target = $region21
    $region20: #{forward.1} parent=1 // pred_region
      %s59 = ssub.s32 1024, 1024
      %60 = vsyncadd [#allocation14], %s59
      %s61 = sshll.u32 [#allocation13], 4
      %s62 = int_to_ptr.vmem [resolvable:$true] %s61
      %67 = dma.hbm_to_vmem [thread:$0]  %s4, 1024, %s62, [#allocation14], 128, 128, 8
    $region21: #{forward.1} parent=1 // pred_fallthru
      _
    // Predicated region
    $region22: #{forward.1} parent=1 // pred_check
      _
    $region23: #{forward.1} parent=1 // pred_check_branch
      %69 = sbr.rel (0) target = $region25
    $region24: #{forward.1} parent=1 // pred_region
      _
    $region25: #{forward.1} parent=1 // pred_fallthru
      _
    // Predicated region
    $region26: #{forward.1} parent=1 // pred_check
      _
    $region27: #{forward.1} parent=1 // pred_check_branch
      %71 = sbr.rel (0) target = $region29
    $region28: #{forward.1} parent=1 // pred_region
      %s73 = ssub.s32 2048, 2048
      %74 = vsyncadd [#allocation14], %s73
      %s75 = sshll.u32 [#allocation15], 4
      %s76 = int_to_ptr.vmem [resolvable:$true] %s75
      %81 = dma.hbm_to_vmem [thread:$0]  %s6, 2048, %s76, [#allocation14], 256, 256, 16
    $region29: #{forward.1} parent=1 // pred_fallthru
      _
    // Predicated region
    $region30: #{forward.1} parent=1 // pred_check
      _
    $region31: #{forward.1} parent=1 // pred_check_branch
      %83 = sbr.rel (0) target = $region33
    $region32: #{forward.1} parent=1 // pred_region
      %s85 = ssub.s32 1024, 1024
      %86 = vsyncadd [#allocation17], %s85
      %s87 = sshll.u32 [#allocation16], 4
      %s88 = int_to_ptr.vmem [resolvable:$true] %s87
      %93 = dma.hbm_to_vmem [thread:$0]  %s7, 1024, %s88, [#allocation17], 128, 128, 8
    $region33: #{forward.1} parent=1 // pred_fallthru
      _
    // Predicated region
    $region34: #{forward.1} parent=1 // pred_check
      _
    $region35: #{forward.1} parent=1 // pred_check_branch
      %95 = sbr.rel (0) target = $region37
    $region36: #{forward.1} parent=1 // pred_region
      _
    $region37: #{forward.1} parent=1 // pred_fallthru
      _
    // Predicated region
    $region38: #{forward.1} parent=1 // pred_check
      _
    $region39: #{forward.1} parent=1 // pred_check_branch
      %97 = sbr.rel (0) target = $region41
    $region40: #{forward.1} parent=1 // pred_region
      _
    $region41: #{forward.1} parent=1 // pred_fallthru
      _
    // Predicated region
    $region42: #{forward.1} parent=1 // pred_check
      _
    $region43: #{forward.1} parent=1 // pred_check_branch
      %99 = sbr.rel (0) target = $region45
    $region44: #{forward.1} parent=1 // pred_region
      _
    $region45: #{forward.1} parent=1 // pred_fallthru
      _
    // Predicated region
    $region46: #{forward.1} parent=1 // pred_check
      _
    $region47: #{forward.1} parent=1 // pred_check_branch
      %101 = sbr.rel (0) target = $region49
    $region48: #{forward.1} parent=1 // pred_region
      %102 = dma.done [#allocation9], 256
    $region49: #{forward.1} parent=1 // pred_fallthru
      _
    // Predicated region
    $region50: #{forward.1} parent=1 // pred_check
      _
    $region51: #{forward.1} parent=1 // pred_check_branch
      %104 = sbr.rel (0) target = $region53
    $region52: #{forward.1} parent=1 // pred_region
      %105 = dma.done [#allocation11], 256
    $region53: #{forward.1} parent=1 // pred_fallthru
      _
    // Predicated region
    $region54: #{forward.1} parent=1 // pred_check
      _
    $region55: #{forward.1} parent=1 // pred_check_branch
      %107 = sbr.rel (0) target = $region57
    $region56: #{forward.1} parent=1 // pred_region
      %108 = dma.done [#allocation11], 1024
    $region57: #{forward.1} parent=1 // pred_fallthru
      _
    // Predicated region
    $region58: #{forward.1} parent=1 // pred_check
      _
    $region59: #{forward.1} parent=1 // pred_check_branch
      %110 = sbr.rel (0) target = $region61
    $region60: #{forward.1} parent=1 // pred_region
      %111 = dma.done [#allocation14], 1024
    $region61: #{forward.1} parent=1 // pred_fallthru
      _
    // Predicated region
    $region62: #{forward.1} parent=1 // pred_check
      _
    $region63: #{forward.1} parent=1 // pred_check_branch
      %113 = sbr.rel (0) target = $region65
    $region64: #{forward.1} parent=1 // pred_region
      %114 = dma.done [#allocation14], 2048
    $region65: #{forward.1} parent=1 // pred_fallthru
      _
    // Predicated region
    $region66: #{forward.1} parent=1 // pred_check
      _
    $region67: #{forward.1} parent=1 // pred_check_branch
      %116 = sbr.rel (0) target = $region69
    $region68: #{forward.1} parent=1 // pred_region
      %117 = dma.done [#allocation17], 1024
    $region69: #{forward.1} parent=1 // pred_fallthru
      _
    %v118 = vld [vmem:[%s5] ss:$8 sm:$0x3]
    %v119 = vld [vmem:[#allocation8] sm:$0xff]
    %v120 = vld [vmem:[#allocation8 + $0x8] sm:$0xff]
    %v121 = vld [vmem:[#allocation10] sm:$0xff]
    %v122 = vld [vmem:[#allocation10 + $0x8] sm:$0xff]
    %v124 = vlaneseq
    %v125 = vshrl.u32 %v124, 7
    %v126 = vsub.s32 0, %v125
    %v127 = vrot.slane %v118, %v126
    %v128 = vlaneseq
    %v129 = vshrl.u32 %v128, 7
    %v130 = vsub.s32 1, %v129
    %v131 = vrot.slane %v118, %v130
    %vm134 = vcmask 64512
    %v136 = vsel %vm134, %v119, 0
    %v139 = vsel %vm134, %v120, 0
    %141 = vmatprep.subr.mxu0 0.0
    %142 = vmatpush1.msra.mxu0 0.0
    %143 = vmatprep.subr.mxu0 0.0
    %144 = vmatpush1.msra.mxu0 0.0
    %145 = vmatprep.subr.mxu0 0.0
    %146 = vmatpush1.msra.mxu0 0.0
    %147 = vmatprep.subr.mxu0 0.0
    %148 = vmatpush1.msra.mxu0 0.0
    %149 = vmatprep.subr.mxu0 0.0
    %150 = vmatpush1.msra.mxu0 0.0
    %151 = vmatprep.subr.mxu0 0.0
    %152 = vmatpush1.msra.mxu0 0.0
    %153 = vmatprep.subr.mxu0 0.0
    %154 = vmatpush1.msra.mxu0 0.0
    %155 = vmatprep.subr.mxu0 0.0
    %156 = vmatpush1.msra.mxu0 0.0
    %157 = vmatprep.subr.mxu0 0.0
    %158 = vmatpush1.msra.mxu0 0.0
    %159 = vmatprep.subr.mxu0 0.0
    %160 = vmatpush1.msra.mxu0 0.0
    %161 = vmatprep.subr.mxu0 0.0
    %162 = vmatpush1.msra.mxu0 0.0
    %163 = vmatprep.subr.mxu0 0.0
    %164 = vmatpush1.msra.mxu0 0.0
    %165 = vmatprep.subr.mxu0 0.0
    %166 = vmatpush1.msra.mxu0 0.0
    %167 = vmatprep.subr.mxu0 0.0
    %168 = vmatpush1.msra.mxu0 0.0
    %169 = vmatprep.subr.mxu0 0.0
    %170 = vmatpush1.msra.mxu0 0.0
    %171 = vmatprep.subr.mxu0 %v122
    %172 = vmatpush1.msra.mxu0 %v121
    %173 = vmatprep.subr.mxu0 0.0
    %174 = vmatpush2.msra.mxu0 0.0
    %175 = vmatprep.subr.mxu0 0.0
    %176 = vmatpush2.msra.mxu0 0.0
    %177 = vmatprep.subr.mxu0 0.0
    %178 = vmatpush2.msra.mxu0 0.0
    %179 = vmatprep.subr.mxu0 0.0
    %180 = vmatpush2.msra.mxu0 0.0
    %181 = vmatprep.subr.mxu0 0.0
    %182 = vmatpush2.msra.mxu0 0.0
    %183 = vmatprep.subr.mxu0 0.0
    %184 = vmatpush2.msra.mxu0 0.0
    %185 = vmatprep.subr.mxu0 0.0
    %186 = vmatpush2.msra.mxu0 0.0
    %187 = vmatprep.subr.mxu0 0.0
    %188 = vmatpush2.msra.mxu0 0.0
    %189 = vmatprep.subr.mxu0 0.0
    %190 = vmatpush2.msra.mxu0 0.0
    %191 = vmatprep.subr.mxu0 0.0
    %192 = vmatpush2.msra.mxu0 0.0
    %193 = vmatprep.subr.mxu0 0.0
    %194 = vmatpush2.msra.mxu0 0.0
    %195 = vmatprep.subr.mxu0 0.0
    %196 = vmatpush2.msra.mxu0 0.0
    %197 = vmatprep.subr.mxu0 0.0
    %198 = vmatpush2.msra.mxu0 0.0
    %199 = vmatprep.subr.mxu0 0.0
    %200 = vmatpush2.msra.mxu0 0.0
    %201 = vmatprep.subr.mxu0 0.0
    %202 = vmatpush2.msra.mxu0 0.0
    %203 = vmatprep.subr.mxu0 0.0
    %204 = vmatpush2.msra.mxu0 0.0
    %205 = vmatprep.mubr.f32.mxu0 0.0
    %206 = vmatmul.mubr.f32.gmra.mxu0 %v136
    %v207 = vpop.f32.mrf.mxu0
    %v208 = vadd.f32 %v127, %v207
    %v209 = vpop.f32.mrf.mxu0
    %v210 = vadd.f32 %v131, %v209
    %211 = vmatprep.mubr.f32.mxu0 0.0
    %212 = vmatmul.mubr.f32.gmra.mxu0 %v139
    %v213 = vpop.f32.mrf.mxu0
    %v214 = vadd.f32 %v127, %v213
    %v215 = vpop.f32.mrf.mxu0
    %v216 = vadd.f32 %v131, %v215
    %217 = vdwg.mxu0
    %v220 = vrot.slane %v214, 7
    %vm221 = vcmask 1041409
    %v222 = vsel %vm221, %v220, %v208
    %224 = vst [vmem:[#allocation2] sm:$0x3] %v222
    %v227 = vrot.slane %v216, 7
    %v228 = vsel %vm221, %v227, %v210
    %230 = vst [vmem:[#allocation3] sm:$0x3] %v228
    %vm231 = vcmask 1042434
    %v232 = vsel %vm231, %v220, %v208
    %s234 = scalar_lea.vmem [#allocation2], 2
    %235 = vst [vmem:[%s234 - $0x1] sm:$0x6] %v232
    %v236 = vsel %vm231, %v227, %v210
    %s238 = scalar_lea.vmem [#allocation3], 2
    %239 = vst [vmem:[%s238 - $0x1] sm:$0x6] %v236
    %vm240 = vcmask 1043459
    %v241 = vsel %vm240, %v220, %v208
    %s243 = scalar_lea.vmem [#allocation2], 4
    %244 = vst [vmem:[%s243 - $0x2] sm:$0xc] %v241
    %v245 = vsel %vm240, %v227, %v210
    %s247 = scalar_lea.vmem [#allocation3], 4
    %248 = vst [vmem:[%s247 - $0x2] sm:$0xc] %v245
    %vm249 = vcmask 1044484
    %v250 = vsel %vm249, %v220, %v208
    %s252 = scalar_lea.vmem [#allocation2], 6
    %253 = vst [vmem:[%s252 - $0x3] sm:$0x18] %v250
    %v254 = vsel %vm249, %v227, %v210
    %s256 = scalar_lea.vmem [#allocation3], 6
    %257 = vst [vmem:[%s256 - $0x3] sm:$0x18] %v254
    %vm258 = vcmask 1045509
    %v259 = vsel %vm258, %v220, %v208
    %s261 = scalar_lea.vmem [#allocation2], 8
    %262 = vst [vmem:[%s261 - $0x4] sm:$0x30] %v259
    %v263 = vsel %vm258, %v227, %v210
    %s265 = scalar_lea.vmem [#allocation3], 8
    %266 = vst [vmem:[%s265 - $0x4] sm:$0x30] %v263
    %vm267 = vcmask 1046534
    %v268 = vsel %vm267, %v220, %v208
    %s270 = scalar_lea.vmem [#allocation2], 10
    %271 = vst [vmem:[%s270 - $0x5] sm:$0x60] %v268
    %v272 = vsel %vm267, %v227, %v210
    %s274 = scalar_lea.vmem [#allocation3], 10
    %275 = vst [vmem:[%s274 - $0x5] sm:$0x60] %v272
    %vm276 = vcmask 1047559
    %v277 = vsel %vm276, %v220, %v208
    %s279 = scalar_lea.vmem [#allocation2], 12
    %280 = vst [vmem:[%s279 - $0x6] sm:$0xc0] %v277
    %v281 = vsel %vm276, %v227, %v210
    %s283 = scalar_lea.vmem [#allocation3], 12
    %284 = vst [vmem:[%s283 - $0x6] sm:$0xc0] %v281
    %s287 = scalar_lea.vmem [#allocation2], 14
    %288 = vst [vmem:[%s287 - $0x7] sm:$0x80] %v208
    %289 = vst [vmem:[%s287 + $0x1] sm:$0x1] %v220
    %s292 = scalar_lea.vmem [#allocation3], 14
    %293 = vst [vmem:[%s292 - $0x7] sm:$0x80] %v210
    %294 = vst [vmem:[%s292 + $0x1] sm:$0x1] %v227
    %v295 = vld [vmem:[#allocation12] sm:$0xff]
    %v296 = vld [vmem:[#allocation12 + $0x8] sm:$0xff]
    %v297 = vld [vmem:[#allocation12 + $0x10] sm:$0xff]
    %v298 = vld [vmem:[#allocation12 + $0x18] sm:$0xff]
    %v299 = vld [vmem:[#allocation12 + $0x20] sm:$0xff]
    %v300 = vld [vmem:[#allocation12 + $0x28] sm:$0xff]
    %v301 = vld [vmem:[#allocation12 + $0x30] sm:$0xff]
    %v302 = vld [vmem:[#allocation12 + $0x38] sm:$0xff]
    %v303 = vld [vmem:[#allocation2] sm:$0x3]
    %vm304 = vcmask 261120
    %v306 = vsel %vm304, 0.0, 0
    %308 = vmatprep.subr.mxu0 0.0
    %309 = vmatpush1.msra.mxu0 0.0
    %310 = vmatprep.subr.mxu0 0.0
    %311 = vmatpush1.msra.mxu0 0.0
    %312 = vmatprep.subr.mxu0 0.0
    %313 = vmatpush1.msra.mxu0 0.0
    %314 = vmatprep.subr.mxu0 0.0
    %315 = vmatpush1.msra.mxu0 0.0
    %316 = vmatprep.subr.mxu0 0.0
    %317 = vmatpush1.msra.mxu0 0.0
    %318 = vmatprep.subr.mxu0 0.0
    %319 = vmatpush1.msra.mxu0 0.0
    %320 = vmatprep.subr.mxu0 0.0
    %321 = vmatpush1.msra.mxu0 0.0
    %322 = vmatprep.subr.mxu0 0.0
    %323 = vmatpush1.msra.mxu0 0.0
    %324 = vmatprep.subr.mxu0 0.0
    %325 = vmatpush1.msra.mxu0 0.0
    %326 = vmatprep.subr.mxu0 0.0
    %327 = vmatpush1.msra.mxu0 0.0
    %328 = vmatprep.subr.mxu0 0.0
    %329 = vmatpush1.msra.mxu0 0.0
    %330 = vmatprep.subr.mxu0 0.0
    %331 = vmatpush1.msra.mxu0 0.0
    %332 = vmatprep.subr.mxu0 0.0
    %333 = vmatpush1.msra.mxu0 %v298
    %334 = vmatprep.subr.mxu0 0.0
    %335 = vmatpush1.msra.mxu0 %v297
    %336 = vmatprep.subr.mxu0 0.0
    %337 = vmatpush1.msra.mxu0 %v296
    %338 = vmatprep.subr.mxu0 0.0
    %339 = vmatpush1.msra.mxu0 %v295
    %340 = vmatprep.subr.mxu0 0.0
    %341 = vmatpush2.msra.mxu0 0.0
    %342 = vmatprep.subr.mxu0 0.0
    %343 = vmatpush2.msra.mxu0 0.0
    %344 = vmatprep.subr.mxu0 0.0
    %345 = vmatpush2.msra.mxu0 0.0
    %346 = vmatprep.subr.mxu0 0.0
    %347 = vmatpush2.msra.mxu0 0.0
    %348 = vmatprep.subr.mxu0 0.0
    %349 = vmatpush2.msra.mxu0 0.0
    %350 = vmatprep.subr.mxu0 0.0
    %351 = vmatpush2.msra.mxu0 0.0
    %352 = vmatprep.subr.mxu0 0.0
    %353 = vmatpush2.msra.mxu0 0.0
    %354 = vmatprep.subr.mxu0 0.0
    %355 = vmatpush2.msra.mxu0 0.0
    %356 = vmatprep.subr.mxu0 0.0
    %357 = vmatpush2.msra.mxu0 0.0
    %358 = vmatprep.subr.mxu0 0.0
    %359 = vmatpush2.msra.mxu0 0.0
    %360 = vmatprep.subr.mxu0 0.0
    %361 = vmatpush2.msra.mxu0 0.0
    %362 = vmatprep.subr.mxu0 0.0
    %363 = vmatpush2.msra.mxu0 0.0
    %364 = vmatprep.subr.mxu0 0.0
    %365 = vmatpush2.msra.mxu0 0.0
    %366 = vmatprep.subr.mxu0 0.0
    %367 = vmatpush2.msra.mxu0 0.0
    %368 = vmatprep.subr.mxu0 0.0
    %369 = vmatpush2.msra.mxu0 0.0
    %370 = vmatprep.subr.mxu0 0.0
    %371 = vmatpush2.msra.mxu0 0.0
    %372 = vmatprep.mubr.f32.mxu0 0.0
    %373 = vmatmul.mubr.f32.gmra.mxu0 %v306
    %v374 = vpop.f32.mrf.mxu0
    %v375 = vadd.f32 0.0, %v374
    %v376 = vpop.f32.mrf.mxu0
    %377 = vdwg.mxu0
    %v378 = vadd.f32 %v303, %v375
    %v379 = vld [vmem:[%s292] sm:$0x3]
    %380 = vmatprep.subr.mxu0 0.0
    %381 = vmatpush1.msra.mxu0 0.0
    %382 = vmatprep.subr.mxu0 0.0
    %383 = vmatpush1.msra.mxu0 0.0
    %384 = vmatprep.subr.mxu0 0.0
    %385 = vmatpush1.msra.mxu0 0.0
    %386 = vmatprep.subr.mxu0 0.0
    %387 = vmatpush1.msra.mxu0 0.0
    %388 = vmatprep.subr.mxu0 0.0
    %389 = vmatpush1.msra.mxu0 0.0
    %390 = vmatprep.subr.mxu0 0.0
    %391 = vmatpush1.msra.mxu0 0.0
    %392 = vmatprep.subr.mxu0 0.0
    %393 = vmatpush1.msra.mxu0 0.0
    %394 = vmatprep.subr.mxu0 0.0
    %395 = vmatpush1.msra.mxu0 0.0
    %396 = vmatprep.subr.mxu0 0.0
    %397 = vmatpush1.msra.mxu0 0.0
    %398 = vmatprep.subr.mxu0 0.0
    %399 = vmatpush1.msra.mxu0 0.0
    %400 = vmatprep.subr.mxu0 0.0
    %401 = vmatpush1.msra.mxu0 0.0
    %402 = vmatprep.subr.mxu0 0.0
    %403 = vmatpush1.msra.mxu0 0.0
    %404 = vmatprep.subr.mxu0 0.0
    %405 = vmatpush1.msra.mxu0 %v302
    %406 = vmatprep.subr.mxu0 0.0
    %407 = vmatpush1.msra.mxu0 %v301
    %408 = vmatprep.subr.mxu0 0.0
    %409 = vmatpush1.msra.mxu0 %v300
    %410 = vmatprep.subr.mxu0 0.0
    %411 = vmatpush1.msra.mxu0 %v299
    %412 = vmatprep.subr.mxu0 0.0
    %413 = vmatpush2.msra.mxu0 0.0
    %414 = vmatprep.subr.mxu0 0.0
    %415 = vmatpush2.msra.mxu0 0.0
    %416 = vmatprep.subr.mxu0 0.0
    %417 = vmatpush2.msra.mxu0 0.0
    %418 = vmatprep.subr.mxu0 0.0
    %419 = vmatpush2.msra.mxu0 0.0
    %420 = vmatprep.subr.mxu0 0.0
    %421 = vmatpush2.msra.mxu0 0.0
    %422 = vmatprep.subr.mxu0 0.0
    %423 = vmatpush2.msra.mxu0 0.0
    %424 = vmatprep.subr.mxu0 0.0
    %425 = vmatpush2.msra.mxu0 0.0
    %426 = vmatprep.subr.mxu0 0.0
    %427 = vmatpush2.msra.mxu0 0.0
    %428 = vmatprep.subr.mxu0 0.0
    %429 = vmatpush2.msra.mxu0 0.0
    %430 = vmatprep.subr.mxu0 0.0
    %431 = vmatpush2.msra.mxu0 0.0
    %432 = vmatprep.subr.mxu0 0.0
    %433 = vmatpush2.msra.mxu0 0.0
    %434 = vmatprep.subr.mxu0 0.0
    %435 = vmatpush2.msra.mxu0 0.0
    %436 = vmatprep.subr.mxu0 0.0
    %437 = vmatpush2.msra.mxu0 0.0
    %438 = vmatprep.subr.mxu0 0.0
    %439 = vmatpush2.msra.mxu0 0.0
    %440 = vmatprep.subr.mxu0 0.0
    %441 = vmatpush2.msra.mxu0 0.0
    %442 = vmatprep.subr.mxu0 0.0
    %443 = vmatpush2.msra.mxu0 0.0
    %444 = vmatprep.mubr.f32.mxu0 0.0
    %445 = vmatmul.mubr.f32.gmra.mxu0 %v306
    %v446 = vpop.f32.mrf.mxu0
    %v447 = vadd.f32 0.0, %v446
    %v448 = vpop.f32.mrf.mxu0
    %449 = vdwg.mxu0
    %v450 = vadd.f32 %v379, %v447
    %v451 = vxor.u32 %v378, 2147483648
    %v452 = vmul.f32 %v451, 1.442695
    %v453 = vpow.pop %v452
    %v454 = vadd.f32 %v453, 1.0
    %v455 = vrcp.pop %v454
    %v456 = vmul.f32 1.0, %v455
    %v457 = vtanh.pop %v378
    %v458 = vmul.f32 %v456, 0.0
    %460 = vrot.lane.b32.xlu0 %v457, 64
    %v461 = vpop.permute.xlu0 %460
    %v463 = vmul.f32 %v456, %v461
    %465 = vrot.lane.b32.xlu0 %v463, 32
    %v466 = vpop.permute.xlu0 %465
    %v468 = vadd.f32 %v458, %v466
    %v469 = vtanh.pop %v468
    %471 = vrot.lane.b32.xlu0 %v469, 64
    %v472 = vpop.permute.xlu0 %471
    %v474 = vmul.f32 %v456, %v472
    %v475 = vxor.u32 %v450, 2147483648
    %v476 = vmul.f32 %v475, 1.442695
    %v477 = vpow.pop %v476
    %v478 = vadd.f32 %v477, 1.0
    %v479 = vrcp.pop %v478
    %v480 = vmul.f32 1.0, %v479
    %v481 = vtanh.pop %v450
    %v482 = vmul.f32 %v480, 0.0
    %484 = vrot.lane.b32.xlu0 %v481, 64
    %v485 = vpop.permute.xlu0 %484
    %v487 = vmul.f32 %v480, %v485
    %489 = vrot.lane.b32.xlu0 %v487, 32
    %v490 = vpop.permute.xlu0 %489
    %v492 = vadd.f32 %v482, %v490
    %v493 = vtanh.pop %v492
    %495 = vrot.lane.b32.xlu0 %v493, 64
    %v496 = vpop.permute.xlu0 %495
    %v498 = vmul.f32 %v480, %v496
    %500 = vrot.lane.b32.xlu0 %v474, 32
    %v501 = vpop.permute.xlu0 %500
    %vm503 = vcmask 254976
    %504 = vst.msk [vmem:[#allocation4] sm:$0x3] %vm503, %v501
    %506 = vrot.lane.b32.xlu0 %v498, 32
    %v507 = vpop.permute.xlu0 %506
    %s509 = scalar_lea.vmem [#allocation5], 14
    %510 = vst.msk [vmem:[%s509] sm:$0x3] %vm503, %v507
    %v511 = vld [vmem:[%s234] sm:$0x3]
    %v512 = vsel %vm304, %v501, 0
    %514 = vmatprep.subr.mxu0 0.0
    %515 = vmatpush1.msra.mxu0 0.0
    %516 = vmatprep.subr.mxu0 0.0
    %517 = vmatpush1.msra.mxu0 0.0
    %518 = vmatprep.subr.mxu0 0.0
    %519 = vmatpush1.msra.mxu0 0.0
    %520 = vmatprep.subr.mxu0 0.0
    %521 = vmatpush1.msra.mxu0 0.0
    %522 = vmatprep.subr.mxu0 0.0
    %523 = vmatpush1.msra.mxu0 0.0
    %524 = vmatprep.subr.mxu0 0.0
    %525 = vmatpush1.msra.mxu0 0.0
    %526 = vmatprep.subr.mxu0 0.0
    %527 = vmatpush1.msra.mxu0 0.0
    %528 = vmatprep.subr.mxu0 0.0
    %529 = vmatpush1.msra.mxu0 0.0
    %530 = vmatprep.subr.mxu0 0.0
    %531 = vmatpush1.msra.mxu0 0.0
    %532 = vmatprep.subr.mxu0 0.0
    %533 = vmatpush1.msra.mxu0 0.0
    %534 = vmatprep.subr.mxu0 0.0
    %535 = vmatpush1.msra.mxu0 0.0
    %536 = vmatprep.subr.mxu0 0.0
    %537 = vmatpush1.msra.mxu0 0.0
    %538 = vmatprep.subr.mxu0 0.0
    %539 = vmatpush1.msra.mxu0 %v298
    %540 = vmatprep.subr.mxu0 0.0
    %541 = vmatpush1.msra.mxu0 %v297
    %542 = vmatprep.subr.mxu0 0.0
    %543 = vmatpush1.msra.mxu0 %v296
    %544 = vmatprep.subr.mxu0 0.0
    %545 = vmatpush1.msra.mxu0 %v295
    %546 = vmatprep.subr.mxu0 0.0
    %547 = vmatpush2.msra.mxu0 0.0
    %548 = vmatprep.subr.mxu0 0.0
    %549 = vmatpush2.msra.mxu0 0.0
    %550 = vmatprep.subr.mxu0 0.0
    %551 = vmatpush2.msra.mxu0 0.0
    %552 = vmatprep.subr.mxu0 0.0
    %553 = vmatpush2.msra.mxu0 0.0
    %554 = vmatprep.subr.mxu0 0.0
    %555 = vmatpush2.msra.mxu0 0.0
    %556 = vmatprep.subr.mxu0 0.0
    %557 = vmatpush2.msra.mxu0 0.0
    %558 = vmatprep.subr.mxu0 0.0
    %559 = vmatpush2.msra.mxu0 0.0
    %560 = vmatprep.subr.mxu0 0.0
    %561 = vmatpush2.msra.mxu0 0.0
    %562 = vmatprep.subr.mxu0 0.0
    %563 = vmatpush2.msra.mxu0 0.0
    %564 = vmatprep.subr.mxu0 0.0
    %565 = vmatpush2.msra.mxu0 0.0
    %566 = vmatprep.subr.mxu0 0.0
    %567 = vmatpush2.msra.mxu0 0.0
    %568 = vmatprep.subr.mxu0 0.0
    %569 = vmatpush2.msra.mxu0 0.0
    %570 = vmatprep.subr.mxu0 0.0
    %571 = vmatpush2.msra.mxu0 0.0
    %572 = vmatprep.subr.mxu0 0.0
    %573 = vmatpush2.msra.mxu0 0.0
    %574 = vmatprep.subr.mxu0 0.0
    %575 = vmatpush2.msra.mxu0 0.0
    %576 = vmatprep.subr.mxu0 0.0
    %577 = vmatpush2.msra.mxu0 0.0
    %578 = vmatprep.mubr.f32.mxu0 0.0
    %579 = vmatmul.mubr.f32.gmra.mxu0 %v512
    %v580 = vpop.f32.mrf.mxu0
    %v581 = vadd.f32 0.0, %v580
    %v582 = vpop.f32.mrf.mxu0
    %583 = vdwg.mxu0
    %v584 = vadd.f32 %v511, %v581
    %v585 = vld [vmem:[%s283] sm:$0x3]
    %v586 = vsel %vm304, %v507, 0
    %588 = vmatprep.subr.mxu0 0.0
    %589 = vmatpush1.msra.mxu0 0.0
    %590 = vmatprep.subr.mxu0 0.0
    %591 = vmatpush1.msra.mxu0 0.0
    %592 = vmatprep.subr.mxu0 0.0
    %593 = vmatpush1.msra.mxu0 0.0
    %594 = vmatprep.subr.mxu0 0.0
    %595 = vmatpush1.msra.mxu0 0.0
    %596 = vmatprep.subr.mxu0 0.0
    %597 = vmatpush1.msra.mxu0 0.0
    %598 = vmatprep.subr.mxu0 0.0
    %599 = vmatpush1.msra.mxu0 0.0
    %600 = vmatprep.subr.mxu0 0.0
    %601 = vmatpush1.msra.mxu0 0.0
    %602 = vmatprep.subr.mxu0 0.0
    %603 = vmatpush1.msra.mxu0 0.0
    %604 = vmatprep.subr.mxu0 0.0
    %605 = vmatpush1.msra.mxu0 0.0
    %606 = vmatprep.subr.mxu0 0.0
    %607 = vmatpush1.msra.mxu0 0.0
    %608 = vmatprep.subr.mxu0 0.0
    %609 = vmatpush1.msra.mxu0 0.0
    %610 = vmatprep.subr.mxu0 0.0
    %611 = vmatpush1.msra.mxu0 0.0
    %612 = vmatprep.subr.mxu0 0.0
    %613 = vmatpush1.msra.mxu0 %v302
    %614 = vmatprep.subr.mxu0 0.0
    %615 = vmatpush1.msra.mxu0 %v301
    %616 = vmatprep.subr.mxu0 0.0
    %617 = vmatpush1.msra.mxu0 %v300
    %618 = vmatprep.subr.mxu0 0.0
    %619 = vmatpush1.msra.mxu0 %v299
    %620 = vmatprep.subr.mxu0 0.0
    %621 = vmatpush2.msra.mxu0 0.0
    %622 = vmatprep.subr.mxu0 0.0
    %623 = vmatpush2.msra.mxu0 0.0
    %624 = vmatprep.subr.mxu0 0.0
    %625 = vmatpush2.msra.mxu0 0.0
    %626 = vmatprep.subr.mxu0 0.0
    %627 = vmatpush2.msra.mxu0 0.0
    %628 = vmatprep.subr.mxu0 0.0
    %629 = vmatpush2.msra.mxu0 0.0
    %630 = vmatprep.subr.mxu0 0.0
    %631 = vmatpush2.msra.mxu0 0.0
    %632 = vmatprep.subr.mxu0 0.0
    %633 = vmatpush2.msra.mxu0 0.0
    %634 = vmatprep.subr.mxu0 0.0
    %635 = vmatpush2.msra.mxu0 0.0
    %636 = vmatprep.subr.mxu0 0.0
    %637 = vmatpush2.msra.mxu0 0.0
    %638 = vmatprep.subr.mxu0 0.0
    %639 = vmatpush2.msra.mxu0 0.0
    %640 = vmatprep.subr.mxu0 0.0
    %641 = vmatpush2.msra.mxu0 0.0
    %642 = vmatprep.subr.mxu0 0.0
    %643 = vmatpush2.msra.mxu0 0.0
    %644 = vmatprep.subr.mxu0 0.0
    %645 = vmatpush2.msra.mxu0 0.0
    %646 = vmatprep.subr.mxu0 0.0
    %647 = vmatpush2.msra.mxu0 0.0
    %648 = vmatprep.subr.mxu0 0.0
    %649 = vmatpush2.msra.mxu0 0.0
    %650 = vmatprep.subr.mxu0 0.0
    %651 = vmatpush2.msra.mxu0 0.0
    %652 = vmatprep.mubr.f32.mxu0 0.0
    %653 = vmatmul.mubr.f32.gmra.mxu0 %v586
    %v654 = vpop.f32.mrf.mxu0
    %v655 = vadd.f32 0.0, %v654
    %v656 = vpop.f32.mrf.mxu0
    %657 = vdwg.mxu0
    %v658 = vadd.f32 %v585, %v655
    %v659 = vxor.u32 %v584, 2147483648
    %v660 = vmul.f32 %v659, 1.442695
    %v661 = vpow.pop %v660
    %v662 = vadd.f32 %v661, 1.0
    %v663 = vrcp.pop %v662
    %v664 = vmul.f32 1.0, %v663
    %v665 = vtanh.pop %v584
    %v666 = vmul.f32 %v664, %v468
    %668 = vrot.lane.b32.xlu0 %v665, 64
    %v669 = vpop.permute.xlu0 %668
    %v671 = vmul.f32 %v664, %v669
    %673 = vrot.lane.b32.xlu0 %v671, 32
    %v674 = vpop.permute.xlu0 %673
    %v676 = vadd.f32 %v666, %v674
    %v677 = vtanh.pop %v676
    %679 = vrot.lane.b32.xlu0 %v677, 64
    %v680 = vpop.permute.xlu0 %679
    %v682 = vmul.f32 %v664, %v680
    %v683 = vxor.u32 %v658, 2147483648
    %v684 = vmul.f32 %v683, 1.442695
    %v685 = vpow.pop %v684
    %v686 = vadd.f32 %v685, 1.0
    %v687 = vrcp.pop %v686
    %v688 = vmul.f32 1.0, %v687
    %v689 = vtanh.pop %v658
    %v690 = vmul.f32 %v688, %v492
    %692 = vrot.lane.b32.xlu0 %v689, 64
    %v693 = vpop.permute.xlu0 %692
    %v695 = vmul.f32 %v688, %v693
    %697 = vrot.lane.b32.xlu0 %v695, 32
    %v698 = vpop.permute.xlu0 %697
    %v700 = vadd.f32 %v690, %v698
    %v701 = vtanh.pop %v700
    %703 = vrot.lane.b32.xlu0 %v701, 64
    %v704 = vpop.permute.xlu0 %703
    %v706 = vmul.f32 %v688, %v704
    %708 = vrot.lane.b32.xlu0 %v682, 32
    %v709 = vpop.permute.xlu0 %708
    %s711 = scalar_lea.vmem [#allocation4], 2
    %712 = vst.msk [vmem:[%s711] sm:$0x3] %vm503, %v709
    %714 = vrot.lane.b32.xlu0 %v706, 32
    %v715 = vpop.permute.xlu0 %714
    %s717 = scalar_lea.vmem [#allocation5], 12
    %718 = vst.msk [vmem:[%s717] sm:$0x3] %vm503, %v715
    %v719 = vld [vmem:[%s243] sm:$0x3]
    %v720 = vsel %vm304, %v709, 0
    %722 = vmatprep.subr.mxu0 0.0
    %723 = vmatpush1.msra.mxu0 0.0
    %724 = vmatprep.subr.mxu0 0.0
    %725 = vmatpush1.msra.mxu0 0.0
    %726 = vmatprep.subr.mxu0 0.0
    %727 = vmatpush1.msra.mxu0 0.0
    %728 = vmatprep.subr.mxu0 0.0
    %729 = vmatpush1.msra.mxu0 0.0
    %730 = vmatprep.subr.mxu0 0.0
    %731 = vmatpush1.msra.mxu0 0.0
    %732 = vmatprep.subr.mxu0 0.0
    %733 = vmatpush1.msra.mxu0 0.0
    %734 = vmatprep.subr.mxu0 0.0
    %735 = vmatpush1.msra.mxu0 0.0
    %736 = vmatprep.subr.mxu0 0.0
    %737 = vmatpush1.msra.mxu0 0.0
    %738 = vmatprep.subr.mxu0 0.0
    %739 = vmatpush1.msra.mxu0 0.0
    %740 = vmatprep.subr.mxu0 0.0
    %741 = vmatpush1.msra.mxu0 0.0
    %742 = vmatprep.subr.mxu0 0.0
    %743 = vmatpush1.msra.mxu0 0.0
    %744 = vmatprep.subr.mxu0 0.0
    %745 = vmatpush1.msra.mxu0 0.0
    %746 = vmatprep.subr.mxu0 0.0
    %747 = vmatpush1.msra.mxu0 %v298
    %748 = vmatprep.subr.mxu0 0.0
    %749 = vmatpush1.msra.mxu0 %v297
    %750 = vmatprep.subr.mxu0 0.0
    %751 = vmatpush1.msra.mxu0 %v296
    %752 = vmatprep.subr.mxu0 0.0
    %753 = vmatpush1.msra.mxu0 %v295
    %754 = vmatprep.subr.mxu0 0.0
    %755 = vmatpush2.msra.mxu0 0.0
    %756 = vmatprep.subr.mxu0 0.0
    %757 = vmatpush2.msra.mxu0 0.0
    %758 = vmatprep.subr.mxu0 0.0
    %759 = vmatpush2.msra.mxu0 0.0
    %760 = vmatprep.subr.mxu0 0.0
    %761 = vmatpush2.msra.mxu0 0.0
    %762 = vmatprep.subr.mxu0 0.0
    %763 = vmatpush2.msra.mxu0 0.0
    %764 = vmatprep.subr.mxu0 0.0
    %765 = vmatpush2.msra.mxu0 0.0
    %766 = vmatprep.subr.mxu0 0.0
    %767 = vmatpush2.msra.mxu0 0.0
    %768 = vmatprep.subr.mxu0 0.0
    %769 = vmatpush2.msra.mxu0 0.0
    %770 = vmatprep.subr.mxu0 0.0
    %771 = vmatpush2.msra.mxu0 0.0
    %772 = vmatprep.subr.mxu0 0.0
    %773 = vmatpush2.msra.mxu0 0.0
    %774 = vmatprep.subr.mxu0 0.0
    %775 = vmatpush2.msra.mxu0 0.0
    %776 = vmatprep.subr.mxu0 0.0
    %777 = vmatpush2.msra.mxu0 0.0
    %778 = vmatprep.subr.mxu0 0.0
    %779 = vmatpush2.msra.mxu0 0.0
    %780 = vmatprep.subr.mxu0 0.0
    %781 = vmatpush2.msra.mxu0 0.0
    %782 = vmatprep.subr.mxu0 0.0
    %783 = vmatpush2.msra.mxu0 0.0
    %784 = vmatprep.subr.mxu0 0.0
    %785 = vmatpush2.msra.mxu0 0.0
    %786 = vmatprep.mubr.f32.mxu0 0.0
    %787 = vmatmul.mubr.f32.gmra.mxu0 %v720
    %v788 = vpop.f32.mrf.mxu0
    %v789 = vadd.f32 0.0, %v788
    %v790 = vpop.f32.mrf.mxu0
    %791 = vdwg.mxu0
    %v792 = vadd.f32 %v719, %v789
    %v793 = vld [vmem:[%s274] sm:$0x3]
    %v794 = vsel %vm304, %v715, 0
    %796 = vmatprep.subr.mxu0 0.0
    %797 = vmatpush1.msra.mxu0 0.0
    %798 = vmatprep.subr.mxu0 0.0
    %799 = vmatpush1.msra.mxu0 0.0
    %800 = vmatprep.subr.mxu0 0.0
    %801 = vmatpush1.msra.mxu0 0.0
    %802 = vmatprep.subr.mxu0 0.0
    %803 = vmatpush1.msra.mxu0 0.0
    %804 = vmatprep.subr.mxu0 0.0
    %805 = vmatpush1.msra.mxu0 0.0
    %806 = vmatprep.subr.mxu0 0.0
    %807 = vmatpush1.msra.mxu0 0.0
    %808 = vmatprep.subr.mxu0 0.0
    %809 = vmatpush1.msra.mxu0 0.0
    %810 = vmatprep.subr.mxu0 0.0
    %811 = vmatpush1.msra.mxu0 0.0
    %812 = vmatprep.subr.mxu0 0.0
    %813 = vmatpush1.msra.mxu0 0.0
    %814 = vmatprep.subr.mxu0 0.0
    %815 = vmatpush1.msra.mxu0 0.0
    %816 = vmatprep.subr.mxu0 0.0
    %817 = vmatpush1.msra.mxu0 0.0
    %818 = vmatprep.subr.mxu0 0.0
    %819 = vmatpush1.msra.mxu0 0.0
    %820 = vmatprep.subr.mxu0 0.0
    %821 = vmatpush1.msra.mxu0 %v302
    %822 = vmatprep.subr.mxu0 0.0
    %823 = vmatpush1.msra.mxu0 %v301
    %824 = vmatprep.subr.mxu0 0.0
    %825 = vmatpush1.msra.mxu0 %v300
    %826 = vmatprep.subr.mxu0 0.0
    %827 = vmatpush1.msra.mxu0 %v299
    %828 = vmatprep.subr.mxu0 0.0
    %829 = vmatpush2.msra.mxu0 0.0
    %830 = vmatprep.subr.mxu0 0.0
    %831 = vmatpush2.msra.mxu0 0.0
    %832 = vmatprep.subr.mxu0 0.0
    %833 = vmatpush2.msra.mxu0 0.0
    %834 = vmatprep.subr.mxu0 0.0
    %835 = vmatpush2.msra.mxu0 0.0
    %836 = vmatprep.subr.mxu0 0.0
    %837 = vmatpush2.msra.mxu0 0.0
    %838 = vmatprep.subr.mxu0 0.0
    %839 = vmatpush2.msra.mxu0 0.0
    %840 = vmatprep.subr.mxu0 0.0
    %841 = vmatpush2.msra.mxu0 0.0
    %842 = vmatprep.subr.mxu0 0.0
    %843 = vmatpush2.msra.mxu0 0.0
    %844 = vmatprep.subr.mxu0 0.0
    %845 = vmatpush2.msra.mxu0 0.0
    %846 = vmatprep.subr.mxu0 0.0
    %847 = vmatpush2.msra.mxu0 0.0
    %848 = vmatprep.subr.mxu0 0.0
    %849 = vmatpush2.msra.mxu0 0.0
    %850 = vmatprep.subr.mxu0 0.0
    %851 = vmatpush2.msra.mxu0 0.0
    %852 = vmatprep.subr.mxu0 0.0
    %853 = vmatpush2.msra.mxu0 0.0
    %854 = vmatprep.subr.mxu0 0.0
    %855 = vmatpush2.msra.mxu0 0.0
    %856 = vmatprep.subr.mxu0 0.0
    %857 = vmatpush2.msra.mxu0 0.0
    %858 = vmatprep.subr.mxu0 0.0
    %859 = vmatpush2.msra.mxu0 0.0
    %860 = vmatprep.mubr.f32.mxu0 0.0
    %861 = vmatmul.mubr.f32.gmra.mxu0 %v794
    %v862 = vpop.f32.mrf.mxu0
    %v863 = vadd.f32 0.0, %v862
    %v864 = vpop.f32.mrf.mxu0
    %865 = vdwg.mxu0
    %v866 = vadd.f32 %v793, %v863
    %v867 = vxor.u32 %v792, 2147483648
    %v868 = vmul.f32 %v867, 1.442695
    %v869 = vpow.pop %v868
    %v870 = vadd.f32 %v869, 1.0
    %v871 = vrcp.pop %v870
    %v872 = vmul.f32 1.0, %v871
    %v873 = vtanh.pop %v792
    %v874 = vmul.f32 %v872, %v676
    %876 = vrot.lane.b32.xlu0 %v873, 64
    %v877 = vpop.permute.xlu0 %876
    %v879 = vmul.f32 %v872, %v877
    %881 = vrot.lane.b32.xlu0 %v879, 32
    %v882 = vpop.permute.xlu0 %881
    %v884 = vadd.f32 %v874, %v882
    %v885 = vtanh.pop %v884
    %887 = vrot.lane.b32.xlu0 %v885, 64
    %v888 = vpop.permute.xlu0 %887
    %v890 = vmul.f32 %v872, %v888
    %v891 = vxor.u32 %v866, 2147483648
    %v892 = vmul.f32 %v891, 1.442695
    %v893 = vpow.pop %v892
    %v894 = vadd.f32 %v893, 1.0
    %v895 = vrcp.pop %v894
    %v896 = vmul.f32 1.0, %v895
    %v897 = vtanh.pop %v866
    %v898 = vmul.f32 %v896, %v700
    %900 = vrot.lane.b32.xlu0 %v897, 64
    %v901 = vpop.permute.xlu0 %900
    %v903 = vmul.f32 %v896, %v901
    %905 = vrot.lane.b32.xlu0 %v903, 32
    %v906 = vpop.permute.xlu0 %905
    %v908 = vadd.f32 %v898, %v906
    %v909 = vtanh.pop %v908
    %911 = vrot.lane.b32.xlu0 %v909, 64
    %v912 = vpop.permute.xlu0 %911
    %v914 = vmul.f32 %v896, %v912
    %916 = vrot.lane.b32.xlu0 %v890, 32
    %v917 = vpop.permute.xlu0 %916
    %s919 = scalar_lea.vmem [#allocation4], 4
    %920 = vst.msk [vmem:[%s919] sm:$0x3] %vm503, %v917
    %922 = vrot.lane.b32.xlu0 %v914, 32
    %v923 = vpop.permute.xlu0 %922
    %s925 = scalar_lea.vmem [#allocation5], 10
    %926 = vst.msk [vmem:[%s925] sm:$0x3] %vm503, %v923
    %v927 = vld [vmem:[%s252] sm:$0x3]
    %v928 = vsel %vm304, %v917, 0
    %930 = vmatprep.subr.mxu0 0.0
    %931 = vmatpush1.msra.mxu0 0.0
    %932 = vmatprep.subr.mxu0 0.0
    %933 = vmatpush1.msra.mxu0 0.0
    %934 = vmatprep.subr.mxu0 0.0
    %935 = vmatpush1.msra.mxu0 0.0
    %936 = vmatprep.subr.mxu0 0.0
    %937 = vmatpush1.msra.mxu0 0.0
    %938 = vmatprep.subr.mxu0 0.0
    %939 = vmatpush1.msra.mxu0 0.0
    %940 = vmatprep.subr.mxu0 0.0
    %941 = vmatpush1.msra.mxu0 0.0
    %942 = vmatprep.subr.mxu0 0.0
    %943 = vmatpush1.msra.mxu0 0.0
    %944 = vmatprep.subr.mxu0 0.0
    %945 = vmatpush1.msra.mxu0 0.0
    %946 = vmatprep.subr.mxu0 0.0
    %947 = vmatpush1.msra.mxu0 0.0
    %948 = vmatprep.subr.mxu0 0.0
    %949 = vmatpush1.msra.mxu0 0.0
    %950 = vmatprep.subr.mxu0 0.0
    %951 = vmatpush1.msra.mxu0 0.0
    %952 = vmatprep.subr.mxu0 0.0
    %953 = vmatpush1.msra.mxu0 0.0
    %954 = vmatprep.subr.mxu0 0.0
    %955 = vmatpush1.msra.mxu0 %v298
    %956 = vmatprep.subr.mxu0 0.0
    %957 = vmatpush1.msra.mxu0 %v297
    %958 = vmatprep.subr.mxu0 0.0
    %959 = vmatpush1.msra.mxu0 %v296
    %960 = vmatprep.subr.mxu0 0.0
    %961 = vmatpush1.msra.mxu0 %v295
    %962 = vmatprep.subr.mxu0 0.0
    %963 = vmatpush2.msra.mxu0 0.0
    %964 = vmatprep.subr.mxu0 0.0
    %965 = vmatpush2.msra.mxu0 0.0
    %966 = vmatprep.subr.mxu0 0.0
    %967 = vmatpush2.msra.mxu0 0.0
    %968 = vmatprep.subr.mxu0 0.0
    %969 = vmatpush2.msra.mxu0 0.0
    %970 = vmatprep.subr.mxu0 0.0
    %971 = vmatpush2.msra.mxu0 0.0
    %972 = vmatprep.subr.mxu0 0.0
    %973 = vmatpush2.msra.mxu0 0.0
    %974 = vmatprep.subr.mxu0 0.0
    %975 = vmatpush2.msra.mxu0 0.0
    %976 = vmatprep.subr.mxu0 0.0
    %977 = vmatpush2.msra.mxu0 0.0
    %978 = vmatprep.subr.mxu0 0.0
    %979 = vmatpush2.msra.mxu0 0.0
    %980 = vmatprep.subr.mxu0 0.0
    %981 = vmatpush2.msra.mxu0 0.0
    %982 = vmatprep.subr.mxu0 0.0
    %983 = vmatpush2.msra.mxu0 0.0
    %984 = vmatprep.subr.mxu0 0.0
    %985 = vmatpush2.msra.mxu0 0.0
    %986 = vmatprep.subr.mxu0 0.0
    %987 = vmatpush2.msra.mxu0 0.0
    %988 = vmatprep.subr.mxu0 0.0
    %989 = vmatpush2.msra.mxu0 0.0
    %990 = vmatprep.subr.mxu0 0.0
    %991 = vmatpush2.msra.mxu0 0.0
    %992 = vmatprep.subr.mxu0 0.0
    %993 = vmatpush2.msra.mxu0 0.0
    %994 = vmatprep.mubr.f32.mxu0 0.0
    %995 = vmatmul.mubr.f32.gmra.mxu0 %v928
    %v996 = vpop.f32.mrf.mxu0
    %v997 = vadd.f32 0.0, %v996
    %v998 = vpop.f32.mrf.mxu0
    %999 = vdwg.mxu0
    %v1000 = vadd.f32 %v927, %v997
    %v1001 = vld [vmem:[%s265] sm:$0x3]
    %v1002 = vsel %vm304, %v923, 0
    %1004 = vmatprep.subr.mxu0 0.0
    %1005 = vmatpush1.msra.mxu0 0.0
    %1006 = vmatprep.subr.mxu0 0.0
    %1007 = vmatpush1.msra.mxu0 0.0
    %1008 = vmatprep.subr.mxu0 0.0
    %1009 = vmatpush1.msra.mxu0 0.0
    %1010 = vmatprep.subr.mxu0 0.0
    %1011 = vmatpush1.msra.mxu0 0.0
    %1012 = vmatprep.subr.mxu0 0.0
    %1013 = vmatpush1.msra.mxu0 0.0
    %1014 = vmatprep.subr.mxu0 0.0
    %1015 = vmatpush1.msra.mxu0 0.0
    %1016 = vmatprep.subr.mxu0 0.0
    %1017 = vmatpush1.msra.mxu0 0.0
    %1018 = vmatprep.subr.mxu0 0.0
    %1019 = vmatpush1.msra.mxu0 0.0
    %1020 = vmatprep.subr.mxu0 0.0
    %1021 = vmatpush1.msra.mxu0 0.0
    %1022 = vmatprep.subr.mxu0 0.0
    %1023 = vmatpush1.msra.mxu0 0.0
    %1024 = vmatprep.subr.mxu0 0.0
    %1025 = vmatpush1.msra.mxu0 0.0
    %1026 = vmatprep.subr.mxu0 0.0
    %1027 = vmatpush1.msra.mxu0 0.0
    %1028 = vmatprep.subr.mxu0 0.0
    %1029 = vmatpush1.msra.mxu0 %v302
    %1030 = vmatprep.subr.mxu0 0.0
    %1031 = vmatpush1.msra.mxu0 %v301
    %1032 = vmatprep.subr.mxu0 0.0
    %1033 = vmatpush1.msra.mxu0 %v300
    %1034 = vmatprep.subr.mxu0 0.0
    %1035 = vmatpush1.msra.mxu0 %v299
    %1036 = vmatprep.subr.mxu0 0.0
    %1037 = vmatpush2.msra.mxu0 0.0
    %1038 = vmatprep.subr.mxu0 0.0
    %1039 = vmatpush2.msra.mxu0 0.0
    %1040 = vmatprep.subr.mxu0 0.0
    %1041 = vmatpush2.msra.mxu0 0.0
    %1042 = vmatprep.subr.mxu0 0.0
    %1043 = vmatpush2.msra.mxu0 0.0
    %1044 = vmatprep.subr.mxu0 0.0
    %1045 = vmatpush2.msra.mxu0 0.0
    %1046 = vmatprep.subr.mxu0 0.0
    %1047 = vmatpush2.msra.mxu0 0.0
    %1048 = vmatprep.subr.mxu0 0.0
    %1049 = vmatpush2.msra.mxu0 0.0
    %1050 = vmatprep.subr.mxu0 0.0
    %1051 = vmatpush2.msra.mxu0 0.0
    %1052 = vmatprep.subr.mxu0 0.0
    %1053 = vmatpush2.msra.mxu0 0.0
    %1054 = vmatprep.subr.mxu0 0.0
    %1055 = vmatpush2.msra.mxu0 0.0
    %1056 = vmatprep.subr.mxu0 0.0
    %1057 = vmatpush2.msra.mxu0 0.0
    %1058 = vmatprep.subr.mxu0 0.0
    %1059 = vmatpush2.msra.mxu0 0.0
    %1060 = vmatprep.subr.mxu0 0.0
    %1061 = vmatpush2.msra.mxu0 0.0
    %1062 = vmatprep.subr.mxu0 0.0
    %1063 = vmatpush2.msra.mxu0 0.0
    %1064 = vmatprep.subr.mxu0 0.0
    %1065 = vmatpush2.msra.mxu0 0.0
    %1066 = vmatprep.subr.mxu0 0.0
    %1067 = vmatpush2.msra.mxu0 0.0
    %1068 = vmatprep.mubr.f32.mxu0 0.0
    %1069 = vmatmul.mubr.f32.gmra.mxu0 %v1002
    %v1070 = vpop.f32.mrf.mxu0
    %v1071 = vadd.f32 0.0, %v1070
    %v1072 = vpop.f32.mrf.mxu0
    %1073 = vdwg.mxu0
    %v1074 = vadd.f32 %v1001, %v1071
    %v1075 = vxor.u32 %v1000, 2147483648
    %v1076 = vmul.f32 %v1075, 1.442695
    %v1077 = vpow.pop %v1076
    %v1078 = vadd.f32 %v1077, 1.0
    %v1079 = vrcp.pop %v1078
    %v1080 = vmul.f32 1.0, %v1079
    %v1081 = vtanh.pop %v1000
    %v1082 = vmul.f32 %v1080, %v884
    %1084 = vrot.lane.b32.xlu0 %v1081, 64
    %v1085 = vpop.permute.xlu0 %1084
    %v1087 = vmul.f32 %v1080, %v1085
    %1089 = vrot.lane.b32.xlu0 %v1087, 32
    %v1090 = vpop.permute.xlu0 %1089
    %v1092 = vadd.f32 %v1082, %v1090
    %v1093 = vtanh.pop %v1092
    %1095 = vrot.lane.b32.xlu0 %v1093, 64
    %v1096 = vpop.permute.xlu0 %1095
    %v1098 = vmul.f32 %v1080, %v1096
    %v1099 = vxor.u32 %v1074, 2147483648
    %v1100 = vmul.f32 %v1099, 1.442695
    %v1101 = vpow.pop %v1100
    %v1102 = vadd.f32 %v1101, 1.0
    %v1103 = vrcp.pop %v1102
    %v1104 = vmul.f32 1.0, %v1103
    %v1105 = vtanh.pop %v1074
    %v1106 = vmul.f32 %v1104, %v908
    %1108 = vrot.lane.b32.xlu0 %v1105, 64
    %v1109 = vpop.permute.xlu0 %1108
    %v1111 = vmul.f32 %v1104, %v1109
    %1113 = vrot.lane.b32.xlu0 %v1111, 32
    %v1114 = vpop.permute.xlu0 %1113
    %v1116 = vadd.f32 %v1106, %v1114
    %v1117 = vtanh.pop %v1116
    %1119 = vrot.lane.b32.xlu0 %v1117, 64
    %v1120 = vpop.permute.xlu0 %1119
    %v1122 = vmul.f32 %v1104, %v1120
    %1124 = vrot.lane.b32.xlu0 %v1098, 32
    %v1125 = vpop.permute.xlu0 %1124
    %s1127 = scalar_lea.vmem [#allocation4], 6
    %1128 = vst.msk [vmem:[%s1127] sm:$0x3] %vm503, %v1125
    %1130 = vrot.lane.b32.xlu0 %v1122, 32
    %v1131 = vpop.permute.xlu0 %1130
    %s1133 = scalar_lea.vmem [#allocation5], 8
    %1134 = vst.msk [vmem:[%s1133] sm:$0x3] %vm503, %v1131
    %v1135 = vld [vmem:[%s261] sm:$0x3]
    %v1136 = vsel %vm304, %v1125, 0
    %1138 = vmatprep.subr.mxu0 0.0
    %1139 = vmatpush1.msra.mxu0 0.0
    %1140 = vmatprep.subr.mxu0 0.0
    %1141 = vmatpush1.msra.mxu0 0.0
    %1142 = vmatprep.subr.mxu0 0.0
    %1143 = vmatpush1.msra.mxu0 0.0
    %1144 = vmatprep.subr.mxu0 0.0
    %1145 = vmatpush1.msra.mxu0 0.0
    %1146 = vmatprep.subr.mxu0 0.0
    %1147 = vmatpush1.msra.mxu0 0.0
    %1148 = vmatprep.subr.mxu0 0.0
    %1149 = vmatpush1.msra.mxu0 0.0
    %1150 = vmatprep.subr.mxu0 0.0
    %1151 = vmatpush1.msra.mxu0 0.0
    %1152 = vmatprep.subr.mxu0 0.0
    %1153 = vmatpush1.msra.mxu0 0.0
    %1154 = vmatprep.subr.mxu0 0.0
    %1155 = vmatpush1.msra.mxu0 0.0
    %1156 = vmatprep.subr.mxu0 0.0
    %1157 = vmatpush1.msra.mxu0 0.0
    %1158 = vmatprep.subr.mxu0 0.0
    %1159 = vmatpush1.msra.mxu0 0.0
    %1160 = vmatprep.subr.mxu0 0.0
    %1161 = vmatpush1.msra.mxu0 0.0
    %1162 = vmatprep.subr.mxu0 0.0
    %1163 = vmatpush1.msra.mxu0 %v298
    %1164 = vmatprep.subr.mxu0 0.0
    %1165 = vmatpush1.msra.mxu0 %v297
    %1166 = vmatprep.subr.mxu0 0.0
    %1167 = vmatpush1.msra.mxu0 %v296
    %1168 = vmatprep.subr.mxu0 0.0
    %1169 = vmatpush1.msra.mxu0 %v295
    %1170 = vmatprep.subr.mxu0 0.0
    %1171 = vmatpush2.msra.mxu0 0.0
    %1172 = vmatprep.subr.mxu0 0.0
    %1173 = vmatpush2.msra.mxu0 0.0
    %1174 = vmatprep.subr.mxu0 0.0
    %1175 = vmatpush2.msra.mxu0 0.0
    %1176 = vmatprep.subr.mxu0 0.0
    %1177 = vmatpush2.msra.mxu0 0.0
    %1178 = vmatprep.subr.mxu0 0.0
    %1179 = vmatpush2.msra.mxu0 0.0
    %1180 = vmatprep.subr.mxu0 0.0
    %1181 = vmatpush2.msra.mxu0 0.0
    %1182 = vmatprep.subr.mxu0 0.0
    %1183 = vmatpush2.msra.mxu0 0.0
    %1184 = vmatprep.subr.mxu0 0.0
    %1185 = vmatpush2.msra.mxu0 0.0
    %1186 = vmatprep.subr.mxu0 0.0
    %1187 = vmatpush2.msra.mxu0 0.0
    %1188 = vmatprep.subr.mxu0 0.0
    %1189 = vmatpush2.msra.mxu0 0.0
    %1190 = vmatprep.subr.mxu0 0.0
    %1191 = vmatpush2.msra.mxu0 0.0
    %1192 = vmatprep.subr.mxu0 0.0
    %1193 = vmatpush2.msra.mxu0 0.0
    %1194 = vmatprep.subr.mxu0 0.0
    %1195 = vmatpush2.msra.mxu0 0.0
    %1196 = vmatprep.subr.mxu0 0.0
    %1197 = vmatpush2.msra.mxu0 0.0
    %1198 = vmatprep.subr.mxu0 0.0
    %1199 = vmatpush2.msra.mxu0 0.0
    %1200 = vmatprep.subr.mxu0 0.0
    %1201 = vmatpush2.msra.mxu0 0.0
    %1202 = vmatprep.mubr.f32.mxu0 0.0
    %1203 = vmatmul.mubr.f32.gmra.mxu0 %v1136
    %v1204 = vpop.f32.mrf.mxu0
    %v1205 = vadd.f32 0.0, %v1204
    %v1206 = vpop.f32.mrf.mxu0
    %1207 = vdwg.mxu0
    %v1208 = vadd.f32 %v1135, %v1205
    %v1209 = vld [vmem:[%s256] sm:$0x3]
    %v1210 = vsel %vm304, %v1131, 0
    %1212 = vmatprep.subr.mxu0 0.0
    %1213 = vmatpush1.msra.mxu0 0.0
    %1214 = vmatprep.subr.mxu0 0.0
    %1215 = vmatpush1.msra.mxu0 0.0
    %1216 = vmatprep.subr.mxu0 0.0
    %1217 = vmatpush1.msra.mxu0 0.0
    %1218 = vmatprep.subr.mxu0 0.0
    %1219 = vmatpush1.msra.mxu0 0.0
    %1220 = vmatprep.subr.mxu0 0.0
    %1221 = vmatpush1.msra.mxu0 0.0
    %1222 = vmatprep.subr.mxu0 0.0
    %1223 = vmatpush1.msra.mxu0 0.0
    %1224 = vmatprep.subr.mxu0 0.0
    %1225 = vmatpush1.msra.mxu0 0.0
    %1226 = vmatprep.subr.mxu0 0.0
    %1227 = vmatpush1.msra.mxu0 0.0
    %1228 = vmatprep.subr.mxu0 0.0
    %1229 = vmatpush1.msra.mxu0 0.0
    %1230 = vmatprep.subr.mxu0 0.0
    %1231 = vmatpush1.msra.mxu0 0.0
    %1232 = vmatprep.subr.mxu0 0.0
    %1233 = vmatpush1.msra.mxu0 0.0
    %1234 = vmatprep.subr.mxu0 0.0
    %1235 = vmatpush1.msra.mxu0 0.0
    %1236 = vmatprep.subr.mxu0 0.0
    %1237 = vmatpush1.msra.mxu0 %v302
    %1238 = vmatprep.subr.mxu0 0.0
    %1239 = vmatpush1.msra.mxu0 %v301
    %1240 = vmatprep.subr.mxu0 0.0
    %1241 = vmatpush1.msra.mxu0 %v300
    %1242 = vmatprep.subr.mxu0 0.0
    %1243 = vmatpush1.msra.mxu0 %v299
    %1244 = vmatprep.subr.mxu0 0.0
    %1245 = vmatpush2.msra.mxu0 0.0
    %1246 = vmatprep.subr.mxu0 0.0
    %1247 = vmatpush2.msra.mxu0 0.0
    %1248 = vmatprep.subr.mxu0 0.0
    %1249 = vmatpush2.msra.mxu0 0.0
    %1250 = vmatprep.subr.mxu0 0.0
    %1251 = vmatpush2.msra.mxu0 0.0
    %1252 = vmatprep.subr.mxu0 0.0
    %1253 = vmatpush2.msra.mxu0 0.0
    %1254 = vmatprep.subr.mxu0 0.0
    %1255 = vmatpush2.msra.mxu0 0.0
    %1256 = vmatprep.subr.mxu0 0.0
    %1257 = vmatpush2.msra.mxu0 0.0
    %1258 = vmatprep.subr.mxu0 0.0
    %1259 = vmatpush2.msra.mxu0 0.0
    %1260 = vmatprep.subr.mxu0 0.0
    %1261 = vmatpush2.msra.mxu0 0.0
    %1262 = vmatprep.subr.mxu0 0.0
    %1263 = vmatpush2.msra.mxu0 0.0
    %1264 = vmatprep.subr.mxu0 0.0
    %1265 = vmatpush2.msra.mxu0 0.0
    %1266 = vmatprep.subr.mxu0 0.0
    %1267 = vmatpush2.msra.mxu0 0.0
    %1268 = vmatprep.subr.mxu0 0.0
    %1269 = vmatpush2.msra.mxu0 0.0
    %1270 = vmatprep.subr.mxu0 0.0
    %1271 = vmatpush2.msra.mxu0 0.0
    %1272 = vmatprep.subr.mxu0 0.0
    %1273 = vmatpush2.msra.mxu0 0.0
    %1274 = vmatprep.subr.mxu0 0.0
    %1275 = vmatpush2.msra.mxu0 0.0
    %1276 = vmatprep.mubr.f32.mxu0 0.0
    %1277 = vmatmul.mubr.f32.gmra.mxu0 %v1210
    %v1278 = vpop.f32.mrf.mxu0
    %v1279 = vadd.f32 0.0, %v1278
    %v1280 = vpop.f32.mrf.mxu0
    %1281 = vdwg.mxu0
    %v1282 = vadd.f32 %v1209, %v1279
    %v1283 = vxor.u32 %v1208, 2147483648
    %v1284 = vmul.f32 %v1283, 1.442695
    %v1285 = vpow.pop %v1284
    %v1286 = vadd.f32 %v1285, 1.0
    %v1287 = vrcp.pop %v1286
    %v1288 = vmul.f32 1.0, %v1287
    %v1289 = vtanh.pop %v1208
    %v1290 = vmul.f32 %v1288, %v1092
    %1292 = vrot.lane.b32.xlu0 %v1289, 64
    %v1293 = vpop.permute.xlu0 %1292
    %v1295 = vmul.f32 %v1288, %v1293
    %1297 = vrot.lane.b32.xlu0 %v1295, 32
    %v1298 = vpop.permute.xlu0 %1297
    %v1300 = vadd.f32 %v1290, %v1298
    %v1301 = vtanh.pop %v1300
    %1303 = vrot.lane.b32.xlu0 %v1301, 64
    %v1304 = vpop.permute.xlu0 %1303
    %v1306 = vmul.f32 %v1288, %v1304
    %v1307 = vxor.u32 %v1282, 2147483648
    %v1308 = vmul.f32 %v1307, 1.442695
    %v1309 = vpow.pop %v1308
    %v1310 = vadd.f32 %v1309, 1.0
    %v1311 = vrcp.pop %v1310
    %v1312 = vmul.f32 1.0, %v1311
    %v1313 = vtanh.pop %v1282
    %v1314 = vmul.f32 %v1312, %v1116
    %1316 = vrot.lane.b32.xlu0 %v1313, 64
    %v1317 = vpop.permute.xlu0 %1316
    %v1319 = vmul.f32 %v1312, %v1317
    %1321 = vrot.lane.b32.xlu0 %v1319, 32
    %v1322 = vpop.permute.xlu0 %1321
    %v1324 = vadd.f32 %v1314, %v1322
    %v1325 = vtanh.pop %v1324
    %1327 = vrot.lane.b32.xlu0 %v1325, 64
    %v1328 = vpop.permute.xlu0 %1327
    %v1330 = vmul.f32 %v1312, %v1328
    %1332 = vrot.lane.b32.xlu0 %v1306, 32
    %v1333 = vpop.permute.xlu0 %1332
    %s1335 = scalar_lea.vmem [#allocation4], 8
    %1336 = vst.msk [vmem:[%s1335] sm:$0x3] %vm503, %v1333
    %1338 = vrot.lane.b32.xlu0 %v1330, 32
    %v1339 = vpop.permute.xlu0 %1338
    %s1341 = scalar_lea.vmem [#allocation5], 6
    %1342 = vst.msk [vmem:[%s1341] sm:$0x3] %vm503, %v1339
    %v1343 = vld [vmem:[%s270] sm:$0x3]
    %v1344 = vsel %vm304, %v1333, 0
    %1346 = vmatprep.subr.mxu0 0.0
    %1347 = vmatpush1.msra.mxu0 0.0
    %1348 = vmatprep.subr.mxu0 0.0
    %1349 = vmatpush1.msra.mxu0 0.0
    %1350 = vmatprep.subr.mxu0 0.0
    %1351 = vmatpush1.msra.mxu0 0.0
    %1352 = vmatprep.subr.mxu0 0.0
    %1353 = vmatpush1.msra.mxu0 0.0
    %1354 = vmatprep.subr.mxu0 0.0
    %1355 = vmatpush1.msra.mxu0 0.0
    %1356 = vmatprep.subr.mxu0 0.0
    %1357 = vmatpush1.msra.mxu0 0.0
    %1358 = vmatprep.subr.mxu0 0.0
    %1359 = vmatpush1.msra.mxu0 0.0
    %1360 = vmatprep.subr.mxu0 0.0
    %1361 = vmatpush1.msra.mxu0 0.0
    %1362 = vmatprep.subr.mxu0 0.0
    %1363 = vmatpush1.msra.mxu0 0.0
    %1364 = vmatprep.subr.mxu0 0.0
    %1365 = vmatpush1.msra.mxu0 0.0
    %1366 = vmatprep.subr.mxu0 0.0
    %1367 = vmatpush1.msra.mxu0 0.0
    %1368 = vmatprep.subr.mxu0 0.0
    %1369 = vmatpush1.msra.mxu0 0.0
    %1370 = vmatprep.subr.mxu0 0.0
    %1371 = vmatpush1.msra.mxu0 %v298
    %1372 = vmatprep.subr.mxu0 0.0
    %1373 = vmatpush1.msra.mxu0 %v297
    %1374 = vmatprep.subr.mxu0 0.0
    %1375 = vmatpush1.msra.mxu0 %v296
    %1376 = vmatprep.subr.mxu0 0.0
    %1377 = vmatpush1.msra.mxu0 %v295
    %1378 = vmatprep.subr.mxu0 0.0
    %1379 = vmatpush2.msra.mxu0 0.0
    %1380 = vmatprep.subr.mxu0 0.0
    %1381 = vmatpush2.msra.mxu0 0.0
    %1382 = vmatprep.subr.mxu0 0.0
    %1383 = vmatpush2.msra.mxu0 0.0
    %1384 = vmatprep.subr.mxu0 0.0
    %1385 = vmatpush2.msra.mxu0 0.0
    %1386 = vmatprep.subr.mxu0 0.0
    %1387 = vmatpush2.msra.mxu0 0.0
    %1388 = vmatprep.subr.mxu0 0.0
    %1389 = vmatpush2.msra.mxu0 0.0
    %1390 = vmatprep.subr.mxu0 0.0
    %1391 = vmatpush2.msra.mxu0 0.0
    %1392 = vmatprep.subr.mxu0 0.0
    %1393 = vmatpush2.msra.mxu0 0.0
    %1394 = vmatprep.subr.mxu0 0.0
    %1395 = vmatpush2.msra.mxu0 0.0
    %1396 = vmatprep.subr.mxu0 0.0
    %1397 = vmatpush2.msra.mxu0 0.0
    %1398 = vmatprep.subr.mxu0 0.0
    %1399 = vmatpush2.msra.mxu0 0.0
    %1400 = vmatprep.subr.mxu0 0.0
    %1401 = vmatpush2.msra.mxu0 0.0
    %1402 = vmatprep.subr.mxu0 0.0
    %1403 = vmatpush2.msra.mxu0 0.0
    %1404 = vmatprep.subr.mxu0 0.0
    %1405 = vmatpush2.msra.mxu0 0.0
    %1406 = vmatprep.subr.mxu0 0.0
    %1407 = vmatpush2.msra.mxu0 0.0
    %1408 = vmatprep.subr.mxu0 0.0
    %1409 = vmatpush2.msra.mxu0 0.0
    %1410 = vmatprep.mubr.f32.mxu0 0.0
    %1411 = vmatmul.mubr.f32.gmra.mxu0 %v1344
    %v1412 = vpop.f32.mrf.mxu0
    %v1413 = vadd.f32 0.0, %v1412
    %v1414 = vpop.f32.mrf.mxu0
    %1415 = vdwg.mxu0
    %v1416 = vadd.f32 %v1343, %v1413
    %v1417 = vld [vmem:[%s247] sm:$0x3]
    %v1418 = vsel %vm304, %v1339, 0
    %1420 = vmatprep.subr.mxu0 0.0
    %1421 = vmatpush1.msra.mxu0 0.0
    %1422 = vmatprep.subr.mxu0 0.0
    %1423 = vmatpush1.msra.mxu0 0.0
    %1424 = vmatprep.subr.mxu0 0.0
    %1425 = vmatpush1.msra.mxu0 0.0
    %1426 = vmatprep.subr.mxu0 0.0
    %1427 = vmatpush1.msra.mxu0 0.0
    %1428 = vmatprep.subr.mxu0 0.0
    %1429 = vmatpush1.msra.mxu0 0.0
    %1430 = vmatprep.subr.mxu0 0.0
    %1431 = vmatpush1.msra.mxu0 0.0
    %1432 = vmatprep.subr.mxu0 0.0
    %1433 = vmatpush1.msra.mxu0 0.0
    %1434 = vmatprep.subr.mxu0 0.0
    %1435 = vmatpush1.msra.mxu0 0.0
    %1436 = vmatprep.subr.mxu0 0.0
    %1437 = vmatpush1.msra.mxu0 0.0
    %1438 = vmatprep.subr.mxu0 0.0
    %1439 = vmatpush1.msra.mxu0 0.0
    %1440 = vmatprep.subr.mxu0 0.0
    %1441 = vmatpush1.msra.mxu0 0.0
    %1442 = vmatprep.subr.mxu0 0.0
    %1443 = vmatpush1.msra.mxu0 0.0
    %1444 = vmatprep.subr.mxu0 0.0
    %1445 = vmatpush1.msra.mxu0 %v302
    %1446 = vmatprep.subr.mxu0 0.0
    %1447 = vmatpush1.msra.mxu0 %v301
    %1448 = vmatprep.subr.mxu0 0.0
    %1449 = vmatpush1.msra.mxu0 %v300
    %1450 = vmatprep.subr.mxu0 0.0
    %1451 = vmatpush1.msra.mxu0 %v299
    %1452 = vmatprep.subr.mxu0 0.0
    %1453 = vmatpush2.msra.mxu0 0.0
    %1454 = vmatprep.subr.mxu0 0.0
    %1455 = vmatpush2.msra.mxu0 0.0
    %1456 = vmatprep.subr.mxu0 0.0
    %1457 = vmatpush2.msra.mxu0 0.0
    %1458 = vmatprep.subr.mxu0 0.0
    %1459 = vmatpush2.msra.mxu0 0.0
    %1460 = vmatprep.subr.mxu0 0.0
    %1461 = vmatpush2.msra.mxu0 0.0
    %1462 = vmatprep.subr.mxu0 0.0
    %1463 = vmatpush2.msra.mxu0 0.0
    %1464 = vmatprep.subr.mxu0 0.0
    %1465 = vmatpush2.msra.mxu0 0.0
    %1466 = vmatprep.subr.mxu0 0.0
    %1467 = vmatpush2.msra.mxu0 0.0
    %1468 = vmatprep.subr.mxu0 0.0
    %1469 = vmatpush2.msra.mxu0 0.0
    %1470 = vmatprep.subr.mxu0 0.0
    %1471 = vmatpush2.msra.mxu0 0.0
    %1472 = vmatprep.subr.mxu0 0.0
    %1473 = vmatpush2.msra.mxu0 0.0
    %1474 = vmatprep.subr.mxu0 0.0
    %1475 = vmatpush2.msra.mxu0 0.0
    %1476 = vmatprep.subr.mxu0 0.0
    %1477 = vmatpush2.msra.mxu0 0.0
    %1478 = vmatprep.subr.mxu0 0.0
    %1479 = vmatpush2.msra.mxu0 0.0
    %1480 = vmatprep.subr.mxu0 0.0
    %1481 = vmatpush2.msra.mxu0 0.0
    %1482 = vmatprep.subr.mxu0 0.0
    %1483 = vmatpush2.msra.mxu0 0.0
    %1484 = vmatprep.mubr.f32.mxu0 0.0
    %1485 = vmatmul.mubr.f32.gmra.mxu0 %v1418
    %v1486 = vpop.f32.mrf.mxu0
    %v1487 = vadd.f32 0.0, %v1486
    %v1488 = vpop.f32.mrf.mxu0
    %1489 = vdwg.mxu0
    %v1490 = vadd.f32 %v1417, %v1487
    %v1491 = vxor.u32 %v1416, 2147483648
    %v1492 = vmul.f32 %v1491, 1.442695
    %v1493 = vpow.pop %v1492
    %v1494 = vadd.f32 %v1493, 1.0
    %v1495 = vrcp.pop %v1494
    %v1496 = vmul.f32 1.0, %v1495
    %v1497 = vtanh.pop %v1416
    %v1498 = vmul.f32 %v1496, %v1300
    %1500 = vrot.lane.b32.xlu0 %v1497, 64
    %v1501 = vpop.permute.xlu0 %1500
    %v1503 = vmul.f32 %v1496, %v1501
    %1505 = vrot.lane.b32.xlu0 %v1503, 32
    %v1506 = vpop.permute.xlu0 %1505
    %v1508 = vadd.f32 %v1498, %v1506
    %v1509 = vtanh.pop %v1508
    %1511 = vrot.lane.b32.xlu0 %v1509, 64
    %v1512 = vpop.permute.xlu0 %1511
    %v1514 = vmul.f32 %v1496, %v1512
    %v1515 = vxor.u32 %v1490, 2147483648
    %v1516 = vmul.f32 %v1515, 1.442695
    %v1517 = vpow.pop %v1516
    %v1518 = vadd.f32 %v1517, 1.0
    %v1519 = vrcp.pop %v1518
    %v1520 = vmul.f32 1.0, %v1519
    %v1521 = vtanh.pop %v1490
    %v1522 = vmul.f32 %v1520, %v1324
    %1524 = vrot.lane.b32.xlu0 %v1521, 64
    %v1525 = vpop.permute.xlu0 %1524
    %v1527 = vmul.f32 %v1520, %v1525
    %1529 = vrot.lane.b32.xlu0 %v1527, 32
    %v1530 = vpop.permute.xlu0 %1529
    %v1532 = vadd.f32 %v1522, %v1530
    %v1533 = vtanh.pop %v1532
    %1535 = vrot.lane.b32.xlu0 %v1533, 64
    %v1536 = vpop.permute.xlu0 %1535
    %v1538 = vmul.f32 %v1520, %v1536
    %1540 = vrot.lane.b32.xlu0 %v1514, 32
    %v1541 = vpop.permute.xlu0 %1540
    %s1543 = scalar_lea.vmem [#allocation4], 10
    %1544 = vst.msk [vmem:[%s1543] sm:$0x3] %vm503, %v1541
    %1546 = vrot.lane.b32.xlu0 %v1538, 32
    %v1547 = vpop.permute.xlu0 %1546
    %s1549 = scalar_lea.vmem [#allocation5], 4
    %1550 = vst.msk [vmem:[%s1549] sm:$0x3] %vm503, %v1547
    %v1551 = vld [vmem:[%s279] sm:$0x3]
    %v1552 = vsel %vm304, %v1541, 0
    %1554 = vmatprep.subr.mxu0 0.0
    %1555 = vmatpush1.msra.mxu0 0.0
    %1556 = vmatprep.subr.mxu0 0.0
    %1557 = vmatpush1.msra.mxu0 0.0
    %1558 = vmatprep.subr.mxu0 0.0
    %1559 = vmatpush1.msra.mxu0 0.0
    %1560 = vmatprep.subr.mxu0 0.0
    %1561 = vmatpush1.msra.mxu0 0.0
    %1562 = vmatprep.subr.mxu0 0.0
    %1563 = vmatpush1.msra.mxu0 0.0
    %1564 = vmatprep.subr.mxu0 0.0
    %1565 = vmatpush1.msra.mxu0 0.0
    %1566 = vmatprep.subr.mxu0 0.0
    %1567 = vmatpush1.msra.mxu0 0.0
    %1568 = vmatprep.subr.mxu0 0.0
    %1569 = vmatpush1.msra.mxu0 0.0
    %1570 = vmatprep.subr.mxu0 0.0
    %1571 = vmatpush1.msra.mxu0 0.0
    %1572 = vmatprep.subr.mxu0 0.0
    %1573 = vmatpush1.msra.mxu0 0.0
    %1574 = vmatprep.subr.mxu0 0.0
    %1575 = vmatpush1.msra.mxu0 0.0
    %1576 = vmatprep.subr.mxu0 0.0
    %1577 = vmatpush1.msra.mxu0 0.0
    %1578 = vmatprep.subr.mxu0 0.0
    %1579 = vmatpush1.msra.mxu0 %v298
    %1580 = vmatprep.subr.mxu0 0.0
    %1581 = vmatpush1.msra.mxu0 %v297
    %1582 = vmatprep.subr.mxu0 0.0
    %1583 = vmatpush1.msra.mxu0 %v296
    %1584 = vmatprep.subr.mxu0 0.0
    %1585 = vmatpush1.msra.mxu0 %v295
    %1586 = vmatprep.subr.mxu0 0.0
    %1587 = vmatpush2.msra.mxu0 0.0
    %1588 = vmatprep.subr.mxu0 0.0
    %1589 = vmatpush2.msra.mxu0 0.0
    %1590 = vmatprep.subr.mxu0 0.0
    %1591 = vmatpush2.msra.mxu0 0.0
    %1592 = vmatprep.subr.mxu0 0.0
    %1593 = vmatpush2.msra.mxu0 0.0
    %1594 = vmatprep.subr.mxu0 0.0
    %1595 = vmatpush2.msra.mxu0 0.0
    %1596 = vmatprep.subr.mxu0 0.0
    %1597 = vmatpush2.msra.mxu0 0.0
    %1598 = vmatprep.subr.mxu0 0.0
    %1599 = vmatpush2.msra.mxu0 0.0
    %1600 = vmatprep.subr.mxu0 0.0
    %1601 = vmatpush2.msra.mxu0 0.0
    %1602 = vmatprep.subr.mxu0 0.0
    %1603 = vmatpush2.msra.mxu0 0.0
    %1604 = vmatprep.subr.mxu0 0.0
    %1605 = vmatpush2.msra.mxu0 0.0
    %1606 = vmatprep.subr.mxu0 0.0
    %1607 = vmatpush2.msra.mxu0 0.0
    %1608 = vmatprep.subr.mxu0 0.0
    %1609 = vmatpush2.msra.mxu0 0.0
    %1610 = vmatprep.subr.mxu0 0.0
    %1611 = vmatpush2.msra.mxu0 0.0
    %1612 = vmatprep.subr.mxu0 0.0
    %1613 = vmatpush2.msra.mxu0 0.0
    %1614 = vmatprep.subr.mxu0 0.0
    %1615 = vmatpush2.msra.mxu0 0.0
    %1616 = vmatprep.subr.mxu0 0.0
    %1617 = vmatpush2.msra.mxu0 0.0
    %1618 = vmatprep.mubr.f32.mxu0 0.0
    %1619 = vmatmul.mubr.f32.gmra.mxu0 %v1552
    %v1620 = vpop.f32.mrf.mxu0
    %v1621 = vadd.f32 0.0, %v1620
    %v1622 = vpop.f32.mrf.mxu0
    %1623 = vdwg.mxu0
    %v1624 = vadd.f32 %v1551, %v1621
    %v1625 = vld [vmem:[%s238] sm:$0x3]
    %v1626 = vsel %vm304, %v1547, 0
    %1628 = vmatprep.subr.mxu0 0.0
    %1629 = vmatpush1.msra.mxu0 0.0
    %1630 = vmatprep.subr.mxu0 0.0
    %1631 = vmatpush1.msra.mxu0 0.0
    %1632 = vmatprep.subr.mxu0 0.0
    %1633 = vmatpush1.msra.mxu0 0.0
    %1634 = vmatprep.subr.mxu0 0.0
    %1635 = vmatpush1.msra.mxu0 0.0
    %1636 = vmatprep.subr.mxu0 0.0
    %1637 = vmatpush1.msra.mxu0 0.0
    %1638 = vmatprep.subr.mxu0 0.0
    %1639 = vmatpush1.msra.mxu0 0.0
    %1640 = vmatprep.subr.mxu0 0.0
    %1641 = vmatpush1.msra.mxu0 0.0
    %1642 = vmatprep.subr.mxu0 0.0
    %1643 = vmatpush1.msra.mxu0 0.0
    %1644 = vmatprep.subr.mxu0 0.0
    %1645 = vmatpush1.msra.mxu0 0.0
    %1646 = vmatprep.subr.mxu0 0.0
    %1647 = vmatpush1.msra.mxu0 0.0
    %1648 = vmatprep.subr.mxu0 0.0
    %1649 = vmatpush1.msra.mxu0 0.0
    %1650 = vmatprep.subr.mxu0 0.0
    %1651 = vmatpush1.msra.mxu0 0.0
    %1652 = vmatprep.subr.mxu0 0.0
    %1653 = vmatpush1.msra.mxu0 %v302
    %1654 = vmatprep.subr.mxu0 0.0
    %1655 = vmatpush1.msra.mxu0 %v301
    %1656 = vmatprep.subr.mxu0 0.0
    %1657 = vmatpush1.msra.mxu0 %v300
    %1658 = vmatprep.subr.mxu0 0.0
    %1659 = vmatpush1.msra.mxu0 %v299
    %1660 = vmatprep.subr.mxu0 0.0
    %1661 = vmatpush2.msra.mxu0 0.0
    %1662 = vmatprep.subr.mxu0 0.0
    %1663 = vmatpush2.msra.mxu0 0.0
    %1664 = vmatprep.subr.mxu0 0.0
    %1665 = vmatpush2.msra.mxu0 0.0
    %1666 = vmatprep.subr.mxu0 0.0
    %1667 = vmatpush2.msra.mxu0 0.0
    %1668 = vmatprep.subr.mxu0 0.0
    %1669 = vmatpush2.msra.mxu0 0.0
    %1670 = vmatprep.subr.mxu0 0.0
    %1671 = vmatpush2.msra.mxu0 0.0
    %1672 = vmatprep.subr.mxu0 0.0
    %1673 = vmatpush2.msra.mxu0 0.0
    %1674 = vmatprep.subr.mxu0 0.0
    %1675 = vmatpush2.msra.mxu0 0.0
    %1676 = vmatprep.subr.mxu0 0.0
    %1677 = vmatpush2.msra.mxu0 0.0
    %1678 = vmatprep.subr.mxu0 0.0
    %1679 = vmatpush2.msra.mxu0 0.0
    %1680 = vmatprep.subr.mxu0 0.0
    %1681 = vmatpush2.msra.mxu0 0.0
    %1682 = vmatprep.subr.mxu0 0.0
    %1683 = vmatpush2.msra.mxu0 0.0
    %1684 = vmatprep.subr.mxu0 0.0
    %1685 = vmatpush2.msra.mxu0 0.0
    %1686 = vmatprep.subr.mxu0 0.0
    %1687 = vmatpush2.msra.mxu0 0.0
    %1688 = vmatprep.subr.mxu0 0.0
    %1689 = vmatpush2.msra.mxu0 0.0
    %1690 = vmatprep.subr.mxu0 0.0
    %1691 = vmatpush2.msra.mxu0 0.0
    %1692 = vmatprep.mubr.f32.mxu0 0.0
    %1693 = vmatmul.mubr.f32.gmra.mxu0 %v1626
    %v1694 = vpop.f32.mrf.mxu0
    %v1695 = vadd.f32 0.0, %v1694
    %v1696 = vpop.f32.mrf.mxu0
    %1697 = vdwg.mxu0
    %v1698 = vadd.f32 %v1625, %v1695
    %v1699 = vxor.u32 %v1624, 2147483648
    %v1700 = vmul.f32 %v1699, 1.442695
    %v1701 = vpow.pop %v1700
    %v1702 = vadd.f32 %v1701, 1.0
    %v1703 = vrcp.pop %v1702
    %v1704 = vmul.f32 1.0, %v1703
    %v1705 = vtanh.pop %v1624
    %v1706 = vmul.f32 %v1704, %v1508
    %1708 = vrot.lane.b32.xlu0 %v1705, 64
    %v1709 = vpop.permute.xlu0 %1708
    %v1711 = vmul.f32 %v1704, %v1709
    %1713 = vrot.lane.b32.xlu0 %v1711, 32
    %v1714 = vpop.permute.xlu0 %1713
    %v1716 = vadd.f32 %v1706, %v1714
    %v1717 = vtanh.pop %v1716
    %1719 = vrot.lane.b32.xlu0 %v1717, 64
    %v1720 = vpop.permute.xlu0 %1719
    %v1722 = vmul.f32 %v1704, %v1720
    %v1723 = vxor.u32 %v1698, 2147483648
    %v1724 = vmul.f32 %v1723, 1.442695
    %v1725 = vpow.pop %v1724
    %v1726 = vadd.f32 %v1725, 1.0
    %v1727 = vrcp.pop %v1726
    %v1728 = vmul.f32 1.0, %v1727
    %v1729 = vtanh.pop %v1698
    %v1730 = vmul.f32 %v1728, %v1532
    %1732 = vrot.lane.b32.xlu0 %v1729, 64
    %v1733 = vpop.permute.xlu0 %1732
    %v1735 = vmul.f32 %v1728, %v1733
    %1737 = vrot.lane.b32.xlu0 %v1735, 32
    %v1738 = vpop.permute.xlu0 %1737
    %v1740 = vadd.f32 %v1730, %v1738
    %v1741 = vtanh.pop %v1740
    %1743 = vrot.lane.b32.xlu0 %v1741, 64
    %v1744 = vpop.permute.xlu0 %1743
    %v1746 = vmul.f32 %v1728, %v1744
    %1748 = vrot.lane.b32.xlu0 %v1722, 32
    %v1749 = vpop.permute.xlu0 %1748
    %s1751 = scalar_lea.vmem [#allocation4], 12
    %1752 = vst.msk [vmem:[%s1751] sm:$0x3] %vm503, %v1749
    %1754 = vrot.lane.b32.xlu0 %v1746, 32
    %v1755 = vpop.permute.xlu0 %1754
    %s1757 = scalar_lea.vmem [#allocation5], 2
    %1758 = vst.msk [vmem:[%s1757] sm:$0x3] %vm503, %v1755
    %v1759 = vld [vmem:[%s287] sm:$0x3]
    %v1760 = vsel %vm304, %v1749, 0
    %1762 = vmatprep.subr.mxu0 0.0
    %1763 = vmatpush1.msra.mxu0 0.0
    %1764 = vmatprep.subr.mxu0 0.0
    %1765 = vmatpush1.msra.mxu0 0.0
    %1766 = vmatprep.subr.mxu0 0.0
    %1767 = vmatpush1.msra.mxu0 0.0
    %1768 = vmatprep.subr.mxu0 0.0
    %1769 = vmatpush1.msra.mxu0 0.0
    %1770 = vmatprep.subr.mxu0 0.0
    %1771 = vmatpush1.msra.mxu0 0.0
    %1772 = vmatprep.subr.mxu0 0.0
    %1773 = vmatpush1.msra.mxu0 0.0
    %1774 = vmatprep.subr.mxu0 0.0
    %1775 = vmatpush1.msra.mxu0 0.0
    %1776 = vmatprep.subr.mxu0 0.0
    %1777 = vmatpush1.msra.mxu0 0.0
    %1778 = vmatprep.subr.mxu0 0.0
    %1779 = vmatpush1.msra.mxu0 0.0
    %1780 = vmatprep.subr.mxu0 0.0
    %1781 = vmatpush1.msra.mxu0 0.0
    %1782 = vmatprep.subr.mxu0 0.0
    %1783 = vmatpush1.msra.mxu0 0.0
    %1784 = vmatprep.subr.mxu0 0.0
    %1785 = vmatpush1.msra.mxu0 0.0
    %1786 = vmatprep.subr.mxu0 0.0
    %1787 = vmatpush1.msra.mxu0 %v298
    %1788 = vmatprep.subr.mxu0 0.0
    %1789 = vmatpush1.msra.mxu0 %v297
    %1790 = vmatprep.subr.mxu0 0.0
    %1791 = vmatpush1.msra.mxu0 %v296
    %1792 = vmatprep.subr.mxu0 0.0
    %1793 = vmatpush1.msra.mxu0 %v295
    %1794 = vmatprep.subr.mxu0 0.0
    %1795 = vmatpush2.msra.mxu0 0.0
    %1796 = vmatprep.subr.mxu0 0.0
    %1797 = vmatpush2.msra.mxu0 0.0
    %1798 = vmatprep.subr.mxu0 0.0
    %1799 = vmatpush2.msra.mxu0 0.0
    %1800 = vmatprep.subr.mxu0 0.0
    %1801 = vmatpush2.msra.mxu0 0.0
    %1802 = vmatprep.subr.mxu0 0.0
    %1803 = vmatpush2.msra.mxu0 0.0
    %1804 = vmatprep.subr.mxu0 0.0
    %1805 = vmatpush2.msra.mxu0 0.0
    %1806 = vmatprep.subr.mxu0 0.0
    %1807 = vmatpush2.msra.mxu0 0.0
    %1808 = vmatprep.subr.mxu0 0.0
    %1809 = vmatpush2.msra.mxu0 0.0
    %1810 = vmatprep.subr.mxu0 0.0
    %1811 = vmatpush2.msra.mxu0 0.0
    %1812 = vmatprep.subr.mxu0 0.0
    %1813 = vmatpush2.msra.mxu0 0.0
    %1814 = vmatprep.subr.mxu0 0.0
    %1815 = vmatpush2.msra.mxu0 0.0
    %1816 = vmatprep.subr.mxu0 0.0
    %1817 = vmatpush2.msra.mxu0 0.0
    %1818 = vmatprep.subr.mxu0 0.0
    %1819 = vmatpush2.msra.mxu0 0.0
    %1820 = vmatprep.subr.mxu0 0.0
    %1821 = vmatpush2.msra.mxu0 0.0
    %1822 = vmatprep.subr.mxu0 0.0
    %1823 = vmatpush2.msra.mxu0 0.0
    %1824 = vmatprep.subr.mxu0 0.0
    %1825 = vmatpush2.msra.mxu0 0.0
    %1826 = vmatprep.mubr.f32.mxu0 0.0
    %1827 = vmatmul.mubr.f32.gmra.mxu0 %v1760
    %v1828 = vpop.f32.mrf.mxu0
    %v1829 = vadd.f32 0.0, %v1828
    %v1830 = vpop.f32.mrf.mxu0
    %1831 = vdwg.mxu0
    %v1832 = vadd.f32 %v1759, %v1829
    %v1833 = vld [vmem:[#allocation3] sm:$0x3]
    %v1834 = vsel %vm304, %v1755, 0
    %1836 = vmatprep.subr.mxu0 0.0
    %1837 = vmatpush1.msra.mxu0 0.0
    %1838 = vmatprep.subr.mxu0 0.0
    %1839 = vmatpush1.msra.mxu0 0.0
    %1840 = vmatprep.subr.mxu0 0.0
    %1841 = vmatpush1.msra.mxu0 0.0
    %1842 = vmatprep.subr.mxu0 0.0
    %1843 = vmatpush1.msra.mxu0 0.0
    %1844 = vmatprep.subr.mxu0 0.0
    %1845 = vmatpush1.msra.mxu0 0.0
    %1846 = vmatprep.subr.mxu0 0.0
    %1847 = vmatpush1.msra.mxu0 0.0
    %1848 = vmatprep.subr.mxu0 0.0
    %1849 = vmatpush1.msra.mxu0 0.0
    %1850 = vmatprep.subr.mxu0 0.0
    %1851 = vmatpush1.msra.mxu0 0.0
    %1852 = vmatprep.subr.mxu0 0.0
    %1853 = vmatpush1.msra.mxu0 0.0
    %1854 = vmatprep.subr.mxu0 0.0
    %1855 = vmatpush1.msra.mxu0 0.0
    %1856 = vmatprep.subr.mxu0 0.0
    %1857 = vmatpush1.msra.mxu0 0.0
    %1858 = vmatprep.subr.mxu0 0.0
    %1859 = vmatpush1.msra.mxu0 0.0
    %1860 = vmatprep.subr.mxu0 0.0
    %1861 = vmatpush1.msra.mxu0 %v302
    %1862 = vmatprep.subr.mxu0 0.0
    %1863 = vmatpush1.msra.mxu0 %v301
    %1864 = vmatprep.subr.mxu0 0.0
    %1865 = vmatpush1.msra.mxu0 %v300
    %1866 = vmatprep.subr.mxu0 0.0
    %1867 = vmatpush1.msra.mxu0 %v299
    %1868 = vmatprep.subr.mxu0 0.0
    %1869 = vmatpush2.msra.mxu0 0.0
    %1870 = vmatprep.subr.mxu0 0.0
    %1871 = vmatpush2.msra.mxu0 0.0
    %1872 = vmatprep.subr.mxu0 0.0
    %1873 = vmatpush2.msra.mxu0 0.0
    %1874 = vmatprep.subr.mxu0 0.0
    %1875 = vmatpush2.msra.mxu0 0.0
    %1876 = vmatprep.subr.mxu0 0.0
    %1877 = vmatpush2.msra.mxu0 0.0
    %1878 = vmatprep.subr.mxu0 0.0
    %1879 = vmatpush2.msra.mxu0 0.0
    %1880 = vmatprep.subr.mxu0 0.0
    %1881 = vmatpush2.msra.mxu0 0.0
    %1882 = vmatprep.subr.mxu0 0.0
    %1883 = vmatpush2.msra.mxu0 0.0
    %1884 = vmatprep.subr.mxu0 0.0
    %1885 = vmatpush2.msra.mxu0 0.0
    %1886 = vmatprep.subr.mxu0 0.0
    %1887 = vmatpush2.msra.mxu0 0.0
    %1888 = vmatprep.subr.mxu0 0.0
    %1889 = vmatpush2.msra.mxu0 0.0
    %1890 = vmatprep.subr.mxu0 0.0
    %1891 = vmatpush2.msra.mxu0 0.0
    %1892 = vmatprep.subr.mxu0 0.0
    %1893 = vmatpush2.msra.mxu0 0.0
    %1894 = vmatprep.subr.mxu0 0.0
    %1895 = vmatpush2.msra.mxu0 0.0
    %1896 = vmatprep.subr.mxu0 0.0
    %1897 = vmatpush2.msra.mxu0 0.0
    %1898 = vmatprep.subr.mxu0 0.0
    %1899 = vmatpush2.msra.mxu0 0.0
    %1900 = vmatprep.mubr.f32.mxu0 0.0
    %1901 = vmatmul.mubr.f32.gmra.mxu0 %v1834
    %v1902 = vpop.f32.mrf.mxu0
    %v1903 = vadd.f32 0.0, %v1902
    %v1904 = vpop.f32.mrf.mxu0
    %1905 = vdwg.mxu0
    %v1906 = vadd.f32 %v1833, %v1903
    %v1907 = vxor.u32 %v1832, 2147483648
    %v1908 = vmul.f32 %v1907, 1.442695
    %v1909 = vpow.pop %v1908
    %v1910 = vadd.f32 %v1909, 1.0
    %v1911 = vrcp.pop %v1910
    %v1912 = vmul.f32 1.0, %v1911
    %v1913 = vtanh.pop %v1832
    %v1914 = vmul.f32 %v1912, %v1716
    %1916 = vrot.lane.b32.xlu0 %v1913, 64
    %v1917 = vpop.permute.xlu0 %1916
    %v1919 = vmul.f32 %v1912, %v1917
    %1921 = vrot.lane.b32.xlu0 %v1919, 32
    %v1922 = vpop.permute.xlu0 %1921
    %v1924 = vadd.f32 %v1914, %v1922
    %v1925 = vtanh.pop %v1924
    %1927 = vrot.lane.b32.xlu0 %v1925, 64
    %v1928 = vpop.permute.xlu0 %1927
    %v1930 = vmul.f32 %v1912, %v1928
    %v1931 = vxor.u32 %v1906, 2147483648
    %v1932 = vmul.f32 %v1931, 1.442695
    %v1933 = vpow.pop %v1932
    %v1934 = vadd.f32 %v1933, 1.0
    %v1935 = vrcp.pop %v1934
    %v1936 = vmul.f32 1.0, %v1935
    %v1937 = vtanh.pop %v1906
    %v1938 = vmul.f32 %v1936, %v1740
    %1940 = vrot.lane.b32.xlu0 %v1937, 64
    %v1941 = vpop.permute.xlu0 %1940
    %v1943 = vmul.f32 %v1936, %v1941
    %1945 = vrot.lane.b32.xlu0 %v1943, 32
    %v1946 = vpop.permute.xlu0 %1945
    %v1948 = vadd.f32 %v1938, %v1946
    %v1949 = vtanh.pop %v1948
    %1951 = vrot.lane.b32.xlu0 %v1949, 64
    %v1952 = vpop.permute.xlu0 %1951
    %v1954 = vmul.f32 %v1936, %v1952
    %1956 = vrot.lane.b32.xlu0 %v1930, 32
    %v1957 = vpop.permute.xlu0 %1956
    %s1959 = scalar_lea.vmem [#allocation4], 14
    %1960 = vst.msk [vmem:[%s1959] sm:$0x3] %vm503, %v1957
    %1962 = vrot.lane.b32.xlu0 %v1954, 32
    %v1963 = vpop.permute.xlu0 %1962
    %1965 = vst.msk [vmem:[#allocation5] sm:$0x3] %vm503, %v1963
    %s1966 = scalar_lea.vmem %s5, 1
    %v1967 = vld [vmem:[%s1966] ss:$8 sm:$0x3]
    %v1968 = vld [vmem:[%s3] sm:$0xff]
    %v1969 = vld [vmem:[%s3 + $0x8] sm:$0xff]
    %v1970 = vld [vmem:[%s3 + $0x10] sm:$0xff]
    %v1971 = vld [vmem:[%s3 + $0x18] sm:$0xff]
    %v1972 = vld [vmem:[%s3 + $0x20] sm:$0xff]
    %v1973 = vld [vmem:[%s3 + $0x28] sm:$0xff]
    %v1974 = vld [vmem:[%s3 + $0x30] sm:$0xff]
    %v1975 = vld [vmem:[%s3 + $0x38] sm:$0xff]
    %v1976 = vld [vmem:[%s3 + $0x40] sm:$0xff]
    %v1977 = vld [vmem:[%s3 + $0x48] sm:$0xff]
    %v1978 = vld [vmem:[%s3 + $0x50] sm:$0xff]
    %v1979 = vld [vmem:[%s3 + $0x58] sm:$0xff]
    %v1980 = vld [vmem:[%s3 + $0x60] sm:$0xff]
    %v1981 = vld [vmem:[%s3 + $0x68] sm:$0xff]
    %v1982 = vld [vmem:[%s3 + $0x70] sm:$0xff]
    %v1983 = vld [vmem:[%s3 + $0x78] sm:$0xff]
    %v1984 = vld [vmem:[#allocation4] sm:$0x3]
    %v1985 = vld [vmem:[#allocation4 + $0x2] sm:$0x3]
    %v1986 = vld [vmem:[#allocation4 + $0x4] sm:$0x3]
    %v1987 = vld [vmem:[#allocation4 + $0x6] sm:$0x3]
    %v1988 = vld [vmem:[#allocation4 + $0x8] sm:$0x3]
    %v1989 = vld [vmem:[#allocation4 + $0xa] sm:$0x3]
    %v1990 = vld [vmem:[#allocation4 + $0xc] sm:$0x3]
    %v1991 = vld [vmem:[#allocation4 + $0xe] sm:$0x3]
    %v1992 = vld [vmem:[#allocation5] sm:$0x3]
    %v1993 = vld [vmem:[#allocation5 + $0x2] sm:$0x3]
    %v1994 = vld [vmem:[#allocation5 + $0x4] sm:$0x3]
    %v1995 = vld [vmem:[#allocation5 + $0x6] sm:$0x3]
    %v1996 = vld [vmem:[#allocation5 + $0x8] sm:$0x3]
    %v1997 = vld [vmem:[#allocation5 + $0xa] sm:$0x3]
    %v1998 = vld [vmem:[#allocation5 + $0xc] sm:$0x3]
    %v1999 = vld [vmem:[#allocation5 + $0xe] sm:$0x3]
    %v2008 = vcombine.low %v1992, %v1993
    %v2009 = vcombine.low %v1994, %v1995
    %v2011 = vunpack.c.l.s4 1983009808
    %v2012 = vunpack.c.0.s8 %v2011
    %v2013 = vlaneseq
    %v2014 = vshrl.u32 %v2013, 7
    %v2015 = vsub.s32 %v2012, %v2014
    %v2016 = vrot.slane %v2008, %v2015
    %v2018 = vunpack.c.l.s4 1983009808
    %v2019 = vunpack.c.0.s8 %v2018
    %v2020 = vlaneseq
    %v2021 = vshrl.u32 %v2020, 7
    %v2022 = vsub.s32 %v2019, %v2021
    %v2023 = vrot.slane %v2009, %v2022
    %v2024 = vcombine.low %v2016, %v2023
    %v2025 = vcombine.low %v1996, %v1997
    %v2026 = vcombine.low %v1998, %v1999
    %v2028 = vunpack.c.l.s4 1983009808
    %v2029 = vunpack.c.0.s8 %v2028
    %v2030 = vlaneseq
    %v2031 = vshrl.u32 %v2030, 7
    %v2032 = vsub.s32 %v2029, %v2031
    %v2033 = vrot.slane %v2025, %v2032
    %v2035 = vunpack.c.l.s4 1983009808
    %v2036 = vunpack.c.0.s8 %v2035
    %v2037 = vlaneseq
    %v2038 = vshrl.u32 %v2037, 7
    %v2039 = vsub.s32 %v2036, %v2038
    %v2040 = vrot.slane %v2026, %v2039
    %v2041 = vcombine.low %v2033, %v2040
    %v2042 = vsel %vm304, %v2024, 0
    %v2044 = vsel %vm304, %v2041, 0
    %2046 = vmatprep.subr.mxu0 0.0
    %2047 = vmatpush1.msra.mxu0 0.0
    %2048 = vmatprep.subr.mxu0 0.0
    %2049 = vmatpush1.msra.mxu0 0.0
    %2050 = vmatprep.subr.mxu0 0.0
    %2051 = vmatpush1.msra.mxu0 0.0
    %2052 = vmatprep.subr.mxu0 0.0
    %2053 = vmatpush1.msra.mxu0 0.0
    %2054 = vmatprep.subr.mxu0 0.0
    %2055 = vmatpush1.msra.mxu0 0.0
    %2056 = vmatprep.subr.mxu0 0.0
    %2057 = vmatpush1.msra.mxu0 0.0
    %2058 = vmatprep.subr.mxu0 0.0
    %2059 = vmatpush1.msra.mxu0 0.0
    %2060 = vmatprep.subr.mxu0 0.0
    %2061 = vmatpush1.msra.mxu0 0.0
    %2062 = vmatprep.subr.mxu0 0.0
    %2063 = vmatpush1.msra.mxu0 0.0
    %2064 = vmatprep.subr.mxu0 0.0
    %2065 = vmatpush1.msra.mxu0 0.0
    %2066 = vmatprep.subr.mxu0 0.0
    %2067 = vmatpush1.msra.mxu0 0.0
    %2068 = vmatprep.subr.mxu0 0.0
    %2069 = vmatpush1.msra.mxu0 0.0
    %2070 = vmatprep.subr.mxu0 %v1983
    %2071 = vmatpush1.msra.mxu0 %v1982
    %2072 = vmatprep.subr.mxu0 %v1981
    %2073 = vmatpush1.msra.mxu0 %v1980
    %2074 = vmatprep.subr.mxu0 %v1979
    %2075 = vmatpush1.msra.mxu0 %v1978
    %2076 = vmatprep.subr.mxu0 %v1977
    %2077 = vmatpush1.msra.mxu0 %v1976
    %2078 = vmatprep.subr.mxu0 0.0
    %2079 = vmatpush2.msra.mxu0 0.0
    %2080 = vmatprep.subr.mxu0 0.0
    %2081 = vmatpush2.msra.mxu0 0.0
    %2082 = vmatprep.subr.mxu0 0.0
    %2083 = vmatpush2.msra.mxu0 0.0
    %2084 = vmatprep.subr.mxu0 0.0
    %2085 = vmatpush2.msra.mxu0 0.0
    %2086 = vmatprep.subr.mxu0 0.0
    %2087 = vmatpush2.msra.mxu0 0.0
    %2088 = vmatprep.subr.mxu0 0.0
    %2089 = vmatpush2.msra.mxu0 0.0
    %2090 = vmatprep.subr.mxu0 0.0
    %2091 = vmatpush2.msra.mxu0 0.0
    %2092 = vmatprep.subr.mxu0 0.0
    %2093 = vmatpush2.msra.mxu0 0.0
    %2094 = vmatprep.subr.mxu0 0.0
    %2095 = vmatpush2.msra.mxu0 0.0
    %2096 = vmatprep.subr.mxu0 0.0
    %2097 = vmatpush2.msra.mxu0 0.0
    %2098 = vmatprep.subr.mxu0 0.0
    %2099 = vmatpush2.msra.mxu0 0.0
    %2100 = vmatprep.subr.mxu0 0.0
    %2101 = vmatpush2.msra.mxu0 0.0
    %2102 = vmatprep.subr.mxu0 0.0
    %2103 = vmatpush2.msra.mxu0 0.0
    %2104 = vmatprep.subr.mxu0 0.0
    %2105 = vmatpush2.msra.mxu0 0.0
    %2106 = vmatprep.subr.mxu0 0.0
    %2107 = vmatpush2.msra.mxu0 0.0
    %2108 = vmatprep.subr.mxu0 0.0
    %2109 = vmatpush2.msra.mxu0 0.0
    %2110 = vmatprep.mubr.f32.mxu0 0.0
    %2111 = vmatmul.mubr.f32.gmra.mxu0 %v2042
    %v2112 = vpop.f32.mrf.mxu0
    %v2113 = vadd.f32 0.0, %v2112
    %v2114 = vpop.f32.mrf.mxu0
    %v2115 = vadd.f32 0.0, %v2114
    %2116 = vmatprep.mubr.f32.mxu0 0.0
    %2117 = vmatmul.mubr.f32.gmra.mxu0 %v2044
    %v2118 = vpop.f32.mrf.mxu0
    %v2119 = vadd.f32 0.0, %v2118
    %v2120 = vpop.f32.mrf.mxu0
    %v2121 = vadd.f32 0.0, %v2120
    %2122 = vdwg.mxu0
    %v2131 = vcombine.low %v1984, %v1985
    %v2132 = vcombine.low %v1986, %v1987
    %v2134 = vunpack.c.l.s4 1983009808
    %v2135 = vunpack.c.0.s8 %v2134
    %v2136 = vlaneseq
    %v2137 = vshrl.u32 %v2136, 7
    %v2138 = vsub.s32 %v2135, %v2137
    %v2139 = vrot.slane %v2131, %v2138
    %v2141 = vunpack.c.l.s4 1983009808
    %v2142 = vunpack.c.0.s8 %v2141
    %v2143 = vlaneseq
    %v2144 = vshrl.u32 %v2143, 7
    %v2145 = vsub.s32 %v2142, %v2144
    %v2146 = vrot.slane %v2132, %v2145
    %v2147 = vcombine.low %v2139, %v2146
    %v2148 = vcombine.low %v1988, %v1989
    %v2149 = vcombine.low %v1990, %v1991
    %v2151 = vunpack.c.l.s4 1983009808
    %v2152 = vunpack.c.0.s8 %v2151
    %v2153 = vlaneseq
    %v2154 = vshrl.u32 %v2153, 7
    %v2155 = vsub.s32 %v2152, %v2154
    %v2156 = vrot.slane %v2148, %v2155
    %v2158 = vunpack.c.l.s4 1983009808
    %v2159 = vunpack.c.0.s8 %v2158
    %v2160 = vlaneseq
    %v2161 = vshrl.u32 %v2160, 7
    %v2162 = vsub.s32 %v2159, %v2161
    %v2163 = vrot.slane %v2149, %v2162
    %v2164 = vcombine.low %v2156, %v2163
    %v2165 = vsel %vm304, %v2147, 0
    %v2167 = vsel %vm304, %v2164, 0
    %2169 = vmatprep.subr.mxu0 0.0
    %2170 = vmatpush1.msra.mxu0 0.0
    %2171 = vmatprep.subr.mxu0 0.0
    %2172 = vmatpush1.msra.mxu0 0.0
    %2173 = vmatprep.subr.mxu0 0.0
    %2174 = vmatpush1.msra.mxu0 0.0
    %2175 = vmatprep.subr.mxu0 0.0
    %2176 = vmatpush1.msra.mxu0 0.0
    %2177 = vmatprep.subr.mxu0 0.0
    %2178 = vmatpush1.msra.mxu0 0.0
    %2179 = vmatprep.subr.mxu0 0.0
    %2180 = vmatpush1.msra.mxu0 0.0
    %2181 = vmatprep.subr.mxu0 0.0
    %2182 = vmatpush1.msra.mxu0 0.0
    %2183 = vmatprep.subr.mxu0 0.0
    %2184 = vmatpush1.msra.mxu0 0.0
    %2185 = vmatprep.subr.mxu0 0.0
    %2186 = vmatpush1.msra.mxu0 0.0
    %2187 = vmatprep.subr.mxu0 0.0
    %2188 = vmatpush1.msra.mxu0 0.0
    %2189 = vmatprep.subr.mxu0 0.0
    %2190 = vmatpush1.msra.mxu0 0.0
    %2191 = vmatprep.subr.mxu0 0.0
    %2192 = vmatpush1.msra.mxu0 0.0
    %2193 = vmatprep.subr.mxu0 %v1975
    %2194 = vmatpush1.msra.mxu0 %v1974
    %2195 = vmatprep.subr.mxu0 %v1973
    %2196 = vmatpush1.msra.mxu0 %v1972
    %2197 = vmatprep.subr.mxu0 %v1971
    %2198 = vmatpush1.msra.mxu0 %v1970
    %2199 = vmatprep.subr.mxu0 %v1969
    %2200 = vmatpush1.msra.mxu0 %v1968
    %2201 = vmatprep.subr.mxu0 0.0
    %2202 = vmatpush2.msra.mxu0 0.0
    %2203 = vmatprep.subr.mxu0 0.0
    %2204 = vmatpush2.msra.mxu0 0.0
    %2205 = vmatprep.subr.mxu0 0.0
    %2206 = vmatpush2.msra.mxu0 0.0
    %2207 = vmatprep.subr.mxu0 0.0
    %2208 = vmatpush2.msra.mxu0 0.0
    %2209 = vmatprep.subr.mxu0 0.0
    %2210 = vmatpush2.msra.mxu0 0.0
    %2211 = vmatprep.subr.mxu0 0.0
    %2212 = vmatpush2.msra.mxu0 0.0
    %2213 = vmatprep.subr.mxu0 0.0
    %2214 = vmatpush2.msra.mxu0 0.0
    %2215 = vmatprep.subr.mxu0 0.0
    %2216 = vmatpush2.msra.mxu0 0.0
    %2217 = vmatprep.subr.mxu0 0.0
    %2218 = vmatpush2.msra.mxu0 0.0
    %2219 = vmatprep.subr.mxu0 0.0
    %2220 = vmatpush2.msra.mxu0 0.0
    %2221 = vmatprep.subr.mxu0 0.0
    %2222 = vmatpush2.msra.mxu0 0.0
    %2223 = vmatprep.subr.mxu0 0.0
    %2224 = vmatpush2.msra.mxu0 0.0
    %2225 = vmatprep.subr.mxu0 0.0
    %2226 = vmatpush2.msra.mxu0 0.0
    %2227 = vmatprep.subr.mxu0 0.0
    %2228 = vmatpush2.msra.mxu0 0.0
    %2229 = vmatprep.subr.mxu0 0.0
    %2230 = vmatpush2.msra.mxu0 0.0
    %2231 = vmatprep.subr.mxu0 0.0
    %2232 = vmatpush2.msra.mxu0 0.0
    %2233 = vmatprep.mubr.f32.mxu0 0.0
    %2234 = vmatmul.mubr.f32.gmra.mxu0 %v2165
    %v2235 = vpop.f32.mrf.mxu0
    %v2236 = vadd.f32 %v2113, %v2235
    %v2237 = vpop.f32.mrf.mxu0
    %v2238 = vadd.f32 %v2115, %v2237
    %2239 = vmatprep.mubr.f32.mxu0 0.0
    %2240 = vmatmul.mubr.f32.gmra.mxu0 %v2167
    %v2241 = vpop.f32.mrf.mxu0
    %v2242 = vadd.f32 %v2119, %v2241
    %v2243 = vpop.f32.mrf.mxu0
    %v2244 = vadd.f32 %v2121, %v2243
    %2245 = vdwg.mxu0
    %v2247 = vlaneseq
    %v2248 = vshrl.u32 %v2247, 7
    %v2249 = vsub.s32 0, %v2248
    %v2250 = vrot.slane %v1967, %v2249
    %v2251 = vlaneseq
    %v2252 = vshrl.u32 %v2251, 7
    %v2253 = vsub.s32 1, %v2252
    %v2254 = vrot.slane %v1967, %v2253
    %v2257 = vadd.f32 %v2236, %v2250
    %v2258 = vadd.f32 %v2238, %v2254
    %v2259 = vadd.f32 %v2242, %v2250
    %v2260 = vadd.f32 %v2244, %v2254
    %v2265 = vcombine.low %v2257, %v2258
    %v2266 = vcombine.high %v2257, %v2258
    %v2268 = vunpack.c.l.s4 1983009808
    %v2269 = vunpack.c.0.s8 %v2268
    %v2270 = vlaneseq
    %v2271 = vshrl.u32 %v2270, 7
    %v2272 = vsub.s32 %v2269, %v2271
    %v2273 = vrot.slane %v2265, %v2272
    %v2275 = vunpack.c.l.s4 1983009808
    %v2276 = vunpack.c.0.s8 %v2275
    %v2277 = vlaneseq
    %v2278 = vshrl.u32 %v2277, 7
    %v2279 = vsub.s32 %v2276, %v2278
    %v2280 = vrot.slane %v2266, %v2279
    %v2281 = vcombine.high %v2273, %v2273
    %v2282 = vcombine.high %v2280, %v2280
    %v2283 = vcombine.low %v2259, %v2260
    %v2284 = vcombine.high %v2259, %v2260
    %v2286 = vunpack.c.l.s4 1983009808
    %v2287 = vunpack.c.0.s8 %v2286
    %v2288 = vlaneseq
    %v2289 = vshrl.u32 %v2288, 7
    %v2290 = vsub.s32 %v2287, %v2289
    %v2291 = vrot.slane %v2283, %v2290
    %v2293 = vunpack.c.l.s4 1983009808
    %v2294 = vunpack.c.0.s8 %v2293
    %v2295 = vlaneseq
    %v2296 = vshrl.u32 %v2295, 7
    %v2297 = vsub.s32 %v2294, %v2296
    %v2298 = vrot.slane %v2284, %v2297
    %v2299 = vcombine.high %v2291, %v2291
    %v2300 = vcombine.high %v2298, %v2298
    %2309 = vst [vmem:[#allocation2] sm:$0x3] %v2273
    %2310 = vst [vmem:[#allocation2 + $0x2] sm:$0x3] %v2281
    %2311 = vst [vmem:[#allocation2 + $0x4] sm:$0x3] %v2280
    %2312 = vst [vmem:[#allocation2 + $0x6] sm:$0x3] %v2282
    %2313 = vst [vmem:[#allocation2 + $0x8] sm:$0x3] %v2291
    %2314 = vst [vmem:[#allocation2 + $0xa] sm:$0x3] %v2299
    %2315 = vst [vmem:[#allocation2 + $0xc] sm:$0x3] %v2298
    %2316 = vst [vmem:[#allocation2 + $0xe] sm:$0x3] %v2300
    %v2318 = vunpack.c.l.s4 1983009808
    %v2319 = vunpack.c.0.s8 %v2318
    %v2320 = vlaneseq
    %v2321 = vshrl.u32 %v2320, 7
    %v2322 = vsub.s32 %v2319, %v2321
    %v2323 = vrot.slane %v2273, %v2322
    %v2324 = vcombine.high %v2323, %v2323
    %v2326 = vunpack.c.l.s4 1983009808
    %v2327 = vunpack.c.0.s8 %v2326
    %v2328 = vlaneseq
    %v2329 = vshrl.u32 %v2328, 7
    %v2330 = vsub.s32 %v2327, %v2329
    %v2331 = vrot.slane %v2281, %v2330
    %v2332 = vcombine.high %v2331, %v2331
    %v2334 = vunpack.c.l.s4 1983009808
    %v2335 = vunpack.c.0.s8 %v2334
    %v2336 = vlaneseq
    %v2337 = vshrl.u32 %v2336, 7
    %v2338 = vsub.s32 %v2335, %v2337
    %v2339 = vrot.slane %v2280, %v2338
    %v2340 = vcombine.high %v2339, %v2339
    %v2342 = vunpack.c.l.s4 1983009808
    %v2343 = vunpack.c.0.s8 %v2342
    %v2344 = vlaneseq
    %v2345 = vshrl.u32 %v2344, 7
    %v2346 = vsub.s32 %v2343, %v2345
    %v2347 = vrot.slane %v2282, %v2346
    %v2348 = vcombine.high %v2347, %v2347
    %v2350 = vunpack.c.l.s4 1983009808
    %v2351 = vunpack.c.0.s8 %v2350
    %v2352 = vlaneseq
    %v2353 = vshrl.u32 %v2352, 7
    %v2354 = vsub.s32 %v2351, %v2353
    %v2355 = vrot.slane %v2291, %v2354
    %v2356 = vcombine.high %v2355, %v2355
    %v2358 = vunpack.c.l.s4 1983009808
    %v2359 = vunpack.c.0.s8 %v2358
    %v2360 = vlaneseq
    %v2361 = vshrl.u32 %v2360, 7
    %v2362 = vsub.s32 %v2359, %v2361
    %v2363 = vrot.slane %v2299, %v2362
    %v2364 = vcombine.high %v2363, %v2363
    %v2366 = vunpack.c.l.s4 1983009808
    %v2367 = vunpack.c.0.s8 %v2366
    %v2368 = vlaneseq
    %v2369 = vshrl.u32 %v2368, 7
    %v2370 = vsub.s32 %v2367, %v2369
    %v2371 = vrot.slane %v2298, %v2370
    %v2372 = vcombine.high %v2371, %v2371
    %v2374 = vunpack.c.l.s4 1983009808
    %v2375 = vunpack.c.0.s8 %v2374
    %v2376 = vlaneseq
    %v2377 = vshrl.u32 %v2376, 7
    %v2378 = vsub.s32 %v2375, %v2377
    %v2379 = vrot.slane %v2300, %v2378
    %v2380 = vcombine.high %v2379, %v2379
    %2389 = vst [vmem:[#allocation3] sm:$0x3] %v2324
    %2390 = vst [vmem:[#allocation3 + $0x2] sm:$0x3] %v2332
    %2391 = vst [vmem:[#allocation3 + $0x4] sm:$0x3] %v2340
    %2392 = vst [vmem:[#allocation3 + $0x6] sm:$0x3] %v2348
    %2393 = vst [vmem:[#allocation3 + $0x8] sm:$0x3] %v2356
    %2394 = vst [vmem:[#allocation3 + $0xa] sm:$0x3] %v2364
    %2395 = vst [vmem:[#allocation3 + $0xc] sm:$0x3] %v2372
    %2396 = vst [vmem:[#allocation3 + $0xe] sm:$0x3] %v2380
    %v2397 = vld [vmem:[#allocation13] sm:$0xff]
    %v2398 = vld [vmem:[#allocation13 + $0x8] sm:$0xff]
    %v2399 = vld [vmem:[#allocation13 + $0x10] sm:$0xff]
    %v2400 = vld [vmem:[#allocation13 + $0x18] sm:$0xff]
    %v2401 = vld [vmem:[#allocation2] sm:$0x3]
    %2402 = vmatprep.subr.mxu0 0.0
    %2403 = vmatpush1.msra.mxu0 0.0
    %2404 = vmatprep.subr.mxu0 0.0
    %2405 = vmatpush1.msra.mxu0 0.0
    %2406 = vmatprep.subr.mxu0 0.0
    %2407 = vmatpush1.msra.mxu0 0.0
    %2408 = vmatprep.subr.mxu0 0.0
    %2409 = vmatpush1.msra.mxu0 0.0
    %2410 = vmatprep.subr.mxu0 0.0
    %2411 = vmatpush1.msra.mxu0 0.0
    %2412 = vmatprep.subr.mxu0 0.0
    %2413 = vmatpush1.msra.mxu0 0.0
    %2414 = vmatprep.subr.mxu0 0.0
    %2415 = vmatpush1.msra.mxu0 0.0
    %2416 = vmatprep.subr.mxu0 0.0
    %2417 = vmatpush1.msra.mxu0 0.0
    %2418 = vmatprep.subr.mxu0 0.0
    %2419 = vmatpush1.msra.mxu0 0.0
    %2420 = vmatprep.subr.mxu0 0.0
    %2421 = vmatpush1.msra.mxu0 0.0
    %2422 = vmatprep.subr.mxu0 0.0
    %2423 = vmatpush1.msra.mxu0 0.0
    %2424 = vmatprep.subr.mxu0 0.0
    %2425 = vmatpush1.msra.mxu0 0.0
    %2426 = vmatprep.subr.mxu0 0.0
    %2427 = vmatpush1.msra.mxu0 %v2400
    %2428 = vmatprep.subr.mxu0 0.0
    %2429 = vmatpush1.msra.mxu0 %v2399
    %2430 = vmatprep.subr.mxu0 0.0
    %2431 = vmatpush1.msra.mxu0 %v2398
    %2432 = vmatprep.subr.mxu0 0.0
    %2433 = vmatpush1.msra.mxu0 %v2397
    %2434 = vmatprep.subr.mxu0 0.0
    %2435 = vmatpush2.msra.mxu0 0.0
    %2436 = vmatprep.subr.mxu0 0.0
    %2437 = vmatpush2.msra.mxu0 0.0
    %2438 = vmatprep.subr.mxu0 0.0
    %2439 = vmatpush2.msra.mxu0 0.0
    %2440 = vmatprep.subr.mxu0 0.0
    %2441 = vmatpush2.msra.mxu0 0.0
    %2442 = vmatprep.subr.mxu0 0.0
    %2443 = vmatpush2.msra.mxu0 0.0
    %2444 = vmatprep.subr.mxu0 0.0
    %2445 = vmatpush2.msra.mxu0 0.0
    %2446 = vmatprep.subr.mxu0 0.0
    %2447 = vmatpush2.msra.mxu0 0.0
    %2448 = vmatprep.subr.mxu0 0.0
    %2449 = vmatpush2.msra.mxu0 0.0
    %2450 = vmatprep.subr.mxu0 0.0
    %2451 = vmatpush2.msra.mxu0 0.0
    %2452 = vmatprep.subr.mxu0 0.0
    %2453 = vmatpush2.msra.mxu0 0.0
    %2454 = vmatprep.subr.mxu0 0.0
    %2455 = vmatpush2.msra.mxu0 0.0
    %2456 = vmatprep.subr.mxu0 0.0
    %2457 = vmatpush2.msra.mxu0 0.0
    %2458 = vmatprep.subr.mxu0 0.0
    %2459 = vmatpush2.msra.mxu0 0.0
    %2460 = vmatprep.subr.mxu0 0.0
    %2461 = vmatpush2.msra.mxu0 0.0
    %2462 = vmatprep.subr.mxu0 0.0
    %2463 = vmatpush2.msra.mxu0 0.0
    %2464 = vmatprep.subr.mxu0 0.0
    %2465 = vmatpush2.msra.mxu0 0.0
    %2466 = vmatprep.mubr.f32.mxu0 0.0
    %2467 = vmatmul.mubr.f32.gmra.mxu0 %v306
    %v2468 = vpop.f32.mrf.mxu0
    %v2469 = vadd.f32 0.0, %v2468
    %v2470 = vpop.f32.mrf.mxu0
    %2471 = vdwg.mxu0
    %v2472 = vadd.f32 %v2401, %v2469
    %v2473 = vxor.u32 %v2472, 2147483648
    %v2474 = vmul.f32 %v2473, 1.442695
    %v2475 = vpow.pop %v2474
    %v2476 = vadd.f32 %v2475, 1.0
    %v2477 = vrcp.pop %v2476
    %v2478 = vmul.f32 1.0, %v2477
    %v2479 = vtanh.pop %v2472
    %v2480 = vmul.f32 %v2478, 0.0
    %2482 = vrot.lane.b32.xlu0 %v2479, 64
    %v2483 = vpop.permute.xlu0 %2482
    %v2485 = vmul.f32 %v2478, %v2483
    %2487 = vrot.lane.b32.xlu0 %v2485, 32
    %v2488 = vpop.permute.xlu0 %2487
    %v2490 = vadd.f32 %v2480, %v2488
    %v2491 = vtanh.pop %v2490
    %2493 = vrot.lane.b32.xlu0 %v2491, 64
    %v2494 = vpop.permute.xlu0 %2493
    %v2496 = vmul.f32 %v2478, %v2494
    %v2497 = vld [vmem:[%s234] sm:$0x3]
    %2499 = vrot.lane.b32.xlu0 %v2496, 32
    %v2500 = vpop.permute.xlu0 %2499
    %v2501 = vsel %vm304, %v2500, 0
    %2503 = vmatprep.subr.mxu0 0.0
    %2504 = vmatpush1.msra.mxu0 0.0
    %2505 = vmatprep.subr.mxu0 0.0
    %2506 = vmatpush1.msra.mxu0 0.0
    %2507 = vmatprep.subr.mxu0 0.0
    %2508 = vmatpush1.msra.mxu0 0.0
    %2509 = vmatprep.subr.mxu0 0.0
    %2510 = vmatpush1.msra.mxu0 0.0
    %2511 = vmatprep.subr.mxu0 0.0
    %2512 = vmatpush1.msra.mxu0 0.0
    %2513 = vmatprep.subr.mxu0 0.0
    %2514 = vmatpush1.msra.mxu0 0.0
    %2515 = vmatprep.subr.mxu0 0.0
    %2516 = vmatpush1.msra.mxu0 0.0
    %2517 = vmatprep.subr.mxu0 0.0
    %2518 = vmatpush1.msra.mxu0 0.0
    %2519 = vmatprep.subr.mxu0 0.0
    %2520 = vmatpush1.msra.mxu0 0.0
    %2521 = vmatprep.subr.mxu0 0.0
    %2522 = vmatpush1.msra.mxu0 0.0
    %2523 = vmatprep.subr.mxu0 0.0
    %2524 = vmatpush1.msra.mxu0 0.0
    %2525 = vmatprep.subr.mxu0 0.0
    %2526 = vmatpush1.msra.mxu0 0.0
    %2527 = vmatprep.subr.mxu0 0.0
    %2528 = vmatpush1.msra.mxu0 %v2400
    %2529 = vmatprep.subr.mxu0 0.0
    %2530 = vmatpush1.msra.mxu0 %v2399
    %2531 = vmatprep.subr.mxu0 0.0
    %2532 = vmatpush1.msra.mxu0 %v2398
    %2533 = vmatprep.subr.mxu0 0.0
    %2534 = vmatpush1.msra.mxu0 %v2397
    %2535 = vmatprep.subr.mxu0 0.0
    %2536 = vmatpush2.msra.mxu0 0.0
    %2537 = vmatprep.subr.mxu0 0.0
    %2538 = vmatpush2.msra.mxu0 0.0
    %2539 = vmatprep.subr.mxu0 0.0
    %2540 = vmatpush2.msra.mxu0 0.0
    %2541 = vmatprep.subr.mxu0 0.0
    %2542 = vmatpush2.msra.mxu0 0.0
    %2543 = vmatprep.subr.mxu0 0.0
    %2544 = vmatpush2.msra.mxu0 0.0
    %2545 = vmatprep.subr.mxu0 0.0
    %2546 = vmatpush2.msra.mxu0 0.0
    %2547 = vmatprep.subr.mxu0 0.0
    %2548 = vmatpush2.msra.mxu0 0.0
    %2549 = vmatprep.subr.mxu0 0.0
    %2550 = vmatpush2.msra.mxu0 0.0
    %2551 = vmatprep.subr.mxu0 0.0
    %2552 = vmatpush2.msra.mxu0 0.0
    %2553 = vmatprep.subr.mxu0 0.0
    %2554 = vmatpush2.msra.mxu0 0.0
    %2555 = vmatprep.subr.mxu0 0.0
    %2556 = vmatpush2.msra.mxu0 0.0
    %2557 = vmatprep.subr.mxu0 0.0
    %2558 = vmatpush2.msra.mxu0 0.0
    %2559 = vmatprep.subr.mxu0 0.0
    %2560 = vmatpush2.msra.mxu0 0.0
    %2561 = vmatprep.subr.mxu0 0.0
    %2562 = vmatpush2.msra.mxu0 0.0
    %2563 = vmatprep.subr.mxu0 0.0
    %2564 = vmatpush2.msra.mxu0 0.0
    %2565 = vmatprep.subr.mxu0 0.0
    %2566 = vmatpush2.msra.mxu0 0.0
    %2567 = vmatprep.mubr.f32.mxu0 0.0
    %2568 = vmatmul.mubr.f32.gmra.mxu0 %v2501
    %v2569 = vpop.f32.mrf.mxu0
    %v2570 = vadd.f32 0.0, %v2569
    %v2571 = vpop.f32.mrf.mxu0
    %2572 = vdwg.mxu0
    %v2573 = vadd.f32 %v2497, %v2570
    %v2574 = vxor.u32 %v2573, 2147483648
    %v2575 = vmul.f32 %v2574, 1.442695
    %v2576 = vpow.pop %v2575
    %v2577 = vadd.f32 %v2576, 1.0
    %v2578 = vrcp.pop %v2577
    %v2579 = vmul.f32 1.0, %v2578
    %v2580 = vtanh.pop %v2573
    %v2581 = vmul.f32 %v2579, %v2490
    %2583 = vrot.lane.b32.xlu0 %v2580, 64
    %v2584 = vpop.permute.xlu0 %2583
    %v2586 = vmul.f32 %v2579, %v2584
    %2588 = vrot.lane.b32.xlu0 %v2586, 32
    %v2589 = vpop.permute.xlu0 %2588
    %v2591 = vadd.f32 %v2581, %v2589
    %v2592 = vtanh.pop %v2591
    %2594 = vrot.lane.b32.xlu0 %v2592, 64
    %v2595 = vpop.permute.xlu0 %2594
    %v2597 = vmul.f32 %v2579, %v2595
    %v2598 = vld [vmem:[%s243] sm:$0x3]
    %2600 = vrot.lane.b32.xlu0 %v2597, 32
    %v2601 = vpop.permute.xlu0 %2600
    %v2602 = vsel %vm304, %v2601, 0
    %2604 = vmatprep.subr.mxu0 0.0
    %2605 = vmatpush1.msra.mxu0 0.0
    %2606 = vmatprep.subr.mxu0 0.0
    %2607 = vmatpush1.msra.mxu0 0.0
    %2608 = vmatprep.subr.mxu0 0.0
    %2609 = vmatpush1.msra.mxu0 0.0
    %2610 = vmatprep.subr.mxu0 0.0
    %2611 = vmatpush1.msra.mxu0 0.0
    %2612 = vmatprep.subr.mxu0 0.0
    %2613 = vmatpush1.msra.mxu0 0.0
    %2614 = vmatprep.subr.mxu0 0.0
    %2615 = vmatpush1.msra.mxu0 0.0
    %2616 = vmatprep.subr.mxu0 0.0
    %2617 = vmatpush1.msra.mxu0 0.0
    %2618 = vmatprep.subr.mxu0 0.0
    %2619 = vmatpush1.msra.mxu0 0.0
    %2620 = vmatprep.subr.mxu0 0.0
    %2621 = vmatpush1.msra.mxu0 0.0
    %2622 = vmatprep.subr.mxu0 0.0
    %2623 = vmatpush1.msra.mxu0 0.0
    %2624 = vmatprep.subr.mxu0 0.0
    %2625 = vmatpush1.msra.mxu0 0.0
    %2626 = vmatprep.subr.mxu0 0.0
    %2627 = vmatpush1.msra.mxu0 0.0
    %2628 = vmatprep.subr.mxu0 0.0
    %2629 = vmatpush1.msra.mxu0 %v2400
    %2630 = vmatprep.subr.mxu0 0.0
    %2631 = vmatpush1.msra.mxu0 %v2399
    %2632 = vmatprep.subr.mxu0 0.0
    %2633 = vmatpush1.msra.mxu0 %v2398
    %2634 = vmatprep.subr.mxu0 0.0
    %2635 = vmatpush1.msra.mxu0 %v2397
    %2636 = vmatprep.subr.mxu0 0.0
    %2637 = vmatpush2.msra.mxu0 0.0
    %2638 = vmatprep.subr.mxu0 0.0
    %2639 = vmatpush2.msra.mxu0 0.0
    %2640 = vmatprep.subr.mxu0 0.0
    %2641 = vmatpush2.msra.mxu0 0.0
    %2642 = vmatprep.subr.mxu0 0.0
    %2643 = vmatpush2.msra.mxu0 0.0
    %2644 = vmatprep.subr.mxu0 0.0
    %2645 = vmatpush2.msra.mxu0 0.0
    %2646 = vmatprep.subr.mxu0 0.0
    %2647 = vmatpush2.msra.mxu0 0.0
    %2648 = vmatprep.subr.mxu0 0.0
    %2649 = vmatpush2.msra.mxu0 0.0
    %2650 = vmatprep.subr.mxu0 0.0
    %2651 = vmatpush2.msra.mxu0 0.0
    %2652 = vmatprep.subr.mxu0 0.0
    %2653 = vmatpush2.msra.mxu0 0.0
    %2654 = vmatprep.subr.mxu0 0.0
    %2655 = vmatpush2.msra.mxu0 0.0
    %2656 = vmatprep.subr.mxu0 0.0
    %2657 = vmatpush2.msra.mxu0 0.0
    %2658 = vmatprep.subr.mxu0 0.0
    %2659 = vmatpush2.msra.mxu0 0.0
    %2660 = vmatprep.subr.mxu0 0.0
    %2661 = vmatpush2.msra.mxu0 0.0
    %2662 = vmatprep.subr.mxu0 0.0
    %2663 = vmatpush2.msra.mxu0 0.0
    %2664 = vmatprep.subr.mxu0 0.0
    %2665 = vmatpush2.msra.mxu0 0.0
    %2666 = vmatprep.subr.mxu0 0.0
    %2667 = vmatpush2.msra.mxu0 0.0
    %2668 = vmatprep.mubr.f32.mxu0 0.0
    %2669 = vmatmul.mubr.f32.gmra.mxu0 %v2602
    %v2670 = vpop.f32.mrf.mxu0
    %v2671 = vadd.f32 0.0, %v2670
    %v2672 = vpop.f32.mrf.mxu0
    %2673 = vdwg.mxu0
    %v2674 = vadd.f32 %v2598, %v2671
    %v2675 = vxor.u32 %v2674, 2147483648
    %v2676 = vmul.f32 %v2675, 1.442695
    %v2677 = vpow.pop %v2676
    %v2678 = vadd.f32 %v2677, 1.0
    %v2679 = vrcp.pop %v2678
    %v2680 = vmul.f32 1.0, %v2679
    %v2681 = vtanh.pop %v2674
    %v2682 = vmul.f32 %v2680, %v2591
    %2684 = vrot.lane.b32.xlu0 %v2681, 64
    %v2685 = vpop.permute.xlu0 %2684
    %v2687 = vmul.f32 %v2680, %v2685
    %2689 = vrot.lane.b32.xlu0 %v2687, 32
    %v2690 = vpop.permute.xlu0 %2689
    %v2692 = vadd.f32 %v2682, %v2690
    %v2693 = vtanh.pop %v2692
    %2695 = vrot.lane.b32.xlu0 %v2693, 64
    %v2696 = vpop.permute.xlu0 %2695
    %v2698 = vmul.f32 %v2680, %v2696
    %v2699 = vld [vmem:[%s252] sm:$0x3]
    %2701 = vrot.lane.b32.xlu0 %v2698, 32
    %v2702 = vpop.permute.xlu0 %2701
    %v2703 = vsel %vm304, %v2702, 0
    %2705 = vmatprep.subr.mxu0 0.0
    %2706 = vmatpush1.msra.mxu0 0.0
    %2707 = vmatprep.subr.mxu0 0.0
    %2708 = vmatpush1.msra.mxu0 0.0
    %2709 = vmatprep.subr.mxu0 0.0
    %2710 = vmatpush1.msra.mxu0 0.0
    %2711 = vmatprep.subr.mxu0 0.0
    %2712 = vmatpush1.msra.mxu0 0.0
    %2713 = vmatprep.subr.mxu0 0.0
    %2714 = vmatpush1.msra.mxu0 0.0
    %2715 = vmatprep.subr.mxu0 0.0
    %2716 = vmatpush1.msra.mxu0 0.0
    %2717 = vmatprep.subr.mxu0 0.0
    %2718 = vmatpush1.msra.mxu0 0.0
    %2719 = vmatprep.subr.mxu0 0.0
    %2720 = vmatpush1.msra.mxu0 0.0
    %2721 = vmatprep.subr.mxu0 0.0
    %2722 = vmatpush1.msra.mxu0 0.0
    %2723 = vmatprep.subr.mxu0 0.0
    %2724 = vmatpush1.msra.mxu0 0.0
    %2725 = vmatprep.subr.mxu0 0.0
    %2726 = vmatpush1.msra.mxu0 0.0
    %2727 = vmatprep.subr.mxu0 0.0
    %2728 = vmatpush1.msra.mxu0 0.0
    %2729 = vmatprep.subr.mxu0 0.0
    %2730 = vmatpush1.msra.mxu0 %v2400
    %2731 = vmatprep.subr.mxu0 0.0
    %2732 = vmatpush1.msra.mxu0 %v2399
    %2733 = vmatprep.subr.mxu0 0.0
    %2734 = vmatpush1.msra.mxu0 %v2398
    %2735 = vmatprep.subr.mxu0 0.0
    %2736 = vmatpush1.msra.mxu0 %v2397
    %2737 = vmatprep.subr.mxu0 0.0
    %2738 = vmatpush2.msra.mxu0 0.0
    %2739 = vmatprep.subr.mxu0 0.0
    %2740 = vmatpush2.msra.mxu0 0.0
    %2741 = vmatprep.subr.mxu0 0.0
    %2742 = vmatpush2.msra.mxu0 0.0
    %2743 = vmatprep.subr.mxu0 0.0
    %2744 = vmatpush2.msra.mxu0 0.0
    %2745 = vmatprep.subr.mxu0 0.0
    %2746 = vmatpush2.msra.mxu0 0.0
    %2747 = vmatprep.subr.mxu0 0.0
    %2748 = vmatpush2.msra.mxu0 0.0
    %2749 = vmatprep.subr.mxu0 0.0
    %2750 = vmatpush2.msra.mxu0 0.0
    %2751 = vmatprep.subr.mxu0 0.0
    %2752 = vmatpush2.msra.mxu0 0.0
    %2753 = vmatprep.subr.mxu0 0.0
    %2754 = vmatpush2.msra.mxu0 0.0
    %2755 = vmatprep.subr.mxu0 0.0
    %2756 = vmatpush2.msra.mxu0 0.0
    %2757 = vmatprep.subr.mxu0 0.0
    %2758 = vmatpush2.msra.mxu0 0.0
    %2759 = vmatprep.subr.mxu0 0.0
    %2760 = vmatpush2.msra.mxu0 0.0
    %2761 = vmatprep.subr.mxu0 0.0
    %2762 = vmatpush2.msra.mxu0 0.0
    %2763 = vmatprep.subr.mxu0 0.0
    %2764 = vmatpush2.msra.mxu0 0.0
    %2765 = vmatprep.subr.mxu0 0.0
    %2766 = vmatpush2.msra.mxu0 0.0
    %2767 = vmatprep.subr.mxu0 0.0
    %2768 = vmatpush2.msra.mxu0 0.0
    %2769 = vmatprep.mubr.f32.mxu0 0.0
    %2770 = vmatmul.mubr.f32.gmra.mxu0 %v2703
    %v2771 = vpop.f32.mrf.mxu0
    %v2772 = vadd.f32 0.0, %v2771
    %v2773 = vpop.f32.mrf.mxu0
    %2774 = vdwg.mxu0
    %v2775 = vadd.f32 %v2699, %v2772
    %v2776 = vxor.u32 %v2775, 2147483648
    %v2777 = vmul.f32 %v2776, 1.442695
    %v2778 = vpow.pop %v2777
    %v2779 = vadd.f32 %v2778, 1.0
    %v2780 = vrcp.pop %v2779
    %v2781 = vmul.f32 1.0, %v2780
    %v2782 = vtanh.pop %v2775
    %v2783 = vmul.f32 %v2781, %v2692
    %2785 = vrot.lane.b32.xlu0 %v2782, 64
    %v2786 = vpop.permute.xlu0 %2785
    %v2788 = vmul.f32 %v2781, %v2786
    %2790 = vrot.lane.b32.xlu0 %v2788, 32
    %v2791 = vpop.permute.xlu0 %2790
    %v2793 = vadd.f32 %v2783, %v2791
    %v2794 = vtanh.pop %v2793
    %2796 = vrot.lane.b32.xlu0 %v2794, 64
    %v2797 = vpop.permute.xlu0 %2796
    %v2799 = vmul.f32 %v2781, %v2797
    %v2800 = vld [vmem:[%s261] sm:$0x3]
    %2802 = vrot.lane.b32.xlu0 %v2799, 32
    %v2803 = vpop.permute.xlu0 %2802
    %v2804 = vsel %vm304, %v2803, 0
    %2806 = vmatprep.subr.mxu0 0.0
    %2807 = vmatpush1.msra.mxu0 0.0
    %2808 = vmatprep.subr.mxu0 0.0
    %2809 = vmatpush1.msra.mxu0 0.0
    %2810 = vmatprep.subr.mxu0 0.0
    %2811 = vmatpush1.msra.mxu0 0.0
    %2812 = vmatprep.subr.mxu0 0.0
    %2813 = vmatpush1.msra.mxu0 0.0
    %2814 = vmatprep.subr.mxu0 0.0
    %2815 = vmatpush1.msra.mxu0 0.0
    %2816 = vmatprep.subr.mxu0 0.0
    %2817 = vmatpush1.msra.mxu0 0.0
    %2818 = vmatprep.subr.mxu0 0.0
    %2819 = vmatpush1.msra.mxu0 0.0
    %2820 = vmatprep.subr.mxu0 0.0
    %2821 = vmatpush1.msra.mxu0 0.0
    %2822 = vmatprep.subr.mxu0 0.0
    %2823 = vmatpush1.msra.mxu0 0.0
    %2824 = vmatprep.subr.mxu0 0.0
    %2825 = vmatpush1.msra.mxu0 0.0
    %2826 = vmatprep.subr.mxu0 0.0
    %2827 = vmatpush1.msra.mxu0 0.0
    %2828 = vmatprep.subr.mxu0 0.0
    %2829 = vmatpush1.msra.mxu0 0.0
    %2830 = vmatprep.subr.mxu0 0.0
    %2831 = vmatpush1.msra.mxu0 %v2400
    %2832 = vmatprep.subr.mxu0 0.0
    %2833 = vmatpush1.msra.mxu0 %v2399
    %2834 = vmatprep.subr.mxu0 0.0
    %2835 = vmatpush1.msra.mxu0 %v2398
    %2836 = vmatprep.subr.mxu0 0.0
    %2837 = vmatpush1.msra.mxu0 %v2397
    %2838 = vmatprep.subr.mxu0 0.0
    %2839 = vmatpush2.msra.mxu0 0.0
    %2840 = vmatprep.subr.mxu0 0.0
    %2841 = vmatpush2.msra.mxu0 0.0
    %2842 = vmatprep.subr.mxu0 0.0
    %2843 = vmatpush2.msra.mxu0 0.0
    %2844 = vmatprep.subr.mxu0 0.0
    %2845 = vmatpush2.msra.mxu0 0.0
    %2846 = vmatprep.subr.mxu0 0.0
    %2847 = vmatpush2.msra.mxu0 0.0
    %2848 = vmatprep.subr.mxu0 0.0
    %2849 = vmatpush2.msra.mxu0 0.0
    %2850 = vmatprep.subr.mxu0 0.0
    %2851 = vmatpush2.msra.mxu0 0.0
    %2852 = vmatprep.subr.mxu0 0.0
    %2853 = vmatpush2.msra.mxu0 0.0
    %2854 = vmatprep.subr.mxu0 0.0
    %2855 = vmatpush2.msra.mxu0 0.0
    %2856 = vmatprep.subr.mxu0 0.0
    %2857 = vmatpush2.msra.mxu0 0.0
    %2858 = vmatprep.subr.mxu0 0.0
    %2859 = vmatpush2.msra.mxu0 0.0
    %2860 = vmatprep.subr.mxu0 0.0
    %2861 = vmatpush2.msra.mxu0 0.0
    %2862 = vmatprep.subr.mxu0 0.0
    %2863 = vmatpush2.msra.mxu0 0.0
    %2864 = vmatprep.subr.mxu0 0.0
    %2865 = vmatpush2.msra.mxu0 0.0
    %2866 = vmatprep.subr.mxu0 0.0
    %2867 = vmatpush2.msra.mxu0 0.0
    %2868 = vmatprep.subr.mxu0 0.0
    %2869 = vmatpush2.msra.mxu0 0.0
    %2870 = vmatprep.mubr.f32.mxu0 0.0
    %2871 = vmatmul.mubr.f32.gmra.mxu0 %v2804
    %v2872 = vpop.f32.mrf.mxu0
    %v2873 = vadd.f32 0.0, %v2872
    %v2874 = vpop.f32.mrf.mxu0
    %2875 = vdwg.mxu0
    %v2876 = vadd.f32 %v2800, %v2873
    %v2877 = vxor.u32 %v2876, 2147483648
    %v2878 = vmul.f32 %v2877, 1.442695
    %v2879 = vpow.pop %v2878
    %v2880 = vadd.f32 %v2879, 1.0
    %v2881 = vrcp.pop %v2880
    %v2882 = vmul.f32 1.0, %v2881
    %v2883 = vtanh.pop %v2876
    %v2884 = vmul.f32 %v2882, %v2793
    %2886 = vrot.lane.b32.xlu0 %v2883, 64
    %v2887 = vpop.permute.xlu0 %2886
    %v2889 = vmul.f32 %v2882, %v2887
    %2891 = vrot.lane.b32.xlu0 %v2889, 32
    %v2892 = vpop.permute.xlu0 %2891
    %v2894 = vadd.f32 %v2884, %v2892
    %v2895 = vtanh.pop %v2894
    %2897 = vrot.lane.b32.xlu0 %v2895, 64
    %v2898 = vpop.permute.xlu0 %2897
    %v2900 = vmul.f32 %v2882, %v2898
    %v2901 = vld [vmem:[%s270] sm:$0x3]
    %2903 = vrot.lane.b32.xlu0 %v2900, 32
    %v2904 = vpop.permute.xlu0 %2903
    %v2905 = vsel %vm304, %v2904, 0
    %2907 = vmatprep.subr.mxu0 0.0
    %2908 = vmatpush1.msra.mxu0 0.0
    %2909 = vmatprep.subr.mxu0 0.0
    %2910 = vmatpush1.msra.mxu0 0.0
    %2911 = vmatprep.subr.mxu0 0.0
    %2912 = vmatpush1.msra.mxu0 0.0
    %2913 = vmatprep.subr.mxu0 0.0
    %2914 = vmatpush1.msra.mxu0 0.0
    %2915 = vmatprep.subr.mxu0 0.0
    %2916 = vmatpush1.msra.mxu0 0.0
    %2917 = vmatprep.subr.mxu0 0.0
    %2918 = vmatpush1.msra.mxu0 0.0
    %2919 = vmatprep.subr.mxu0 0.0
    %2920 = vmatpush1.msra.mxu0 0.0
    %2921 = vmatprep.subr.mxu0 0.0
    %2922 = vmatpush1.msra.mxu0 0.0
    %2923 = vmatprep.subr.mxu0 0.0
    %2924 = vmatpush1.msra.mxu0 0.0
    %2925 = vmatprep.subr.mxu0 0.0
    %2926 = vmatpush1.msra.mxu0 0.0
    %2927 = vmatprep.subr.mxu0 0.0
    %2928 = vmatpush1.msra.mxu0 0.0
    %2929 = vmatprep.subr.mxu0 0.0
    %2930 = vmatpush1.msra.mxu0 0.0
    %2931 = vmatprep.subr.mxu0 0.0
    %2932 = vmatpush1.msra.mxu0 %v2400
    %2933 = vmatprep.subr.mxu0 0.0
    %2934 = vmatpush1.msra.mxu0 %v2399
    %2935 = vmatprep.subr.mxu0 0.0
    %2936 = vmatpush1.msra.mxu0 %v2398
    %2937 = vmatprep.subr.mxu0 0.0
    %2938 = vmatpush1.msra.mxu0 %v2397
    %2939 = vmatprep.subr.mxu0 0.0
    %2940 = vmatpush2.msra.mxu0 0.0
    %2941 = vmatprep.subr.mxu0 0.0
    %2942 = vmatpush2.msra.mxu0 0.0
    %2943 = vmatprep.subr.mxu0 0.0
    %2944 = vmatpush2.msra.mxu0 0.0
    %2945 = vmatprep.subr.mxu0 0.0
    %2946 = vmatpush2.msra.mxu0 0.0
    %2947 = vmatprep.subr.mxu0 0.0
    %2948 = vmatpush2.msra.mxu0 0.0
    %2949 = vmatprep.subr.mxu0 0.0
    %2950 = vmatpush2.msra.mxu0 0.0
    %2951 = vmatprep.subr.mxu0 0.0
    %2952 = vmatpush2.msra.mxu0 0.0
    %2953 = vmatprep.subr.mxu0 0.0
    %2954 = vmatpush2.msra.mxu0 0.0
    %2955 = vmatprep.subr.mxu0 0.0
    %2956 = vmatpush2.msra.mxu0 0.0
    %2957 = vmatprep.subr.mxu0 0.0
    %2958 = vmatpush2.msra.mxu0 0.0
    %2959 = vmatprep.subr.mxu0 0.0
    %2960 = vmatpush2.msra.mxu0 0.0
    %2961 = vmatprep.subr.mxu0 0.0
    %2962 = vmatpush2.msra.mxu0 0.0
    %2963 = vmatprep.subr.mxu0 0.0
    %2964 = vmatpush2.msra.mxu0 0.0
    %2965 = vmatprep.subr.mxu0 0.0
    %2966 = vmatpush2.msra.mxu0 0.0
    %2967 = vmatprep.subr.mxu0 0.0
    %2968 = vmatpush2.msra.mxu0 0.0
    %2969 = vmatprep.subr.mxu0 0.0
    %2970 = vmatpush2.msra.mxu0 0.0
    %2971 = vmatprep.mubr.f32.mxu0 0.0
    %2972 = vmatmul.mubr.f32.gmra.mxu0 %v2905
    %v2973 = vpop.f32.mrf.mxu0
    %v2974 = vadd.f32 0.0, %v2973
    %v2975 = vpop.f32.mrf.mxu0
    %2976 = vdwg.mxu0
    %v2977 = vadd.f32 %v2901, %v2974
    %v2978 = vxor.u32 %v2977, 2147483648
    %v2979 = vmul.f32 %v2978, 1.442695
    %v2980 = vpow.pop %v2979
    %v2981 = vadd.f32 %v2980, 1.0
    %v2982 = vrcp.pop %v2981
    %v2983 = vmul.f32 1.0, %v2982
    %v2984 = vtanh.pop %v2977
    %v2985 = vmul.f32 %v2983, %v2894
    %2987 = vrot.lane.b32.xlu0 %v2984, 64
    %v2988 = vpop.permute.xlu0 %2987
    %v2990 = vmul.f32 %v2983, %v2988
    %2992 = vrot.lane.b32.xlu0 %v2990, 32
    %v2993 = vpop.permute.xlu0 %2992
    %v2995 = vadd.f32 %v2985, %v2993
    %v2996 = vtanh.pop %v2995
    %2998 = vrot.lane.b32.xlu0 %v2996, 64
    %v2999 = vpop.permute.xlu0 %2998
    %v3001 = vmul.f32 %v2983, %v2999
    %v3002 = vld [vmem:[%s279] sm:$0x3]
    %3004 = vrot.lane.b32.xlu0 %v3001, 32
    %v3005 = vpop.permute.xlu0 %3004
    %v3006 = vsel %vm304, %v3005, 0
    %3008 = vmatprep.subr.mxu0 0.0
    %3009 = vmatpush1.msra.mxu0 0.0
    %3010 = vmatprep.subr.mxu0 0.0
    %3011 = vmatpush1.msra.mxu0 0.0
    %3012 = vmatprep.subr.mxu0 0.0
    %3013 = vmatpush1.msra.mxu0 0.0
    %3014 = vmatprep.subr.mxu0 0.0
    %3015 = vmatpush1.msra.mxu0 0.0
    %3016 = vmatprep.subr.mxu0 0.0
    %3017 = vmatpush1.msra.mxu0 0.0
    %3018 = vmatprep.subr.mxu0 0.0
    %3019 = vmatpush1.msra.mxu0 0.0
    %3020 = vmatprep.subr.mxu0 0.0
    %3021 = vmatpush1.msra.mxu0 0.0
    %3022 = vmatprep.subr.mxu0 0.0
    %3023 = vmatpush1.msra.mxu0 0.0
    %3024 = vmatprep.subr.mxu0 0.0
    %3025 = vmatpush1.msra.mxu0 0.0
    %3026 = vmatprep.subr.mxu0 0.0
    %3027 = vmatpush1.msra.mxu0 0.0
    %3028 = vmatprep.subr.mxu0 0.0
    %3029 = vmatpush1.msra.mxu0 0.0
    %3030 = vmatprep.subr.mxu0 0.0
    %3031 = vmatpush1.msra.mxu0 0.0
    %3032 = vmatprep.subr.mxu0 0.0
    %3033 = vmatpush1.msra.mxu0 %v2400
    %3034 = vmatprep.subr.mxu0 0.0
    %3035 = vmatpush1.msra.mxu0 %v2399
    %3036 = vmatprep.subr.mxu0 0.0
    %3037 = vmatpush1.msra.mxu0 %v2398
    %3038 = vmatprep.subr.mxu0 0.0
    %3039 = vmatpush1.msra.mxu0 %v2397
    %3040 = vmatprep.subr.mxu0 0.0
    %3041 = vmatpush2.msra.mxu0 0.0
    %3042 = vmatprep.subr.mxu0 0.0
    %3043 = vmatpush2.msra.mxu0 0.0
    %3044 = vmatprep.subr.mxu0 0.0
    %3045 = vmatpush2.msra.mxu0 0.0
    %3046 = vmatprep.subr.mxu0 0.0
    %3047 = vmatpush2.msra.mxu0 0.0
    %3048 = vmatprep.subr.mxu0 0.0
    %3049 = vmatpush2.msra.mxu0 0.0
    %3050 = vmatprep.subr.mxu0 0.0
    %3051 = vmatpush2.msra.mxu0 0.0
    %3052 = vmatprep.subr.mxu0 0.0
    %3053 = vmatpush2.msra.mxu0 0.0
    %3054 = vmatprep.subr.mxu0 0.0
    %3055 = vmatpush2.msra.mxu0 0.0
    %3056 = vmatprep.subr.mxu0 0.0
    %3057 = vmatpush2.msra.mxu0 0.0
    %3058 = vmatprep.subr.mxu0 0.0
    %3059 = vmatpush2.msra.mxu0 0.0
    %3060 = vmatprep.subr.mxu0 0.0
    %3061 = vmatpush2.msra.mxu0 0.0
    %3062 = vmatprep.subr.mxu0 0.0
    %3063 = vmatpush2.msra.mxu0 0.0
    %3064 = vmatprep.subr.mxu0 0.0
    %3065 = vmatpush2.msra.mxu0 0.0
    %3066 = vmatprep.subr.mxu0 0.0
    %3067 = vmatpush2.msra.mxu0 0.0
    %3068 = vmatprep.subr.mxu0 0.0
    %3069 = vmatpush2.msra.mxu0 0.0
    %3070 = vmatprep.subr.mxu0 0.0
    %3071 = vmatpush2.msra.mxu0 0.0
    %3072 = vmatprep.mubr.f32.mxu0 0.0
    %3073 = vmatmul.mubr.f32.gmra.mxu0 %v3006
    %v3074 = vpop.f32.mrf.mxu0
    %v3075 = vadd.f32 0.0, %v3074
    %v3076 = vpop.f32.mrf.mxu0
    %3077 = vdwg.mxu0
    %v3078 = vadd.f32 %v3002, %v3075
    %v3079 = vxor.u32 %v3078, 2147483648
    %v3080 = vmul.f32 %v3079, 1.442695
    %v3081 = vpow.pop %v3080
    %v3082 = vadd.f32 %v3081, 1.0
    %v3083 = vrcp.pop %v3082
    %v3084 = vmul.f32 1.0, %v3083
    %v3085 = vtanh.pop %v3078
    %v3086 = vmul.f32 %v3084, %v2995
    %3088 = vrot.lane.b32.xlu0 %v3085, 64
    %v3089 = vpop.permute.xlu0 %3088
    %v3091 = vmul.f32 %v3084, %v3089
    %3093 = vrot.lane.b32.xlu0 %v3091, 32
    %v3094 = vpop.permute.xlu0 %3093
    %v3096 = vadd.f32 %v3086, %v3094
    %v3097 = vtanh.pop %v3096
    %3099 = vrot.lane.b32.xlu0 %v3097, 64
    %v3100 = vpop.permute.xlu0 %3099
    %v3102 = vmul.f32 %v3084, %v3100
    %v3103 = vld [vmem:[%s287] sm:$0x3]
    %3105 = vrot.lane.b32.xlu0 %v3102, 32
    %v3106 = vpop.permute.xlu0 %3105
    %v3107 = vsel %vm304, %v3106, 0
    %3109 = vmatprep.subr.mxu0 0.0
    %3110 = vmatpush1.msra.mxu0 0.0
    %3111 = vmatprep.subr.mxu0 0.0
    %3112 = vmatpush1.msra.mxu0 0.0
    %3113 = vmatprep.subr.mxu0 0.0
    %3114 = vmatpush1.msra.mxu0 0.0
    %3115 = vmatprep.subr.mxu0 0.0
    %3116 = vmatpush1.msra.mxu0 0.0
    %3117 = vmatprep.subr.mxu0 0.0
    %3118 = vmatpush1.msra.mxu0 0.0
    %3119 = vmatprep.subr.mxu0 0.0
    %3120 = vmatpush1.msra.mxu0 0.0
    %3121 = vmatprep.subr.mxu0 0.0
    %3122 = vmatpush1.msra.mxu0 0.0
    %3123 = vmatprep.subr.mxu0 0.0
    %3124 = vmatpush1.msra.mxu0 0.0
    %3125 = vmatprep.subr.mxu0 0.0
    %3126 = vmatpush1.msra.mxu0 0.0
    %3127 = vmatprep.subr.mxu0 0.0
    %3128 = vmatpush1.msra.mxu0 0.0
    %3129 = vmatprep.subr.mxu0 0.0
    %3130 = vmatpush1.msra.mxu0 0.0
    %3131 = vmatprep.subr.mxu0 0.0
    %3132 = vmatpush1.msra.mxu0 0.0
    %3133 = vmatprep.subr.mxu0 0.0
    %3134 = vmatpush1.msra.mxu0 %v2400
    %3135 = vmatprep.subr.mxu0 0.0
    %3136 = vmatpush1.msra.mxu0 %v2399
    %3137 = vmatprep.subr.mxu0 0.0
    %3138 = vmatpush1.msra.mxu0 %v2398
    %3139 = vmatprep.subr.mxu0 0.0
    %3140 = vmatpush1.msra.mxu0 %v2397
    %3141 = vmatprep.subr.mxu0 0.0
    %3142 = vmatpush2.msra.mxu0 0.0
    %3143 = vmatprep.subr.mxu0 0.0
    %3144 = vmatpush2.msra.mxu0 0.0
    %3145 = vmatprep.subr.mxu0 0.0
    %3146 = vmatpush2.msra.mxu0 0.0
    %3147 = vmatprep.subr.mxu0 0.0
    %3148 = vmatpush2.msra.mxu0 0.0
    %3149 = vmatprep.subr.mxu0 0.0
    %3150 = vmatpush2.msra.mxu0 0.0
    %3151 = vmatprep.subr.mxu0 0.0
    %3152 = vmatpush2.msra.mxu0 0.0
    %3153 = vmatprep.subr.mxu0 0.0
    %3154 = vmatpush2.msra.mxu0 0.0
    %3155 = vmatprep.subr.mxu0 0.0
    %3156 = vmatpush2.msra.mxu0 0.0
    %3157 = vmatprep.subr.mxu0 0.0
    %3158 = vmatpush2.msra.mxu0 0.0
    %3159 = vmatprep.subr.mxu0 0.0
    %3160 = vmatpush2.msra.mxu0 0.0
    %3161 = vmatprep.subr.mxu0 0.0
    %3162 = vmatpush2.msra.mxu0 0.0
    %3163 = vmatprep.subr.mxu0 0.0
    %3164 = vmatpush2.msra.mxu0 0.0
    %3165 = vmatprep.subr.mxu0 0.0
    %3166 = vmatpush2.msra.mxu0 0.0
    %3167 = vmatprep.subr.mxu0 0.0
    %3168 = vmatpush2.msra.mxu0 0.0
    %3169 = vmatprep.subr.mxu0 0.0
    %3170 = vmatpush2.msra.mxu0 0.0
    %3171 = vmatprep.subr.mxu0 0.0
    %3172 = vmatpush2.msra.mxu0 0.0
    %3173 = vmatprep.mubr.f32.mxu0 0.0
    %3174 = vmatmul.mubr.f32.gmra.mxu0 %v3107
    %v3175 = vpop.f32.mrf.mxu0
    %v3176 = vadd.f32 0.0, %v3175
    %v3177 = vpop.f32.mrf.mxu0
    %3178 = vdwg.mxu0
    %v3179 = vadd.f32 %v3103, %v3176
    %v3180 = vxor.u32 %v3179, 2147483648
    %v3181 = vmul.f32 %v3180, 1.442695
    %v3182 = vpow.pop %v3181
    %v3183 = vadd.f32 %v3182, 1.0
    %v3184 = vrcp.pop %v3183
    %v3185 = vmul.f32 1.0, %v3184
    %v3186 = vtanh.pop %v3179
    %v3187 = vmul.f32 %v3185, %v3096
    %3189 = vrot.lane.b32.xlu0 %v3186, 64
    %v3190 = vpop.permute.xlu0 %3189
    %v3192 = vmul.f32 %v3185, %v3190
    %3194 = vrot.lane.b32.xlu0 %v3192, 32
    %v3195 = vpop.permute.xlu0 %3194
    %v3197 = vadd.f32 %v3187, %v3195
    %v3198 = vtanh.pop %v3197
    %3200 = vrot.lane.b32.xlu0 %v3198, 64
    %v3201 = vpop.permute.xlu0 %3200
    %v3203 = vmul.f32 %v3185, %v3201
    %v3204 = vld [vmem:[%s292] sm:$0x3]
    %v3205 = vxor.u32 %v3204, 2147483648
    %v3206 = vmul.f32 %v3205, 1.442695
    %v3207 = vpow.pop %v3206
    %v3208 = vadd.f32 %v3207, 1.0
    %v3209 = vrcp.pop %v3208
    %v3210 = vmul.f32 1.0, %v3209
    %v3211 = vtanh.pop %v3204
    %v3212 = vmul.f32 %v3210, 0.0
    %3214 = vrot.lane.b32.xlu0 %v3211, 64
    %v3215 = vpop.permute.xlu0 %3214
    %v3217 = vmul.f32 %v3210, %v3215
    %3219 = vrot.lane.b32.xlu0 %v3217, 32
    %v3220 = vpop.permute.xlu0 %3219
    %v3222 = vadd.f32 %v3212, %v3220
    %v3223 = vtanh.pop %v3222
    %3225 = vrot.lane.b32.xlu0 %v3223, 64
    %v3226 = vpop.permute.xlu0 %3225
    %v3228 = vmul.f32 %v3210, %v3226
    %3230 = vrot.lane.b32.xlu0 %v3203, 32
    %v3231 = vpop.permute.xlu0 %3230
    %3234 = vrot.lane.b32.xlu0 %v3228, 64
    %v3235 = vpop.permute.xlu0 %3234
    %v3237 = vsel %vm304, %v3231, %v3235
    %v3238 = vld [vmem:[%s5 + $0x2] ss:$0 sm:$0xff]
    %v3239 = vld [vmem:[%s5 + $0x3] ss:$0 sm:$0xff]
    %vm3240 = vcmask 517120
    %v3241 = vsel %vm3240, %v3237, 0.0
    %3242 = vadd.xlane.f32.xlu0 %v3241
    %v3243 = vpop.xlane.xlu0 %3242
    %v3244 = vrcp.pop 64.0
    %v3245 = vmul.f32 %v3243, %v3244
    %v3246 = vsub.f32 %v3237, %v3245
    %v3247 = vmul.f32 %v3246, %v3246
    %v3248 = vsel %vm3240, %v3247, 0.0
    %3249 = vadd.xlane.f32.xlu0 %v3248
    %v3250 = vpop.xlane.xlu0 %3249
    %v3251 = vmul.f32 %v3250, %v3244
    %v3252 = vadd.f32 %v3251, 1e-05
    %v3253 = vrsqrt.pop %v3252
    %v3254 = vmul.f32 %v3246, %v3253
    %v3255 = vmul.f32 %v3254, %v3238
    %v3256 = vadd.f32 %v3255, %v3239
    %v3257 = vld [vmem:[#allocation15] sm:$0xff]
    %v3258 = vld [vmem:[#allocation15 + $0x8] sm:$0xff]
    %v3259 = vld [vmem:[#allocation15 + $0x10] sm:$0xff]
    %v3260 = vld [vmem:[#allocation15 + $0x18] sm:$0xff]
    %v3261 = vld [vmem:[#allocation15 + $0x20] sm:$0xff]
    %v3262 = vld [vmem:[#allocation15 + $0x28] sm:$0xff]
    %v3263 = vld [vmem:[#allocation15 + $0x30] sm:$0xff]
    %v3264 = vld [vmem:[#allocation15 + $0x38] sm:$0xff]
    %v3265 = vld [vmem:[#allocation15 + $0x40] sm:$0xff]
    %v3266 = vld [vmem:[#allocation15 + $0x48] sm:$0xff]
    %v3267 = vld [vmem:[#allocation15 + $0x50] sm:$0xff]
    %v3268 = vld [vmem:[#allocation15 + $0x58] sm:$0xff]
    %v3269 = vld [vmem:[#allocation15 + $0x60] sm:$0xff]
    %v3270 = vld [vmem:[#allocation15 + $0x68] sm:$0xff]
    %v3271 = vld [vmem:[#allocation15 + $0x70] sm:$0xff]
    %v3272 = vld [vmem:[#allocation15 + $0x78] sm:$0xff]
    %s3273 = scalar_lea.vmem %s5, 4
    %v3274 = vld [vmem:[%s3273] ss:$8 sm:$0x3]
    %v3276 = vlaneseq
    %v3277 = vshrl.u32 %v3276, 7
    %v3278 = vsub.s32 0, %v3277
    %v3279 = vrot.slane %v3274, %v3278
    %v3280 = vlaneseq
    %v3281 = vshrl.u32 %v3280, 7
    %v3282 = vsub.s32 1, %v3281
    %v3283 = vrot.slane %v3274, %v3282
    %vm3286 = vcmask 523264
    %v3288 = vsel %vm3286, %v3256, 0
    %3290 = vmatprep.subr.mxu0 0.0
    %3291 = vmatpush1.msra.mxu0 0.0
    %3292 = vmatprep.subr.mxu0 0.0
    %3293 = vmatpush1.msra.mxu0 0.0
    %3294 = vmatprep.subr.mxu0 0.0
    %3295 = vmatpush1.msra.mxu0 0.0
    %3296 = vmatprep.subr.mxu0 0.0
    %3297 = vmatpush1.msra.mxu0 0.0
    %3298 = vmatprep.subr.mxu0 0.0
    %3299 = vmatpush1.msra.mxu0 0.0
    %3300 = vmatprep.subr.mxu0 0.0
    %3301 = vmatpush1.msra.mxu0 0.0
    %3302 = vmatprep.subr.mxu0 0.0
    %3303 = vmatpush1.msra.mxu0 0.0
    %3304 = vmatprep.subr.mxu0 0.0
    %3305 = vmatpush1.msra.mxu0 0.0
    %3306 = vmatprep.subr.mxu0 %v3272
    %3307 = vmatpush1.msra.mxu0 %v3271
    %3308 = vmatprep.subr.mxu0 %v3270
    %3309 = vmatpush1.msra.mxu0 %v3269
    %3310 = vmatprep.subr.mxu0 %v3268
    %3311 = vmatpush1.msra.mxu0 %v3267
    %3312 = vmatprep.subr.mxu0 %v3266
    %3313 = vmatpush1.msra.mxu0 %v3265
    %3314 = vmatprep.subr.mxu0 %v3264
    %3315 = vmatpush1.msra.mxu0 %v3263
    %3316 = vmatprep.subr.mxu0 %v3262
    %3317 = vmatpush1.msra.mxu0 %v3261
    %3318 = vmatprep.subr.mxu0 %v3260
    %3319 = vmatpush1.msra.mxu0 %v3259
    %3320 = vmatprep.subr.mxu0 %v3258
    %3321 = vmatpush1.msra.mxu0 %v3257
    %3322 = vmatprep.subr.mxu0 0.0
    %3323 = vmatpush2.msra.mxu0 0.0
    %3324 = vmatprep.subr.mxu0 0.0
    %3325 = vmatpush2.msra.mxu0 0.0
    %3326 = vmatprep.subr.mxu0 0.0
    %3327 = vmatpush2.msra.mxu0 0.0
    %3328 = vmatprep.subr.mxu0 0.0
    %3329 = vmatpush2.msra.mxu0 0.0
    %3330 = vmatprep.subr.mxu0 0.0
    %3331 = vmatpush2.msra.mxu0 0.0
    %3332 = vmatprep.subr.mxu0 0.0
    %3333 = vmatpush2.msra.mxu0 0.0
    %3334 = vmatprep.subr.mxu0 0.0
    %3335 = vmatpush2.msra.mxu0 0.0
    %3336 = vmatprep.subr.mxu0 0.0
    %3337 = vmatpush2.msra.mxu0 0.0
    %3338 = vmatprep.subr.mxu0 0.0
    %3339 = vmatpush2.msra.mxu0 0.0
    %3340 = vmatprep.subr.mxu0 0.0
    %3341 = vmatpush2.msra.mxu0 0.0
    %3342 = vmatprep.subr.mxu0 0.0
    %3343 = vmatpush2.msra.mxu0 0.0
    %3344 = vmatprep.subr.mxu0 0.0
    %3345 = vmatpush2.msra.mxu0 0.0
    %3346 = vmatprep.subr.mxu0 0.0
    %3347 = vmatpush2.msra.mxu0 0.0
    %3348 = vmatprep.subr.mxu0 0.0
    %3349 = vmatpush2.msra.mxu0 0.0
    %3350 = vmatprep.subr.mxu0 0.0
    %3351 = vmatpush2.msra.mxu0 0.0
    %3352 = vmatprep.subr.mxu0 0.0
    %3353 = vmatpush2.msra.mxu0 0.0
    %3354 = vmatprep.mubr.f32.mxu0 0.0
    %3355 = vmatmul.mubr.f32.gmra.mxu0 %v3288
    %v3356 = vpop.f32.mrf.mxu0
    %v3357 = vadd.f32 %v3279, %v3356
    %v3358 = vpop.f32.mrf.mxu0
    %v3359 = vadd.f32 %v3283, %v3358
    %3360 = vdwg.mxu0
    %v3361 = vmul.f32 %v3357, 0.25
    %3363 = vrot.lane.b32.xlu0 %v3361, 112
    %v3364 = vpop.permute.xlu0 %3363
    %3365 = vrot.lane.b32.xlu0 %v3361, 96
    %v3366 = vpop.permute.xlu0 %3365
    %3367 = vrot.lane.b32.xlu0 %v3361, 80
    %v3368 = vpop.permute.xlu0 %3367
    %3370 = vrot.lane.b32.xlu0 %v3357, 112
    %v3371 = vpop.permute.xlu0 %3370
    %3372 = vrot.lane.b32.xlu0 %v3357, 96
    %v3373 = vpop.permute.xlu0 %3372
    %3374 = vrot.lane.b32.xlu0 %v3357, 80
    %v3375 = vpop.permute.xlu0 %3374
    %3377 = vrot.lane.b32.xlu0 %v3359, 112
    %v3378 = vpop.permute.xlu0 %3377
    %3379 = vrot.lane.b32.xlu0 %v3359, 96
    %v3380 = vpop.permute.xlu0 %3379
    %3381 = vrot.lane.b32.xlu0 %v3359, 80
    %v3382 = vpop.permute.xlu0 %3381
    %3383 = vrot.lane.b32.xlu0 %v3357, 64
    %v3384 = vpop.permute.xlu0 %3383
    %vm3385 = vcmask 130048
    %v3386 = vsel %vm3385, %v3361, 0
    %v3388 = vsel %vm3385, %v3384, 0
    %3390 = vmatprep.subr.mxu0 0.0
    %3391 = vmatpush1.xpose.msra.mxu0 0.0
    %3392 = vmatprep.subr.mxu0 0.0
    %3393 = vmatpush1.xpose.msra.mxu0 0.0
    %3394 = vmatprep.subr.mxu0 0.0
    %3395 = vmatpush1.xpose.msra.mxu0 0.0
    %3396 = vmatprep.subr.mxu0 0.0
    %3397 = vmatpush1.xpose.msra.mxu0 0.0
    %3398 = vmatprep.subr.mxu0 0.0
    %3399 = vmatpush1.xpose.msra.mxu0 0.0
    %3400 = vmatprep.subr.mxu0 0.0
    %3401 = vmatpush1.xpose.msra.mxu0 0.0
    %3402 = vmatprep.subr.mxu0 0.0
    %3403 = vmatpush1.xpose.msra.mxu0 0.0
    %3404 = vmatprep.subr.mxu0 0.0
    %3405 = vmatpush1.xpose.msra.mxu0 0.0
    %3406 = vmatprep.subr.mxu0 0.0
    %3407 = vmatpush1.xpose.msra.mxu0 0.0
    %3408 = vmatprep.subr.mxu0 0.0
    %3409 = vmatpush1.xpose.msra.mxu0 0.0
    %3410 = vmatprep.subr.mxu0 0.0
    %3411 = vmatpush1.xpose.msra.mxu0 0.0
    %3412 = vmatprep.subr.mxu0 0.0
    %3413 = vmatpush1.xpose.msra.mxu0 0.0
    %3414 = vmatprep.subr.mxu0 0.0
    %3415 = vmatpush1.xpose.msra.mxu0 0.0
    %3416 = vmatprep.subr.mxu0 0.0
    %3417 = vmatpush1.xpose.msra.mxu0 0.0
    %3418 = vmatprep.subr.mxu0 0.0
    %3419 = vmatpush1.xpose.msra.mxu0 0.0
    %3420 = vmatprep.subr.mxu0 0.0
    %3421 = vmatpush1.xpose.msra.mxu0 %v3388
    %3422 = vmatprep.subr.mxu0 0.0
    %3423 = vmatpush2.xpose.msra.mxu0 0.0
    %3424 = vmatprep.subr.mxu0 0.0
    %3425 = vmatpush2.xpose.msra.mxu0 0.0
    %3426 = vmatprep.subr.mxu0 0.0
    %3427 = vmatpush2.xpose.msra.mxu0 0.0
    %3428 = vmatprep.subr.mxu0 0.0
    %3429 = vmatpush2.xpose.msra.mxu0 0.0
    %3430 = vmatprep.subr.mxu0 0.0
    %3431 = vmatpush2.xpose.msra.mxu0 0.0
    %3432 = vmatprep.subr.mxu0 0.0
    %3433 = vmatpush2.xpose.msra.mxu0 0.0
    %3434 = vmatprep.subr.mxu0 0.0
    %3435 = vmatpush2.xpose.msra.mxu0 0.0
    %3436 = vmatprep.subr.mxu0 0.0
    %3437 = vmatpush2.xpose.msra.mxu0 0.0
    %3438 = vmatprep.subr.mxu0 0.0
    %3439 = vmatpush2.xpose.msra.mxu0 0.0
    %3440 = vmatprep.subr.mxu0 0.0
    %3441 = vmatpush2.xpose.msra.mxu0 0.0
    %3442 = vmatprep.subr.mxu0 0.0
    %3443 = vmatpush2.xpose.msra.mxu0 0.0
    %3444 = vmatprep.subr.mxu0 0.0
    %3445 = vmatpush2.xpose.msra.mxu0 0.0
    %3446 = vmatprep.subr.mxu0 0.0
    %3447 = vmatpush2.xpose.msra.mxu0 0.0
    %3448 = vmatprep.subr.mxu0 0.0
    %3449 = vmatpush2.xpose.msra.mxu0 0.0
    %3450 = vmatprep.subr.mxu0 0.0
    %3451 = vmatpush2.xpose.msra.mxu0 0.0
    %3452 = vmatprep.subr.mxu0 0.0
    %3453 = vmatpush2.xpose.msra.mxu0 0.0
    %3454 = vmatprep.mubr.f32.mxu0 0.0
    %3455 = vmatmul.mubr.f32.gmra.mxu0 %v3386
    %v3456 = vpop.f32.mrf.mxu0
    %v3457 = vadd.f32 0.0, %v3456
    %v3458 = vpop.f32.mrf.mxu0
    %3459 = vdwg.mxu0
    %3460 = vrot.lane.b32.xlu0 %v3371, 64
    %v3461 = vpop.permute.xlu0 %3460
    %v3462 = vsel %vm3385, %v3364, 0
    %v3464 = vsel %vm3385, %v3461, 0
    %3466 = vmatprep.subr.mxu0 0.0
    %3467 = vmatpush1.xpose.msra.mxu0 0.0
    %3468 = vmatprep.subr.mxu0 0.0
    %3469 = vmatpush1.xpose.msra.mxu0 0.0
    %3470 = vmatprep.subr.mxu0 0.0
    %3471 = vmatpush1.xpose.msra.mxu0 0.0
    %3472 = vmatprep.subr.mxu0 0.0
    %3473 = vmatpush1.xpose.msra.mxu0 0.0
    %3474 = vmatprep.subr.mxu0 0.0
    %3475 = vmatpush1.xpose.msra.mxu0 0.0
    %3476 = vmatprep.subr.mxu0 0.0
    %3477 = vmatpush1.xpose.msra.mxu0 0.0
    %3478 = vmatprep.subr.mxu0 0.0
    %3479 = vmatpush1.xpose.msra.mxu0 0.0
    %3480 = vmatprep.subr.mxu0 0.0
    %3481 = vmatpush1.xpose.msra.mxu0 0.0
    %3482 = vmatprep.subr.mxu0 0.0
    %3483 = vmatpush1.xpose.msra.mxu0 0.0
    %3484 = vmatprep.subr.mxu0 0.0
    %3485 = vmatpush1.xpose.msra.mxu0 0.0
    %3486 = vmatprep.subr.mxu0 0.0
    %3487 = vmatpush1.xpose.msra.mxu0 0.0
    %3488 = vmatprep.subr.mxu0 0.0
    %3489 = vmatpush1.xpose.msra.mxu0 0.0
    %3490 = vmatprep.subr.mxu0 0.0
    %3491 = vmatpush1.xpose.msra.mxu0 0.0
    %3492 = vmatprep.subr.mxu0 0.0
    %3493 = vmatpush1.xpose.msra.mxu0 0.0
    %3494 = vmatprep.subr.mxu0 0.0
    %3495 = vmatpush1.xpose.msra.mxu0 0.0
    %3496 = vmatprep.subr.mxu0 0.0
    %3497 = vmatpush1.xpose.msra.mxu0 %v3464
    %3498 = vmatprep.subr.mxu0 0.0
    %3499 = vmatpush2.xpose.msra.mxu0 0.0
    %3500 = vmatprep.subr.mxu0 0.0
    %3501 = vmatpush2.xpose.msra.mxu0 0.0
    %3502 = vmatprep.subr.mxu0 0.0
    %3503 = vmatpush2.xpose.msra.mxu0 0.0
    %3504 = vmatprep.subr.mxu0 0.0
    %3505 = vmatpush2.xpose.msra.mxu0 0.0
    %3506 = vmatprep.subr.mxu0 0.0
    %3507 = vmatpush2.xpose.msra.mxu0 0.0
    %3508 = vmatprep.subr.mxu0 0.0
    %3509 = vmatpush2.xpose.msra.mxu0 0.0
    %3510 = vmatprep.subr.mxu0 0.0
    %3511 = vmatpush2.xpose.msra.mxu0 0.0
    %3512 = vmatprep.subr.mxu0 0.0
    %3513 = vmatpush2.xpose.msra.mxu0 0.0
    %3514 = vmatprep.subr.mxu0 0.0
    %3515 = vmatpush2.xpose.msra.mxu0 0.0
    %3516 = vmatprep.subr.mxu0 0.0
    %3517 = vmatpush2.xpose.msra.mxu0 0.0
    %3518 = vmatprep.subr.mxu0 0.0
    %3519 = vmatpush2.xpose.msra.mxu0 0.0
    %3520 = vmatprep.subr.mxu0 0.0
    %3521 = vmatpush2.xpose.msra.mxu0 0.0
    %3522 = vmatprep.subr.mxu0 0.0
    %3523 = vmatpush2.xpose.msra.mxu0 0.0
    %3524 = vmatprep.subr.mxu0 0.0
    %3525 = vmatpush2.xpose.msra.mxu0 0.0
    %3526 = vmatprep.subr.mxu0 0.0
    %3527 = vmatpush2.xpose.msra.mxu0 0.0
    %3528 = vmatprep.subr.mxu0 0.0
    %3529 = vmatpush2.xpose.msra.mxu0 0.0
    %3530 = vmatprep.mubr.f32.mxu0 0.0
    %3531 = vmatmul.mubr.f32.gmra.mxu0 %v3462
    %v3532 = vpop.f32.mrf.mxu0
    %v3533 = vadd.f32 0.0, %v3532
    %v3534 = vpop.f32.mrf.mxu0
    %3535 = vdwg.mxu0
    %3536 = vrot.lane.b32.xlu0 %v3373, 64
    %v3537 = vpop.permute.xlu0 %3536
    %v3538 = vsel %vm3385, %v3366, 0
    %v3540 = vsel %vm3385, %v3537, 0
    %3542 = vmatprep.subr.mxu0 0.0
    %3543 = vmatpush1.xpose.msra.mxu0 0.0
    %3544 = vmatprep.subr.mxu0 0.0
    %3545 = vmatpush1.xpose.msra.mxu0 0.0
    %3546 = vmatprep.subr.mxu0 0.0
    %3547 = vmatpush1.xpose.msra.mxu0 0.0
    %3548 = vmatprep.subr.mxu0 0.0
    %3549 = vmatpush1.xpose.msra.mxu0 0.0
    %3550 = vmatprep.subr.mxu0 0.0
    %3551 = vmatpush1.xpose.msra.mxu0 0.0
    %3552 = vmatprep.subr.mxu0 0.0
    %3553 = vmatpush1.xpose.msra.mxu0 0.0
    %3554 = vmatprep.subr.mxu0 0.0
    %3555 = vmatpush1.xpose.msra.mxu0 0.0
    %3556 = vmatprep.subr.mxu0 0.0
    %3557 = vmatpush1.xpose.msra.mxu0 0.0
    %3558 = vmatprep.subr.mxu0 0.0
    %3559 = vmatpush1.xpose.msra.mxu0 0.0
    %3560 = vmatprep.subr.mxu0 0.0
    %3561 = vmatpush1.xpose.msra.mxu0 0.0
    %3562 = vmatprep.subr.mxu0 0.0
    %3563 = vmatpush1.xpose.msra.mxu0 0.0
    %3564 = vmatprep.subr.mxu0 0.0
    %3565 = vmatpush1.xpose.msra.mxu0 0.0
    %3566 = vmatprep.subr.mxu0 0.0
    %3567 = vmatpush1.xpose.msra.mxu0 0.0
    %3568 = vmatprep.subr.mxu0 0.0
    %3569 = vmatpush1.xpose.msra.mxu0 0.0
    %3570 = vmatprep.subr.mxu0 0.0
    %3571 = vmatpush1.xpose.msra.mxu0 0.0
    %3572 = vmatprep.subr.mxu0 0.0
    %3573 = vmatpush1.xpose.msra.mxu0 %v3540
    %3574 = vmatprep.subr.mxu0 0.0
    %3575 = vmatpush2.xpose.msra.mxu0 0.0
    %3576 = vmatprep.subr.mxu0 0.0
    %3577 = vmatpush2.xpose.msra.mxu0 0.0
    %3578 = vmatprep.subr.mxu0 0.0
    %3579 = vmatpush2.xpose.msra.mxu0 0.0
    %3580 = vmatprep.subr.mxu0 0.0
    %3581 = vmatpush2.xpose.msra.mxu0 0.0
    %3582 = vmatprep.subr.mxu0 0.0
    %3583 = vmatpush2.xpose.msra.mxu0 0.0
    %3584 = vmatprep.subr.mxu0 0.0
    %3585 = vmatpush2.xpose.msra.mxu0 0.0
    %3586 = vmatprep.subr.mxu0 0.0
    %3587 = vmatpush2.xpose.msra.mxu0 0.0
    %3588 = vmatprep.subr.mxu0 0.0
    %3589 = vmatpush2.xpose.msra.mxu0 0.0
    %3590 = vmatprep.subr.mxu0 0.0
    %3591 = vmatpush2.xpose.msra.mxu0 0.0
    %3592 = vmatprep.subr.mxu0 0.0
    %3593 = vmatpush2.xpose.msra.mxu0 0.0
    %3594 = vmatprep.subr.mxu0 0.0
    %3595 = vmatpush2.xpose.msra.mxu0 0.0
    %3596 = vmatprep.subr.mxu0 0.0
    %3597 = vmatpush2.xpose.msra.mxu0 0.0
    %3598 = vmatprep.subr.mxu0 0.0
    %3599 = vmatpush2.xpose.msra.mxu0 0.0
    %3600 = vmatprep.subr.mxu0 0.0
    %3601 = vmatpush2.xpose.msra.mxu0 0.0
    %3602 = vmatprep.subr.mxu0 0.0
    %3603 = vmatpush2.xpose.msra.mxu0 0.0
    %3604 = vmatprep.subr.mxu0 0.0
    %3605 = vmatpush2.xpose.msra.mxu0 0.0
    %3606 = vmatprep.mubr.f32.mxu0 0.0
    %3607 = vmatmul.mubr.f32.gmra.mxu0 %v3538
    %v3608 = vpop.f32.mrf.mxu0
    %v3609 = vadd.f32 0.0, %v3608
    %v3610 = vpop.f32.mrf.mxu0
    %3611 = vdwg.mxu0
    %3612 = vrot.lane.b32.xlu0 %v3375, 64
    %v3613 = vpop.permute.xlu0 %3612
    %v3614 = vsel %vm3385, %v3368, 0
    %v3616 = vsel %vm3385, %v3613, 0
    %3618 = vmatprep.subr.mxu0 0.0
    %3619 = vmatpush1.xpose.msra.mxu0 0.0
    %3620 = vmatprep.subr.mxu0 0.0
    %3621 = vmatpush1.xpose.msra.mxu0 0.0
    %3622 = vmatprep.subr.mxu0 0.0
    %3623 = vmatpush1.xpose.msra.mxu0 0.0
    %3624 = vmatprep.subr.mxu0 0.0
    %3625 = vmatpush1.xpose.msra.mxu0 0.0
    %3626 = vmatprep.subr.mxu0 0.0
    %3627 = vmatpush1.xpose.msra.mxu0 0.0
    %3628 = vmatprep.subr.mxu0 0.0
    %3629 = vmatpush1.xpose.msra.mxu0 0.0
    %3630 = vmatprep.subr.mxu0 0.0
    %3631 = vmatpush1.xpose.msra.mxu0 0.0
    %3632 = vmatprep.subr.mxu0 0.0
    %3633 = vmatpush1.xpose.msra.mxu0 0.0
    %3634 = vmatprep.subr.mxu0 0.0
    %3635 = vmatpush1.xpose.msra.mxu0 0.0
    %3636 = vmatprep.subr.mxu0 0.0
    %3637 = vmatpush1.xpose.msra.mxu0 0.0
    %3638 = vmatprep.subr.mxu0 0.0
    %3639 = vmatpush1.xpose.msra.mxu0 0.0
    %3640 = vmatprep.subr.mxu0 0.0
    %3641 = vmatpush1.xpose.msra.mxu0 0.0
    %3642 = vmatprep.subr.mxu0 0.0
    %3643 = vmatpush1.xpose.msra.mxu0 0.0
    %3644 = vmatprep.subr.mxu0 0.0
    %3645 = vmatpush1.xpose.msra.mxu0 0.0
    %3646 = vmatprep.subr.mxu0 0.0
    %3647 = vmatpush1.xpose.msra.mxu0 0.0
    %3648 = vmatprep.subr.mxu0 0.0
    %3649 = vmatpush1.xpose.msra.mxu0 %v3616
    %3650 = vmatprep.subr.mxu0 0.0
    %3651 = vmatpush2.xpose.msra.mxu0 0.0
    %3652 = vmatprep.subr.mxu0 0.0
    %3653 = vmatpush2.xpose.msra.mxu0 0.0
    %3654 = vmatprep.subr.mxu0 0.0
    %3655 = vmatpush2.xpose.msra.mxu0 0.0
    %3656 = vmatprep.subr.mxu0 0.0
    %3657 = vmatpush2.xpose.msra.mxu0 0.0
    %3658 = vmatprep.subr.mxu0 0.0
    %3659 = vmatpush2.xpose.msra.mxu0 0.0
    %3660 = vmatprep.subr.mxu0 0.0
    %3661 = vmatpush2.xpose.msra.mxu0 0.0
    %3662 = vmatprep.subr.mxu0 0.0
    %3663 = vmatpush2.xpose.msra.mxu0 0.0
    %3664 = vmatprep.subr.mxu0 0.0
    %3665 = vmatpush2.xpose.msra.mxu0 0.0
    %3666 = vmatprep.subr.mxu0 0.0
    %3667 = vmatpush2.xpose.msra.mxu0 0.0
    %3668 = vmatprep.subr.mxu0 0.0
    %3669 = vmatpush2.xpose.msra.mxu0 0.0
    %3670 = vmatprep.subr.mxu0 0.0
    %3671 = vmatpush2.xpose.msra.mxu0 0.0
    %3672 = vmatprep.subr.mxu0 0.0
    %3673 = vmatpush2.xpose.msra.mxu0 0.0
    %3674 = vmatprep.subr.mxu0 0.0
    %3675 = vmatpush2.xpose.msra.mxu0 0.0
    %3676 = vmatprep.subr.mxu0 0.0
    %3677 = vmatpush2.xpose.msra.mxu0 0.0
    %3678 = vmatprep.subr.mxu0 0.0
    %3679 = vmatpush2.xpose.msra.mxu0 0.0
    %3680 = vmatprep.subr.mxu0 0.0
    %3681 = vmatpush2.xpose.msra.mxu0 0.0
    %3682 = vmatprep.mubr.f32.mxu0 0.0
    %3683 = vmatmul.mubr.f32.gmra.mxu0 %v3614
    %v3684 = vpop.f32.mrf.mxu0
    %v3685 = vadd.f32 0.0, %v3684
    %v3686 = vpop.f32.mrf.mxu0
    %3687 = vdwg.mxu0
    %vm3688 = vcmask 9216
    %v3689 = vsel %vm3688, %v3457, -inf
    %3690 = vmax.xlane.f32.xlu0 %v3689
    %v3691 = vpop.xlane.xlu0 %3690
    %v3692 = vsel %vm3688, %v3533, -inf
    %3693 = vmax.xlane.f32.xlu0 %v3692
    %v3694 = vpop.xlane.xlu0 %3693
    %v3695 = vsel %vm3688, %v3609, -inf
    %3696 = vmax.xlane.f32.xlu0 %v3695
    %v3697 = vpop.xlane.xlu0 %3696
    %v3698 = vsel %vm3688, %v3685, -inf
    %3699 = vmax.xlane.f32.xlu0 %v3698
    %v3700 = vpop.xlane.xlu0 %3699
    %v3701 = vsub.f32 %v3457, %v3691
    %v3702 = vsub.f32 %v3533, %v3694
    %v3703 = vsub.f32 %v3609, %v3697
    %v3704 = vsub.f32 %v3685, %v3700
    %v3705 = vmul.f32 %v3701, 1.442695
    %v3706 = vpow.pop %v3705
    %v3707 = vmul.f32 %v3702, 1.442695
    %v3708 = vpow.pop %v3707
    %v3709 = vmul.f32 %v3703, 1.442695
    %v3710 = vpow.pop %v3709
    %v3711 = vmul.f32 %v3704, 1.442695
    %v3712 = vpow.pop %v3711
    %v3713 = vsel %vm3688, %v3706, 0.0
    %3714 = vadd.xlane.f32.xlu0 %v3713
    %v3715 = vpop.xlane.xlu0 %3714
    %v3716 = vsel %vm3688, %v3708, 0.0
    %3717 = vadd.xlane.f32.xlu0 %v3716
    %v3718 = vpop.xlane.xlu0 %3717
    %v3719 = vsel %vm3688, %v3710, 0.0
    %3720 = vadd.xlane.f32.xlu0 %v3719
    %v3721 = vpop.xlane.xlu0 %3720
    %v3722 = vsel %vm3688, %v3712, 0.0
    %3723 = vadd.xlane.f32.xlu0 %v3722
    %v3724 = vpop.xlane.xlu0 %3723
    %v3725 = vrcp.pop %v3715
    %v3726 = vrcp.pop %v3718
    %v3727 = vrcp.pop %v3721
    %v3728 = vrcp.pop %v3724
    %v3729 = vmul.f32 %v3706, %v3725
    %v3730 = vmul.f32 %v3708, %v3726
    %v3731 = vmul.f32 %v3710, %v3727
    %v3732 = vmul.f32 %v3712, %v3728
    %vm3733 = vcmask 15360
    %v3735 = vsel %vm3733, %v3729, 0
    %vm3737 = vcmask 1041408
    %v3738 = vsel %vm3737, %v3359, 0
    %3740 = vmatprep.subr.mxu0 0.0
    %3741 = vmatpush1.msra.mxu0 0.0
    %3742 = vmatprep.subr.mxu0 0.0
    %3743 = vmatpush1.msra.mxu0 0.0
    %3744 = vmatprep.subr.mxu0 0.0
    %3745 = vmatpush1.msra.mxu0 0.0
    %3746 = vmatprep.subr.mxu0 0.0
    %3747 = vmatpush1.msra.mxu0 0.0
    %3748 = vmatprep.subr.mxu0 0.0
    %3749 = vmatpush1.msra.mxu0 0.0
    %3750 = vmatprep.subr.mxu0 0.0
    %3751 = vmatpush1.msra.mxu0 0.0
    %3752 = vmatprep.subr.mxu0 0.0
    %3753 = vmatpush1.msra.mxu0 0.0
    %3754 = vmatprep.subr.mxu0 0.0
    %3755 = vmatpush1.msra.mxu0 0.0
    %3756 = vmatprep.subr.mxu0 0.0
    %3757 = vmatpush1.msra.mxu0 0.0
    %3758 = vmatprep.subr.mxu0 0.0
    %3759 = vmatpush1.msra.mxu0 0.0
    %3760 = vmatprep.subr.mxu0 0.0
    %3761 = vmatpush1.msra.mxu0 0.0
    %3762 = vmatprep.subr.mxu0 0.0
    %3763 = vmatpush1.msra.mxu0 0.0
    %3764 = vmatprep.subr.mxu0 0.0
    %3765 = vmatpush1.msra.mxu0 0.0
    %3766 = vmatprep.subr.mxu0 0.0
    %3767 = vmatpush1.msra.mxu0 0.0
    %3768 = vmatprep.subr.mxu0 0.0
    %3769 = vmatpush1.msra.mxu0 0.0
    %3770 = vmatprep.subr.mxu0 0.0
    %3771 = vmatpush1.msra.mxu0 %v3738
    %3772 = vmatprep.subr.mxu0 0.0
    %3773 = vmatpush2.msra.mxu0 0.0
    %3774 = vmatprep.subr.mxu0 0.0
    %3775 = vmatpush2.msra.mxu0 0.0
    %3776 = vmatprep.subr.mxu0 0.0
    %3777 = vmatpush2.msra.mxu0 0.0
    %3778 = vmatprep.subr.mxu0 0.0
    %3779 = vmatpush2.msra.mxu0 0.0
    %3780 = vmatprep.subr.mxu0 0.0
    %3781 = vmatpush2.msra.mxu0 0.0
    %3782 = vmatprep.subr.mxu0 0.0
    %3783 = vmatpush2.msra.mxu0 0.0
    %3784 = vmatprep.subr.mxu0 0.0
    %3785 = vmatpush2.msra.mxu0 0.0
    %3786 = vmatprep.subr.mxu0 0.0
    %3787 = vmatpush2.msra.mxu0 0.0
    %3788 = vmatprep.subr.mxu0 0.0
    %3789 = vmatpush2.msra.mxu0 0.0
    %3790 = vmatprep.subr.mxu0 0.0
    %3791 = vmatpush2.msra.mxu0 0.0
    %3792 = vmatprep.subr.mxu0 0.0
    %3793 = vmatpush2.msra.mxu0 0.0
    %3794 = vmatprep.subr.mxu0 0.0
    %3795 = vmatpush2.msra.mxu0 0.0
    %3796 = vmatprep.subr.mxu0 0.0
    %3797 = vmatpush2.msra.mxu0 0.0
    %3798 = vmatprep.subr.mxu0 0.0
    %3799 = vmatpush2.msra.mxu0 0.0
    %3800 = vmatprep.subr.mxu0 0.0
    %3801 = vmatpush2.msra.mxu0 0.0
    %3802 = vmatprep.subr.mxu0 0.0
    %3803 = vmatpush2.msra.mxu0 0.0
    %3804 = vmatprep.mubr.f32.mxu0 0.0
    %3805 = vmatmul.mubr.f32.gmra.mxu0 %v3735
    %v3806 = vpop.f32.mrf.mxu0
    %v3807 = vadd.f32 0.0, %v3806
    %v3808 = vpop.f32.mrf.mxu0
    %3809 = vdwg.mxu0
    %v3811 = vsel %vm3733, %v3730, 0
    %v3813 = vsel %vm3737, %v3378, 0
    %3815 = vmatprep.subr.mxu0 0.0
    %3816 = vmatpush1.msra.mxu0 0.0
    %3817 = vmatprep.subr.mxu0 0.0
    %3818 = vmatpush1.msra.mxu0 0.0
    %3819 = vmatprep.subr.mxu0 0.0
    %3820 = vmatpush1.msra.mxu0 0.0
    %3821 = vmatprep.subr.mxu0 0.0
    %3822 = vmatpush1.msra.mxu0 0.0
    %3823 = vmatprep.subr.mxu0 0.0
    %3824 = vmatpush1.msra.mxu0 0.0
    %3825 = vmatprep.subr.mxu0 0.0
    %3826 = vmatpush1.msra.mxu0 0.0
    %3827 = vmatprep.subr.mxu0 0.0
    %3828 = vmatpush1.msra.mxu0 0.0
    %3829 = vmatprep.subr.mxu0 0.0
    %3830 = vmatpush1.msra.mxu0 0.0
    %3831 = vmatprep.subr.mxu0 0.0
    %3832 = vmatpush1.msra.mxu0 0.0
    %3833 = vmatprep.subr.mxu0 0.0
    %3834 = vmatpush1.msra.mxu0 0.0
    %3835 = vmatprep.subr.mxu0 0.0
    %3836 = vmatpush1.msra.mxu0 0.0
    %3837 = vmatprep.subr.mxu0 0.0
    %3838 = vmatpush1.msra.mxu0 0.0
    %3839 = vmatprep.subr.mxu0 0.0
    %3840 = vmatpush1.msra.mxu0 0.0
    %3841 = vmatprep.subr.mxu0 0.0
    %3842 = vmatpush1.msra.mxu0 0.0
    %3843 = vmatprep.subr.mxu0 0.0
    %3844 = vmatpush1.msra.mxu0 0.0
    %3845 = vmatprep.subr.mxu0 0.0
    %3846 = vmatpush1.msra.mxu0 %v3813
    %3847 = vmatprep.subr.mxu0 0.0
    %3848 = vmatpush2.msra.mxu0 0.0
    %3849 = vmatprep.subr.mxu0 0.0
    %3850 = vmatpush2.msra.mxu0 0.0
    %3851 = vmatprep.subr.mxu0 0.0
    %3852 = vmatpush2.msra.mxu0 0.0
    %3853 = vmatprep.subr.mxu0 0.0
    %3854 = vmatpush2.msra.mxu0 0.0
    %3855 = vmatprep.subr.mxu0 0.0
    %3856 = vmatpush2.msra.mxu0 0.0
    %3857 = vmatprep.subr.mxu0 0.0
    %3858 = vmatpush2.msra.mxu0 0.0
    %3859 = vmatprep.subr.mxu0 0.0
    %3860 = vmatpush2.msra.mxu0 0.0
    %3861 = vmatprep.subr.mxu0 0.0
    %3862 = vmatpush2.msra.mxu0 0.0
    %3863 = vmatprep.subr.mxu0 0.0
    %3864 = vmatpush2.msra.mxu0 0.0
    %3865 = vmatprep.subr.mxu0 0.0
    %3866 = vmatpush2.msra.mxu0 0.0
    %3867 = vmatprep.subr.mxu0 0.0
    %3868 = vmatpush2.msra.mxu0 0.0
    %3869 = vmatprep.subr.mxu0 0.0
    %3870 = vmatpush2.msra.mxu0 0.0
    %3871 = vmatprep.subr.mxu0 0.0
    %3872 = vmatpush2.msra.mxu0 0.0
    %3873 = vmatprep.subr.mxu0 0.0
    %3874 = vmatpush2.msra.mxu0 0.0
    %3875 = vmatprep.subr.mxu0 0.0
    %3876 = vmatpush2.msra.mxu0 0.0
    %3877 = vmatprep.subr.mxu0 0.0
    %3878 = vmatpush2.msra.mxu0 0.0
    %3879 = vmatprep.mubr.f32.mxu0 0.0
    %3880 = vmatmul.mubr.f32.gmra.mxu0 %v3811
    %v3881 = vpop.f32.mrf.mxu0
    %v3882 = vadd.f32 0.0, %v3881
    %v3883 = vpop.f32.mrf.mxu0
    %3884 = vdwg.mxu0
    %v3886 = vsel %vm3733, %v3731, 0
    %v3888 = vsel %vm3737, %v3380, 0
    %3890 = vmatprep.subr.mxu0 0.0
    %3891 = vmatpush1.msra.mxu0 0.0
    %3892 = vmatprep.subr.mxu0 0.0
    %3893 = vmatpush1.msra.mxu0 0.0
    %3894 = vmatprep.subr.mxu0 0.0
    %3895 = vmatpush1.msra.mxu0 0.0
    %3896 = vmatprep.subr.mxu0 0.0
    %3897 = vmatpush1.msra.mxu0 0.0
    %3898 = vmatprep.subr.mxu0 0.0
    %3899 = vmatpush1.msra.mxu0 0.0
    %3900 = vmatprep.subr.mxu0 0.0
    %3901 = vmatpush1.msra.mxu0 0.0
    %3902 = vmatprep.subr.mxu0 0.0
    %3903 = vmatpush1.msra.mxu0 0.0
    %3904 = vmatprep.subr.mxu0 0.0
    %3905 = vmatpush1.msra.mxu0 0.0
    %3906 = vmatprep.subr.mxu0 0.0
    %3907 = vmatpush1.msra.mxu0 0.0
    %3908 = vmatprep.subr.mxu0 0.0
    %3909 = vmatpush1.msra.mxu0 0.0
    %3910 = vmatprep.subr.mxu0 0.0
    %3911 = vmatpush1.msra.mxu0 0.0
    %3912 = vmatprep.subr.mxu0 0.0
    %3913 = vmatpush1.msra.mxu0 0.0
    %3914 = vmatprep.subr.mxu0 0.0
    %3915 = vmatpush1.msra.mxu0 0.0
    %3916 = vmatprep.subr.mxu0 0.0
    %3917 = vmatpush1.msra.mxu0 0.0
    %3918 = vmatprep.subr.mxu0 0.0
    %3919 = vmatpush1.msra.mxu0 0.0
    %3920 = vmatprep.subr.mxu0 0.0
    %3921 = vmatpush1.msra.mxu0 %v3888
    %3922 = vmatprep.subr.mxu0 0.0
    %3923 = vmatpush2.msra.mxu0 0.0
    %3924 = vmatprep.subr.mxu0 0.0
    %3925 = vmatpush2.msra.mxu0 0.0
    %3926 = vmatprep.subr.mxu0 0.0
    %3927 = vmatpush2.msra.mxu0 0.0
    %3928 = vmatprep.subr.mxu0 0.0
    %3929 = vmatpush2.msra.mxu0 0.0
    %3930 = vmatprep.subr.mxu0 0.0
    %3931 = vmatpush2.msra.mxu0 0.0
    %3932 = vmatprep.subr.mxu0 0.0
    %3933 = vmatpush2.msra.mxu0 0.0
    %3934 = vmatprep.subr.mxu0 0.0
    %3935 = vmatpush2.msra.mxu0 0.0
    %3936 = vmatprep.subr.mxu0 0.0
    %3937 = vmatpush2.msra.mxu0 0.0
    %3938 = vmatprep.subr.mxu0 0.0
    %3939 = vmatpush2.msra.mxu0 0.0
    %3940 = vmatprep.subr.mxu0 0.0
    %3941 = vmatpush2.msra.mxu0 0.0
    %3942 = vmatprep.subr.mxu0 0.0
    %3943 = vmatpush2.msra.mxu0 0.0
    %3944 = vmatprep.subr.mxu0 0.0
    %3945 = vmatpush2.msra.mxu0 0.0
    %3946 = vmatprep.subr.mxu0 0.0
    %3947 = vmatpush2.msra.mxu0 0.0
    %3948 = vmatprep.subr.mxu0 0.0
    %3949 = vmatpush2.msra.mxu0 0.0
    %3950 = vmatprep.subr.mxu0 0.0
    %3951 = vmatpush2.msra.mxu0 0.0
    %3952 = vmatprep.subr.mxu0 0.0
    %3953 = vmatpush2.msra.mxu0 0.0
    %3954 = vmatprep.mubr.f32.mxu0 0.0
    %3955 = vmatmul.mubr.f32.gmra.mxu0 %v3886
    %v3956 = vpop.f32.mrf.mxu0
    %v3957 = vadd.f32 0.0, %v3956
    %v3958 = vpop.f32.mrf.mxu0
    %3959 = vdwg.mxu0
    %v3961 = vsel %vm3733, %v3732, 0
    %v3963 = vsel %vm3737, %v3382, 0
    %3965 = vmatprep.subr.mxu0 0.0
    %3966 = vmatpush1.msra.mxu0 0.0
    %3967 = vmatprep.subr.mxu0 0.0
    %3968 = vmatpush1.msra.mxu0 0.0
    %3969 = vmatprep.subr.mxu0 0.0
    %3970 = vmatpush1.msra.mxu0 0.0
    %3971 = vmatprep.subr.mxu0 0.0
    %3972 = vmatpush1.msra.mxu0 0.0
    %3973 = vmatprep.subr.mxu0 0.0
    %3974 = vmatpush1.msra.mxu0 0.0
    %3975 = vmatprep.subr.mxu0 0.0
    %3976 = vmatpush1.msra.mxu0 0.0
    %3977 = vmatprep.subr.mxu0 0.0
    %3978 = vmatpush1.msra.mxu0 0.0
    %3979 = vmatprep.subr.mxu0 0.0
    %3980 = vmatpush1.msra.mxu0 0.0
    %3981 = vmatprep.subr.mxu0 0.0
    %3982 = vmatpush1.msra.mxu0 0.0
    %3983 = vmatprep.subr.mxu0 0.0
    %3984 = vmatpush1.msra.mxu0 0.0
    %3985 = vmatprep.subr.mxu0 0.0
    %3986 = vmatpush1.msra.mxu0 0.0
    %3987 = vmatprep.subr.mxu0 0.0
    %3988 = vmatpush1.msra.mxu0 0.0
    %3989 = vmatprep.subr.mxu0 0.0
    %3990 = vmatpush1.msra.mxu0 0.0
    %3991 = vmatprep.subr.mxu0 0.0
    %3992 = vmatpush1.msra.mxu0 0.0
    %3993 = vmatprep.subr.mxu0 0.0
    %3994 = vmatpush1.msra.mxu0 0.0
    %3995 = vmatprep.subr.mxu0 0.0
    %3996 = vmatpush1.msra.mxu0 %v3963
    %3997 = vmatprep.subr.mxu0 0.0
    %3998 = vmatpush2.msra.mxu0 0.0
    %3999 = vmatprep.subr.mxu0 0.0
    %4000 = vmatpush2.msra.mxu0 0.0
    %4001 = vmatprep.subr.mxu0 0.0
    %4002 = vmatpush2.msra.mxu0 0.0
    %4003 = vmatprep.subr.mxu0 0.0
    %4004 = vmatpush2.msra.mxu0 0.0
    %4005 = vmatprep.subr.mxu0 0.0
    %4006 = vmatpush2.msra.mxu0 0.0
    %4007 = vmatprep.subr.mxu0 0.0
    %4008 = vmatpush2.msra.mxu0 0.0
    %4009 = vmatprep.subr.mxu0 0.0
    %4010 = vmatpush2.msra.mxu0 0.0
    %4011 = vmatprep.subr.mxu0 0.0
    %4012 = vmatpush2.msra.mxu0 0.0
    %4013 = vmatprep.subr.mxu0 0.0
    %4014 = vmatpush2.msra.mxu0 0.0
    %4015 = vmatprep.subr.mxu0 0.0
    %4016 = vmatpush2.msra.mxu0 0.0
    %4017 = vmatprep.subr.mxu0 0.0
    %4018 = vmatpush2.msra.mxu0 0.0
    %4019 = vmatprep.subr.mxu0 0.0
    %4020 = vmatpush2.msra.mxu0 0.0
    %4021 = vmatprep.subr.mxu0 0.0
    %4022 = vmatpush2.msra.mxu0 0.0
    %4023 = vmatprep.subr.mxu0 0.0
    %4024 = vmatpush2.msra.mxu0 0.0
    %4025 = vmatprep.subr.mxu0 0.0
    %4026 = vmatpush2.msra.mxu0 0.0
    %4027 = vmatprep.subr.mxu0 0.0
    %4028 = vmatpush2.msra.mxu0 0.0
    %4029 = vmatprep.mubr.f32.mxu0 0.0
    %4030 = vmatmul.mubr.f32.gmra.mxu0 %v3961
    %v4031 = vpop.f32.mrf.mxu0
    %v4032 = vadd.f32 0.0, %v4031
    %v4033 = vpop.f32.mrf.mxu0
    %4034 = vdwg.mxu0
    %4036 = vrot.lane.b32.xlu0 %v3882, 16
    %v4037 = vpop.permute.xlu0 %4036
    %4040 = vrot.lane.b32.xlu0 %v3957, 32
    %v4041 = vpop.permute.xlu0 %4040
    %4044 = vrot.lane.b32.xlu0 %v4032, 48
    %v4045 = vpop.permute.xlu0 %4044
    %v4047 = vsel %vm3385, %v3807, %v4037
    %v4048 = vsel %vm304, %v4047, %v4041
    %vm4049 = vcmask 392192
    %v4050 = vsel %vm4049, %v4048, %v4045
    %v4051 = vld [vmem:[#allocation16] sm:$0xff]
    %v4052 = vld [vmem:[#allocation16 + $0x8] sm:$0xff]
    %v4053 = vld [vmem:[#allocation16 + $0x10] sm:$0xff]
    %v4054 = vld [vmem:[#allocation16 + $0x18] sm:$0xff]
    %v4055 = vld [vmem:[#allocation16 + $0x20] sm:$0xff]
    %v4056 = vld [vmem:[#allocation16 + $0x28] sm:$0xff]
    %v4057 = vld [vmem:[#allocation16 + $0x30] sm:$0xff]
    %v4058 = vld [vmem:[#allocation16 + $0x38] sm:$0xff]
    %v4059 = vld [vmem:[%s5 + $0x5] ss:$0 sm:$0xff]
    %v4061 = vsel %vm3286, %v4050, 0
    %4063 = vmatprep.subr.mxu0 0.0
    %4064 = vmatpush1.msra.mxu0 0.0
    %4065 = vmatprep.subr.mxu0 0.0
    %4066 = vmatpush1.msra.mxu0 0.0
    %4067 = vmatprep.subr.mxu0 0.0
    %4068 = vmatpush1.msra.mxu0 0.0
    %4069 = vmatprep.subr.mxu0 0.0
    %4070 = vmatpush1.msra.mxu0 0.0
    %4071 = vmatprep.subr.mxu0 0.0
    %4072 = vmatpush1.msra.mxu0 0.0
    %4073 = vmatprep.subr.mxu0 0.0
    %4074 = vmatpush1.msra.mxu0 0.0
    %4075 = vmatprep.subr.mxu0 0.0
    %4076 = vmatpush1.msra.mxu0 0.0
    %4077 = vmatprep.subr.mxu0 0.0
    %4078 = vmatpush1.msra.mxu0 0.0
    %4079 = vmatprep.subr.mxu0 0.0
    %4080 = vmatpush1.msra.mxu0 %v4058
    %4081 = vmatprep.subr.mxu0 0.0
    %4082 = vmatpush1.msra.mxu0 %v4057
    %4083 = vmatprep.subr.mxu0 0.0
    %4084 = vmatpush1.msra.mxu0 %v4056
    %4085 = vmatprep.subr.mxu0 0.0
    %4086 = vmatpush1.msra.mxu0 %v4055
    %4087 = vmatprep.subr.mxu0 0.0
    %4088 = vmatpush1.msra.mxu0 %v4054
    %4089 = vmatprep.subr.mxu0 0.0
    %4090 = vmatpush1.msra.mxu0 %v4053
    %4091 = vmatprep.subr.mxu0 0.0
    %4092 = vmatpush1.msra.mxu0 %v4052
    %4093 = vmatprep.subr.mxu0 0.0
    %4094 = vmatpush1.msra.mxu0 %v4051
    %4095 = vmatprep.subr.mxu0 0.0
    %4096 = vmatpush2.msra.mxu0 0.0
    %4097 = vmatprep.subr.mxu0 0.0
    %4098 = vmatpush2.msra.mxu0 0.0
    %4099 = vmatprep.subr.mxu0 0.0
    %4100 = vmatpush2.msra.mxu0 0.0
    %4101 = vmatprep.subr.mxu0 0.0
    %4102 = vmatpush2.msra.mxu0 0.0
    %4103 = vmatprep.subr.mxu0 0.0
    %4104 = vmatpush2.msra.mxu0 0.0
    %4105 = vmatprep.subr.mxu0 0.0
    %4106 = vmatpush2.msra.mxu0 0.0
    %4107 = vmatprep.subr.mxu0 0.0
    %4108 = vmatpush2.msra.mxu0 0.0
    %4109 = vmatprep.subr.mxu0 0.0
    %4110 = vmatpush2.msra.mxu0 0.0
    %4111 = vmatprep.subr.mxu0 0.0
    %4112 = vmatpush2.msra.mxu0 0.0
    %4113 = vmatprep.subr.mxu0 0.0
    %4114 = vmatpush2.msra.mxu0 0.0
    %4115 = vmatprep.subr.mxu0 0.0
    %4116 = vmatpush2.msra.mxu0 0.0
    %4117 = vmatprep.subr.mxu0 0.0
    %4118 = vmatpush2.msra.mxu0 0.0
    %4119 = vmatprep.subr.mxu0 0.0
    %4120 = vmatpush2.msra.mxu0 0.0
    %4121 = vmatprep.subr.mxu0 0.0
    %4122 = vmatpush2.msra.mxu0 0.0
    %4123 = vmatprep.subr.mxu0 0.0
    %4124 = vmatpush2.msra.mxu0 0.0
    %4125 = vmatprep.subr.mxu0 0.0
    %4126 = vmatpush2.msra.mxu0 0.0
    %4127 = vmatprep.mubr.f32.mxu0 0.0
    %4128 = vmatmul.mubr.f32.gmra.mxu0 %v4061
    %v4129 = vpop.f32.mrf.mxu0
    %v4130 = vadd.f32 %v4059, %v4129
    %v4131 = vpop.f32.mrf.mxu0
    %4132 = vdwg.mxu0
    %v4133 = vadd.f32 %v4130, %v3256
    %v4134 = vsel %vm3240, %v4133, 0.0
    %4135 = vadd.xlane.f32.xlu0 %v4134
    %v4136 = vpop.xlane.xlu0 %4135
    %v4137 = vmul.f32 %v4136, %v3244
    %v4138 = vsub.f32 %v4133, %v4137
    %v4139 = vmul.f32 %v4138, %v4138
    %v4140 = vsel %vm3240, %v4139, 0.0
    %4141 = vadd.xlane.f32.xlu0 %v4140
    %v4142 = vpop.xlane.xlu0 %4141
    %v4143 = vmul.f32 %v4142, %v3244
    %v4144 = vadd.f32 %v4143, 1e-05
    %v4145 = vrsqrt.pop %v4144
    %v4146 = vmul.f32 %v4138, %v4145
    %v4147 = vmul.f32 %v4146, %v3238
    %v4148 = vadd.f32 %v4147, %v3239
    %v4149 = vld [vmem:[%s8] sm:$0xff]
    %v4150 = vld [vmem:[%s8 + $0x8] sm:$0xff]
    %v4151 = vld [vmem:[%s8 + $0x10] sm:$0xff]
    %v4152 = vld [vmem:[%s8 + $0x18] sm:$0xff]
    %v4153 = vld [vmem:[%s8 + $0x20] sm:$0xff]
    %v4154 = vld [vmem:[%s8 + $0x28] sm:$0xff]
    %v4155 = vld [vmem:[%s8 + $0x30] sm:$0xff]
    %v4156 = vld [vmem:[%s8 + $0x38] sm:$0xff]
    %v4157 = vld [vmem:[%s5 + $0x6] ss:$0 sm:$0xff]
    %v4159 = vsel %vm3286, %v4148, 0
    %4161 = vmatprep.subr.mxu0 0.0
    %4162 = vmatpush1.msra.mxu0 0.0
    %4163 = vmatprep.subr.mxu0 0.0
    %4164 = vmatpush1.msra.mxu0 0.0
    %4165 = vmatprep.subr.mxu0 0.0
    %4166 = vmatpush1.msra.mxu0 0.0
    %4167 = vmatprep.subr.mxu0 0.0
    %4168 = vmatpush1.msra.mxu0 0.0
    %4169 = vmatprep.subr.mxu0 0.0
    %4170 = vmatpush1.msra.mxu0 0.0
    %4171 = vmatprep.subr.mxu0 0.0
    %4172 = vmatpush1.msra.mxu0 0.0
    %4173 = vmatprep.subr.mxu0 0.0
    %4174 = vmatpush1.msra.mxu0 0.0
    %4175 = vmatprep.subr.mxu0 0.0
    %4176 = vmatpush1.msra.mxu0 0.0
    %4177 = vmatprep.subr.mxu0 0.0
    %4178 = vmatpush1.msra.mxu0 %v4156
    %4179 = vmatprep.subr.mxu0 0.0
    %4180 = vmatpush1.msra.mxu0 %v4155
    %4181 = vmatprep.subr.mxu0 0.0
    %4182 = vmatpush1.msra.mxu0 %v4154
    %4183 = vmatprep.subr.mxu0 0.0
    %4184 = vmatpush1.msra.mxu0 %v4153
    %4185 = vmatprep.subr.mxu0 0.0
    %4186 = vmatpush1.msra.mxu0 %v4152
    %4187 = vmatprep.subr.mxu0 0.0
    %4188 = vmatpush1.msra.mxu0 %v4151
    %4189 = vmatprep.subr.mxu0 0.0
    %4190 = vmatpush1.msra.mxu0 %v4150
    %4191 = vmatprep.subr.mxu0 0.0
    %4192 = vmatpush1.msra.mxu0 %v4149
    %4193 = vmatprep.subr.mxu0 0.0
    %4194 = vmatpush2.msra.mxu0 0.0
    %4195 = vmatprep.subr.mxu0 0.0
    %4196 = vmatpush2.msra.mxu0 0.0
    %4197 = vmatprep.subr.mxu0 0.0
    %4198 = vmatpush2.msra.mxu0 0.0
    %4199 = vmatprep.subr.mxu0 0.0
    %4200 = vmatpush2.msra.mxu0 0.0
    %4201 = vmatprep.subr.mxu0 0.0
    %4202 = vmatpush2.msra.mxu0 0.0
    %4203 = vmatprep.subr.mxu0 0.0
    %4204 = vmatpush2.msra.mxu0 0.0
    %4205 = vmatprep.subr.mxu0 0.0
    %4206 = vmatpush2.msra.mxu0 0.0
    %4207 = vmatprep.subr.mxu0 0.0
    %4208 = vmatpush2.msra.mxu0 0.0
    %4209 = vmatprep.subr.mxu0 0.0
    %4210 = vmatpush2.msra.mxu0 0.0
    %4211 = vmatprep.subr.mxu0 0.0
    %4212 = vmatpush2.msra.mxu0 0.0
    %4213 = vmatprep.subr.mxu0 0.0
    %4214 = vmatpush2.msra.mxu0 0.0
    %4215 = vmatprep.subr.mxu0 0.0
    %4216 = vmatpush2.msra.mxu0 0.0
    %4217 = vmatprep.subr.mxu0 0.0
    %4218 = vmatpush2.msra.mxu0 0.0
    %4219 = vmatprep.subr.mxu0 0.0
    %4220 = vmatpush2.msra.mxu0 0.0
    %4221 = vmatprep.subr.mxu0 0.0
    %4222 = vmatpush2.msra.mxu0 0.0
    %4223 = vmatprep.subr.mxu0 0.0
    %4224 = vmatpush2.msra.mxu0 0.0
    %4225 = vmatprep.mubr.f32.mxu0 0.0
    %4226 = vmatmul.mubr.f32.gmra.mxu0 %v4159
    %v4227 = vpop.f32.mrf.mxu0
    %v4228 = vadd.f32 %v4157, %v4227
    %v4229 = vpop.f32.mrf.mxu0
    %4230 = vdwg.mxu0
    %v4231 = vld [vmem:[%s5 + $0x7] ss:$0 sm:$0xff]
    %v4232 = vld [vmem:[%s5 + $0x10] ss:$0 sm:$0xff]
    %v4233 = vsel %vm503, %v4228, 0.0
    %4234 = vadd.xlane.f32.xlu0 %v4233
    %v4235 = vpop.xlane.xlu0 %4234
    %v4236 = vrcp.pop 32.0
    %v4237 = vmul.f32 %v4235, %v4236
    %v4238 = vsub.f32 %v4228, %v4237
    %v4239 = vmul.f32 %v4238, %v4238
    %v4240 = vsel %vm503, %v4239, 0.0
    %4241 = vadd.xlane.f32.xlu0 %v4240
    %v4242 = vpop.xlane.xlu0 %4241
    %v4243 = vmul.f32 %v4242, %v4236
    %v4244 = vadd.f32 %v4243, 1e-05
    %v4245 = vrsqrt.pop %v4244
    %v4246 = vmul.f32 %v4238, %v4245
    %v4247 = vmul.f32 %v4246, %v4231
    %v4248 = vadd.f32 %v4247, %v4232
    %v4249 = vmax.f32 %v4248, 0.0
    %v4250 = vld [vmem:[%s9] sm:$0xff]
    %v4251 = vld [vmem:[%s9 + $0x8] sm:$0xff]
    %v4252 = vld [vmem:[%s9 + $0x10] sm:$0xff]
    %v4253 = vld [vmem:[%s9 + $0x18] sm:$0xff]
    %v4254 = vld [vmem:[%s5 + $0x11] ss:$0 sm:$0xff]
    %v4256 = vsel %vm304, %v4249, 0
    %4258 = vmatprep.subr.mxu0 0.0
    %4259 = vmatpush1.msra.mxu0 0.0
    %4260 = vmatprep.subr.mxu0 0.0
    %4261 = vmatpush1.msra.mxu0 0.0
    %4262 = vmatprep.subr.mxu0 0.0
    %4263 = vmatpush1.msra.mxu0 0.0
    %4264 = vmatprep.subr.mxu0 0.0
    %4265 = vmatpush1.msra.mxu0 0.0
    %4266 = vmatprep.subr.mxu0 0.0
    %4267 = vmatpush1.msra.mxu0 0.0
    %4268 = vmatprep.subr.mxu0 0.0
    %4269 = vmatpush1.msra.mxu0 0.0
    %4270 = vmatprep.subr.mxu0 0.0
    %4271 = vmatpush1.msra.mxu0 0.0
    %4272 = vmatprep.subr.mxu0 0.0
    %4273 = vmatpush1.msra.mxu0 0.0
    %4274 = vmatprep.subr.mxu0 0.0
    %4275 = vmatpush1.msra.mxu0 0.0
    %4276 = vmatprep.subr.mxu0 0.0
    %4277 = vmatpush1.msra.mxu0 0.0
    %4278 = vmatprep.subr.mxu0 0.0
    %4279 = vmatpush1.msra.mxu0 0.0
    %4280 = vmatprep.subr.mxu0 0.0
    %4281 = vmatpush1.msra.mxu0 0.0
    %4282 = vmatprep.subr.mxu0 0.0
    %4283 = vmatpush1.msra.mxu0 %v4253
    %4284 = vmatprep.subr.mxu0 0.0
    %4285 = vmatpush1.msra.mxu0 %v4252
    %4286 = vmatprep.subr.mxu0 0.0
    %4287 = vmatpush1.msra.mxu0 %v4251
    %4288 = vmatprep.subr.mxu0 0.0
    %4289 = vmatpush1.msra.mxu0 %v4250
    %4290 = vmatprep.subr.mxu0 0.0
    %4291 = vmatpush2.msra.mxu0 0.0
    %4292 = vmatprep.subr.mxu0 0.0
    %4293 = vmatpush2.msra.mxu0 0.0
    %4294 = vmatprep.subr.mxu0 0.0
    %4295 = vmatpush2.msra.mxu0 0.0
    %4296 = vmatprep.subr.mxu0 0.0
    %4297 = vmatpush2.msra.mxu0 0.0
    %4298 = vmatprep.subr.mxu0 0.0
    %4299 = vmatpush2.msra.mxu0 0.0
    %4300 = vmatprep.subr.mxu0 0.0
    %4301 = vmatpush2.msra.mxu0 0.0
    %4302 = vmatprep.subr.mxu0 0.0
    %4303 = vmatpush2.msra.mxu0 0.0
    %4304 = vmatprep.subr.mxu0 0.0
    %4305 = vmatpush2.msra.mxu0 0.0
    %4306 = vmatprep.subr.mxu0 0.0
    %4307 = vmatpush2.msra.mxu0 0.0
    %4308 = vmatprep.subr.mxu0 0.0
    %4309 = vmatpush2.msra.mxu0 0.0
    %4310 = vmatprep.subr.mxu0 0.0
    %4311 = vmatpush2.msra.mxu0 0.0
    %4312 = vmatprep.subr.mxu0 0.0
    %4313 = vmatpush2.msra.mxu0 0.0
    %4314 = vmatprep.subr.mxu0 0.0
    %4315 = vmatpush2.msra.mxu0 0.0
    %4316 = vmatprep.subr.mxu0 0.0
    %4317 = vmatpush2.msra.mxu0 0.0
    %4318 = vmatprep.subr.mxu0 0.0
    %4319 = vmatpush2.msra.mxu0 0.0
    %4320 = vmatprep.subr.mxu0 0.0
    %4321 = vmatpush2.msra.mxu0 0.0
    %4322 = vmatprep.mubr.f32.mxu0 0.0
    %4323 = vmatmul.mubr.f32.gmra.mxu0 %v4256
    %v4324 = vpop.f32.mrf.mxu0
    %v4325 = vadd.f32 %v4254, %v4324
    %v4326 = vpop.f32.mrf.mxu0
    %4327 = vdwg.mxu0
    %v4328 = vld [vmem:[%s5 + $0x12] ss:$0 sm:$0xff]
    %v4329 = vld [vmem:[%s5 + $0x13] ss:$0 sm:$0xff]
    %vm4330 = vcmask 123904
    %v4331 = vsel %vm4330, %v4325, 0.0
    %4332 = vadd.xlane.f32.xlu0 %v4331
    %v4333 = vpop.xlane.xlu0 %4332
    %v4334 = vrcp.pop 16.0
    %v4335 = vmul.f32 %v4333, %v4334
    %v4336 = vsub.f32 %v4325, %v4335
    %v4337 = vmul.f32 %v4336, %v4336
    %v4338 = vsel %vm4330, %v4337, 0.0
    %4339 = vadd.xlane.f32.xlu0 %v4338
    %v4340 = vpop.xlane.xlu0 %4339
    %v4341 = vmul.f32 %v4340, %v4334
    %v4342 = vadd.f32 %v4341, 1e-05
    %v4343 = vrsqrt.pop %v4342
    %v4344 = vmul.f32 %v4336, %v4343
    %v4345 = vmul.f32 %v4344, %v4328
    %v4346 = vadd.f32 %v4345, %v4329
    %v4347 = vmax.f32 %v4346, 0.0
    %v4348 = vld [vmem:[%s10] sm:$0xff]
    %v4349 = vld [vmem:[%s10 + $0x8] sm:$0xff]
    %v4350 = vld [vmem:[%s5 + $0x14] ss:$0 sm:$0xff]
    %v4352 = vsel %vm3385, %v4347, 0
    %4354 = vmatprep.subr.mxu0 0.0
    %4355 = vmatpush1.msra.mxu0 0.0
    %4356 = vmatprep.subr.mxu0 0.0
    %4357 = vmatpush1.msra.mxu0 0.0
    %4358 = vmatprep.subr.mxu0 0.0
    %4359 = vmatpush1.msra.mxu0 0.0
    %4360 = vmatprep.subr.mxu0 0.0
    %4361 = vmatpush1.msra.mxu0 0.0
    %4362 = vmatprep.subr.mxu0 0.0
    %4363 = vmatpush1.msra.mxu0 0.0
    %4364 = vmatprep.subr.mxu0 0.0
    %4365 = vmatpush1.msra.mxu0 0.0
    %4366 = vmatprep.subr.mxu0 0.0
    %4367 = vmatpush1.msra.mxu0 0.0
    %4368 = vmatprep.subr.mxu0 0.0
    %4369 = vmatpush1.msra.mxu0 0.0
    %4370 = vmatprep.subr.mxu0 0.0
    %4371 = vmatpush1.msra.mxu0 0.0
    %4372 = vmatprep.subr.mxu0 0.0
    %4373 = vmatpush1.msra.mxu0 0.0
    %4374 = vmatprep.subr.mxu0 0.0
    %4375 = vmatpush1.msra.mxu0 0.0
    %4376 = vmatprep.subr.mxu0 0.0
    %4377 = vmatpush1.msra.mxu0 0.0
    %4378 = vmatprep.subr.mxu0 0.0
    %4379 = vmatpush1.msra.mxu0 0.0
    %4380 = vmatprep.subr.mxu0 0.0
    %4381 = vmatpush1.msra.mxu0 0.0
    %4382 = vmatprep.subr.mxu0 0.0
    %4383 = vmatpush1.msra.mxu0 %v4349
    %4384 = vmatprep.subr.mxu0 0.0
    %4385 = vmatpush1.msra.mxu0 %v4348
    %4386 = vmatprep.subr.mxu0 0.0
    %4387 = vmatpush2.msra.mxu0 0.0
    %4388 = vmatprep.subr.mxu0 0.0
    %4389 = vmatpush2.msra.mxu0 0.0
    %4390 = vmatprep.subr.mxu0 0.0
    %4391 = vmatpush2.msra.mxu0 0.0
    %4392 = vmatprep.subr.mxu0 0.0
    %4393 = vmatpush2.msra.mxu0 0.0
    %4394 = vmatprep.subr.mxu0 0.0
    %4395 = vmatpush2.msra.mxu0 0.0
    %4396 = vmatprep.subr.mxu0 0.0
    %4397 = vmatpush2.msra.mxu0 0.0
    %4398 = vmatprep.subr.mxu0 0.0
    %4399 = vmatpush2.msra.mxu0 0.0
    %4400 = vmatprep.subr.mxu0 0.0
    %4401 = vmatpush2.msra.mxu0 0.0
    %4402 = vmatprep.subr.mxu0 0.0
    %4403 = vmatpush2.msra.mxu0 0.0
    %4404 = vmatprep.subr.mxu0 0.0
    %4405 = vmatpush2.msra.mxu0 0.0
    %4406 = vmatprep.subr.mxu0 0.0
    %4407 = vmatpush2.msra.mxu0 0.0
    %4408 = vmatprep.subr.mxu0 0.0
    %4409 = vmatpush2.msra.mxu0 0.0
    %4410 = vmatprep.subr.mxu0 0.0
    %4411 = vmatpush2.msra.mxu0 0.0
    %4412 = vmatprep.subr.mxu0 0.0
    %4413 = vmatpush2.msra.mxu0 0.0
    %4414 = vmatprep.subr.mxu0 0.0
    %4415 = vmatpush2.msra.mxu0 0.0
    %4416 = vmatprep.subr.mxu0 0.0
    %4417 = vmatpush2.msra.mxu0 0.0
    %4418 = vmatprep.mubr.f32.mxu0 0.0
    %4419 = vmatmul.mubr.f32.gmra.mxu0 %v4352
    %v4420 = vpop.f32.mrf.mxu0
    %v4421 = vadd.f32 %v4350, %v4420
    %v4422 = vpop.f32.mrf.mxu0
    %4423 = vdwg.mxu0
    %v4424 = vld [vmem:[%s5 + $0x15] ss:$0 sm:$0xff]
    %v4425 = vld [vmem:[%s5 + $0x16] ss:$0 sm:$0xff]
    %vm4426 = vcmask 58368
    %v4427 = vsel %vm4426, %v4421, 0.0
    %4428 = vadd.xlane.f32.xlu0 %v4427
    %v4429 = vpop.xlane.xlu0 %4428
    %v4430 = vrcp.pop 8.0
    %v4431 = vmul.f32 %v4429, %v4430
    %v4432 = vsub.f32 %v4421, %v4431
    %v4433 = vmul.f32 %v4432, %v4432
    %v4434 = vsel %vm4426, %v4433, 0.0
    %4435 = vadd.xlane.f32.xlu0 %v4434
    %v4436 = vpop.xlane.xlu0 %4435
    %v4437 = vmul.f32 %v4436, %v4430
    %v4438 = vadd.f32 %v4437, 1e-05
    %v4439 = vrsqrt.pop %v4438
    %v4440 = vmul.f32 %v4432, %v4439
    %v4441 = vmul.f32 %v4440, %v4424
    %v4442 = vadd.f32 %v4441, %v4425
    %v4443 = vmax.f32 %v4442, 0.0
    %v4444 = vld [vmem:[%s5 + $0x17] ss:$0 sm:$0xff]
    %v4445 = vmul.f32 %v4443, %v4444
    %v4446 = vsel %vm4426, %v4445, 0.0
    %4447 = vadd.xlane.f32.xlu0 %v4446
    %v4448 = vpop.xlane.xlu0 %4447
    %v4449 = vld [vmem:[%s5 + $0x20] ss:$0 sm:$0xff]
    %v4450 = vadd.f32 %v4448, %v4449
    %vm4451 = vcmask 1024
    %4452 = vst.msk [vmem:[%s11] sm:$0x3] %vm4451, %v4450
    // Predicated region
    $region70: #{forward.1} parent=1 // pred_check
      _
    $region71: #{forward.1} parent=1 // pred_check_branch
      %4454 = sbr.rel (0) target = $region73
    $region72: #{forward.1} parent=1 // pred_region
      _
    $region73: #{forward.1} parent=1 // pred_fallthru
      _
    // Predicated region
    $region74: #{forward.1} parent=1 // pred_check
      _
    $region75: #{forward.1} parent=1 // pred_check_branch
      %4456 = sbr.rel (0) target = $region77
    $region76: #{forward.1} parent=1 // pred_region
      _
    $region77: #{forward.1} parent=1 // pred_fallthru
      _
    %4457 = vsyncpa [#allocation9], 1
    %4458 = vsyncpa [#allocation11], 1
    %4459 = vsyncpa [#allocation14], 1
    %4460 = vsyncpa [#allocation17], 1

</llo_original>
